<compile_context>
chip_gen: v7x
topology: tpu7x:2x2x1
jax: 0.10.0
libtpu: 0.0.40
codegen_flags: <defaults>
</compile_context>

<pallas_src>
import math

import jax
import jax.numpy as jnp
from jax import lax
from jax.experimental import pallas as pl
from jax.experimental.pallas import tpu as pltpu


def _mha_kernel(num_heads, head_dim, q_tile, embed):
    scale = 1.0 / math.sqrt(head_dim)

    def kernel(q_ref, k_ref, v_ref,
               wq_ref, bq_ref, wk_ref, bk_ref,
               wv_ref, bv_ref, wo_ref, bo_ref,
               o_ref):
        q = q_ref[...]          # (tq, E)  -- batch dim squeezed via BlockSpec
        k = k_ref[...]          # (S,  E)
        v = v_ref[...]          # (S,  E)

        # Input projections on the MXU, f32 accumulation.
        Q = jnp.dot(q, wq_ref[...], preferred_element_type=jnp.float32) + bq_ref[...]
        Q = Q * scale           # fold 1/sqrt(D) into Q (cheaper than scaling scores)
        K = jnp.dot(k, wk_ref[...], preferred_element_type=jnp.float32) + bk_ref[...]
        V = jnp.dot(v, wv_ref[...], preferred_element_type=jnp.float32) + bv_ref[...]

        acc = jnp.zeros((q_tile, embed), jnp.float32)
        for h in range(num_heads):          # small H -> unrolled, static slices
            lo = h * head_dim
            Qh = Q[:, lo:lo + head_dim]     # (tq, D)
            Kh = K[:, lo:lo + head_dim]     # (S,  D)
            Vh = V[:, lo:lo + head_dim]     # (S,  D)

            # scores = Qh @ Kh^T without an explicit transpose of Kh.
            scores = lax.dot_general(
                Qh, Kh,
                dimension_numbers=(((1,), (1,)), ((), ())),
                preferred_element_type=jnp.float32)        # (tq, S)

            # Numerically-stable softmax; normalization via EUP reciprocal.
            m = jnp.max(scores, axis=-1, keepdims=True)
            e = jnp.exp(scores - m)
            denom = jnp.sum(e, axis=-1, keepdims=True)
            weights = e * pl.reciprocal(denom, approx=True)

            head_out = jnp.dot(weights, Vh,
                               preferred_element_type=jnp.float32)   # (tq, D)
            # Accumulate this head's slice of the output projection directly:
            # out += head_out @ W_o[h*D:(h+1)*D, :]   (no concat needed).
            acc = acc + jnp.dot(head_out, wo_ref[lo:lo + head_dim, :],
                                preferred_element_type=jnp.float32)

        o_ref[...] = (acc + bo_ref[...]).astype(o_ref.dtype)

    return kernel


def attention_pooling(query, key, value, params, num_heads, *, q_tile=None):
    """query/key/value: (B, S, E).  mask is not supported (mask=None case).

    params: dict with wq/wk/wv/wo of shape (E, E) stored as (in, out),
            and bq/bk/bv/bo of shape (1, E).
    """
    B, S, E = query.shape
    assert E % num_heads == 0, "embed_size must be divisible by num_heads"
    head_dim = E // num_heads

    if q_tile is None:
        q_tile = 128 if S % 128 == 0 else S
    assert S % q_tile == 0
    nq = S // q_tile

    w_spec = pl.BlockSpec((E, E), lambda b, qi: (0, 0))
    b_spec = pl.BlockSpec((1, E), lambda b, qi: (0, 0))
    q_spec = pl.BlockSpec((None, q_tile, E), lambda b, qi: (b, qi, 0))
    kv_spec = pl.BlockSpec((None, S, E), lambda b, qi: (b, 0, 0))

    # Advisory cost hint for XLA's scheduler.
    flops = B * (8 * S * E * E + 4 * S * S * E)
    transcendentals = B * num_heads * S * S
    bytes_accessed = 4 * B * S * E * 4 + 4 * E * E * 4 + 4 * E * 4
    cost = pl.CostEstimate(flops=flops, transcendentals=transcendentals,
                           bytes_accessed=bytes_accessed)

    return pl.pallas_call(
        _mha_kernel(num_heads, head_dim, q_tile, E),
        out_shape=jax.ShapeDtypeStruct((B, S, E), query.dtype),
        grid_spec=pltpu.PrefetchScalarGridSpec(
            num_scalar_prefetch=0,
            grid=(B, nq),
            in_specs=[
                q_spec, kv_spec, kv_spec,
                w_spec, b_spec,   # Wq, bq
                w_spec, b_spec,   # Wk, bk
                w_spec, b_spec,   # Wv, bv
                w_spec, b_spec,   # Wo, bo
            ],
            out_specs=q_spec,
        ),
        compiler_params=pltpu.CompilerParams(
            dimension_semantics=("parallel", "parallel"),
            vmem_limit_bytes=64 * 1024 * 1024),
        cost_estimate=cost,
    )(query, key, value,
      params["wq"], params["bq"],
      params["wk"], params["bk"],
      params["wv"], params["bv"],
      params["wo"], params["bo"])


def _init_linear(key, e_in, e_out):
    """PyTorch nn.Linear-style uniform init; weight returned as (in, out)."""
    bound = 1.0 / math.sqrt(e_in)
    k_w, k_b = jax.random.split(key)
    w = jax.random.uniform(k_w, (e_in, e_out), jnp.float32, -bound, bound)
    b = jax.random.uniform(k_b, (1, e_out), jnp.float32, -bound, bound)
    return w, b


def _reference(query, key, value, params, num_heads):
    """Pure-JAX reference mirroring the PyTorch forward (mask=None)."""
    B, S, E = query.shape
    D = E // num_heads

    def proj(x, w, b):
        return x @ w + b

    def split_heads(x):
        return x.reshape(B, S, num_heads, D).transpose(0, 2, 1, 3)  # (B,H,S,D)

    Q = split_heads(proj(query, params["wq"], params["bq"]))
    K = split_heads(proj(key, params["wk"], params["bk"]))
    V = split_heads(proj(value, params["wv"], params["bv"]))

    scores = jnp.einsum("bhqd,bhkd->bhqk", Q, K) / math.sqrt(D)
    weights = jax.nn.softmax(scores, axis=-1)
    attn = jnp.einsum("bhqk,bhkd->bhqd", weights, V)
    concat = attn.transpose(0, 2, 1, 3).reshape(B, S, E)
    return concat @ params["wo"] + params["bo"]


if __name__ == "__main__":
    # Lane/sublane-friendly small shapes: E multiple of 128, S multiple of 8.
    B, S, E, H = 2, 128, 128, 4

    root = jax.random.PRNGKey(0)
    k_q, k_k, k_v, k_wq, k_wk, k_wv, k_wo = jax.random.split(root, 7)

    query = jax.random.normal(k_q, (B, S, E), jnp.float32)
    key_in = jax.random.normal(k_k, (B, S, E), jnp.float32)
    value = jax.random.normal(k_v, (B, S, E), jnp.float32)

    wq, bq = _init_linear(k_wq, E, E)
    wk, bk = _init_linear(k_wk, E, E)
    wv, bv = _init_linear(k_wv, E, E)
    wo, bo = _init_linear(k_wo, E, E)
    params = dict(wq=wq, bq=bq, wk=wk, bk=bk, wv=wv, bv=bv, wo=wo, bo=bo)

    # q_tile=64 -> grid (B, 2) = 4 parallel steps (keeps both v7x TCs busy).
    out = attention_pooling(query, key_in, value, params, H, q_tile=64)
    out = jax.block_until_ready(out)

    ref = _reference(query, key_in, value, params, H)
    assert out.shape == (B, S, E)
    # Tolerance slightly relaxed vs exact-divide softmax because the kernel uses
    # the EUP approximate reciprocal for the softmax normalization.
    max_diff = jnp.max(jnp.abs(out - ref))
    assert jnp.allclose(out, ref, atol=2e-3, rtol=2e-3), f"max abs diff {max_diff}"

    print("KERNEL_OK")
</pallas_src>

<mosaic_0001>
module attributes {stable_mosaic.version = 11 : i64} {
  func.func @kernel(%arg0: i32, %arg1: i32, %arg2: memref<1x64x128xf32, #tpu.memory_space<vmem>>, %arg3: memref<1x128x128xf32, #tpu.memory_space<vmem>>, %arg4: memref<1x128x128xf32, #tpu.memory_space<vmem>>, %arg5: memref<128x128xf32, #tpu.memory_space<vmem>>, %arg6: memref<1x128xf32, #tpu.memory_space<vmem>>, %arg7: memref<128x128xf32, #tpu.memory_space<vmem>>, %arg8: memref<1x128xf32, #tpu.memory_space<vmem>>, %arg9: memref<128x128xf32, #tpu.memory_space<vmem>>, %arg10: memref<1x128xf32, #tpu.memory_space<vmem>>, %arg11: memref<128x128xf32, #tpu.memory_space<vmem>>, %arg12: memref<1x128xf32, #tpu.memory_space<vmem>>, %arg13: memref<1x64x128xf32, #tpu.memory_space<vmem>>) attributes {dimension_semantics = [#tpu.dimension_semantics<parallel>, #tpu.dimension_semantics<parallel>], iteration_bounds = array<i64: 2, 2>, scalar_prefetch = 0 : i64, scratch_operands = 0 : i64, tpu.core_type = #tpu.core_type<tc>, window_params = [{transform_indices = @transform_0, window_bounds = array<i64: 1, 64, 128>}, {transform_indices = @transform_1, window_bounds = array<i64: 1, 128, 128>}, {transform_indices = @transform_2, window_bounds = array<i64: 1, 128, 128>}, {pipeline_mode = #tpu.pipeline_mode<synchronous>, transform_indices = @transform_3, window_bounds = array<i64: 128, 128>}, {pipeline_mode = #tpu.pipeline_mode<synchronous>, transform_indices = @transform_4, window_bounds = array<i64: 1, 128>}, {pipeline_mode = #tpu.pipeline_mode<synchronous>, transform_indices = @transform_5, window_bounds = array<i64: 128, 128>}, {pipeline_mode = #tpu.pipeline_mode<synchronous>, transform_indices = @transform_6, window_bounds = array<i64: 1, 128>}, {pipeline_mode = #tpu.pipeline_mode<synchronous>, transform_indices = @transform_7, window_bounds = array<i64: 128, 128>}, {pipeline_mode = #tpu.pipeline_mode<synchronous>, transform_indices = @transform_8, window_bounds = array<i64: 1, 128>}, {pipeline_mode = #tpu.pipeline_mode<synchronous>, transform_indices = @transform_9, window_bounds = array<i64: 128, 128>}, {pipeline_mode = #tpu.pipeline_mode<synchronous>, transform_indices = @transform_10, window_bounds = array<i64: 1, 128>}, {transform_indices = @transform_11, window_bounds = array<i64: 1, 64, 128>}]} {
    %c0 = arith.constant 0 : index
    %c0_0 = arith.constant 0 : index
    %c0_1 = arith.constant 0 : index
    %0 = vector.load %arg2[%c0, %c0_0, %c0_1] : memref<1x64x128xf32, #tpu.memory_space<vmem>>, vector<1x64x128xf32>
    %1 = vector.shape_cast %0 : vector<1x64x128xf32> to vector<64x128xf32>
    %c0_2 = arith.constant 0 : index
    %c0_3 = arith.constant 0 : index
    %c0_4 = arith.constant 0 : index
    %2 = vector.load %arg3[%c0_2, %c0_3, %c0_4] : memref<1x128x128xf32, #tpu.memory_space<vmem>>, vector<1x128x128xf32>
    %3 = vector.shape_cast %2 : vector<1x128x128xf32> to vector<128x128xf32>
    %c0_5 = arith.constant 0 : index
    %c0_6 = arith.constant 0 : index
    %c0_7 = arith.constant 0 : index
    %4 = vector.load %arg4[%c0_5, %c0_6, %c0_7] : memref<1x128x128xf32, #tpu.memory_space<vmem>>, vector<1x128x128xf32>
    %5 = vector.shape_cast %4 : vector<1x128x128xf32> to vector<128x128xf32>
    %c0_8 = arith.constant 0 : index
    %c0_9 = arith.constant 0 : index
    %6 = vector.load %arg5[%c0_8, %c0_9] : memref<128x128xf32, #tpu.memory_space<vmem>>, vector<128x128xf32>
    %cst = arith.constant dense<0.000000e+00> : vector<64x128xf32>
    %7 = tpu.matmul %1, %6, %cst {dimension_numbers = #tpu.dot_dimension_numbers<[1], [0], [0], [1], [0, 0, 1, 1], [], []>} : vector<64x128xf32>, vector<128x128xf32>, vector<64x128xf32> -> vector<64x128xf32>
    %c0_10 = arith.constant 0 : index
    %c0_11 = arith.constant 0 : index
    %8 = vector.load %arg6[%c0_10, %c0_11] : memref<1x128xf32, #tpu.memory_space<vmem>>, vector<1x128xf32>
    %9 = vector.broadcast %8 : vector<1x128xf32> to vector<64x128xf32>
    %10 = arith.addf %7, %9 : vector<64x128xf32>
    %cst_12 = arith.constant 0.176776692 : f32
    %11 = vector.broadcast %cst_12 : f32 to vector<64x128xf32>
    %12 = arith.mulf %10, %11 : vector<64x128xf32>
    %c0_13 = arith.constant 0 : index
    %c0_14 = arith.constant 0 : index
    %13 = vector.load %arg7[%c0_13, %c0_14] : memref<128x128xf32, #tpu.memory_space<vmem>>, vector<128x128xf32>
    %cst_15 = arith.constant dense<0.000000e+00> : vector<128x128xf32>
    %14 = tpu.matmul %3, %13, %cst_15 {dimension_numbers = #tpu.dot_dimension_numbers<[1], [0], [0], [1], [0, 0, 1, 1], [], []>} : vector<128x128xf32>, vector<128x128xf32>, vector<128x128xf32> -> vector<128x128xf32>
    %c0_16 = arith.constant 0 : index
    %c0_17 = arith.constant 0 : index
    %15 = vector.load %arg8[%c0_16, %c0_17] : memref<1x128xf32, #tpu.memory_space<vmem>>, vector<1x128xf32>
    %16 = vector.broadcast %15 : vector<1x128xf32> to vector<128x128xf32>
    %17 = arith.addf %14, %16 : vector<128x128xf32>
    %c0_18 = arith.constant 0 : index
    %c0_19 = arith.constant 0 : index
    %18 = vector.load %arg9[%c0_18, %c0_19] : memref<128x128xf32, #tpu.memory_space<vmem>>, vector<128x128xf32>
    %cst_20 = arith.constant dense<0.000000e+00> : vector<128x128xf32>
    %19 = tpu.matmul %5, %18, %cst_20 {dimension_numbers = #tpu.dot_dimension_numbers<[1], [0], [0], [1], [0, 0, 1, 1], [], []>} : vector<128x128xf32>, vector<128x128xf32>, vector<128x128xf32> -> vector<128x128xf32>
    %c0_21 = arith.constant 0 : index
    %c0_22 = arith.constant 0 : index
    %20 = vector.load %arg10[%c0_21, %c0_22] : memref<1x128xf32, #tpu.memory_space<vmem>>, vector<1x128xf32>
    %21 = vector.broadcast %20 : vector<1x128xf32> to vector<128x128xf32>
    %22 = arith.addf %19, %21 : vector<128x128xf32>
    %cst_23 = arith.constant 0.000000e+00 : f32
    %23 = vector.broadcast %cst_23 : f32 to vector<64x128xf32>
    %24 = vector.extract_strided_slice %12 {offsets = [0, 0], sizes = [64, 32], strides = [1, 1]} : vector<64x128xf32> to vector<64x32xf32>
    %25 = vector.extract_strided_slice %17 {offsets = [0, 0], sizes = [128, 32], strides = [1, 1]} : vector<128x128xf32> to vector<128x32xf32>
    %26 = vector.extract_strided_slice %22 {offsets = [0, 0], sizes = [128, 32], strides = [1, 1]} : vector<128x128xf32> to vector<128x32xf32>
    %cst_24 = arith.constant dense<0.000000e+00> : vector<64x128xf32>
    %27 = tpu.matmul %24, %25, %cst_24 {dimension_numbers = #tpu.dot_dimension_numbers<[1], [1], [0], [0], [0, 0, 1, 0], [], []>} : vector<64x32xf32>, vector<128x32xf32>, vector<64x128xf32> -> vector<64x128xf32>
    %cst_25 = arith.constant dense<0xFF800000> : vector<64xf32>
    %28 = vector.multi_reduction <maximumf>, %27, %cst_25 [1] : vector<64x128xf32> to vector<64xf32>
    %29 = vector.shape_cast %28 : vector<64xf32> to vector<64x1xf32>
    %30 = vector.broadcast %29 : vector<64x1xf32> to vector<64x128xf32>
    %31 = arith.subf %27, %30 : vector<64x128xf32>
    %32 = math.exp %31 : vector<64x128xf32>
    %cst_26 = arith.constant dense<0.000000e+00> : vector<64xf32>
    %33 = vector.multi_reduction <add>, %32, %cst_26 [1] : vector<64x128xf32> to vector<64xf32>
    %34 = vector.shape_cast %33 : vector<64xf32> to vector<64x1xf32>
    %35 = tpu.reciprocal %34 {approx = true} : vector<64x1xf32> -> vector<64x1xf32>
    %36 = vector.broadcast %35 : vector<64x1xf32> to vector<64x128xf32>
    %37 = arith.mulf %32, %36 : vector<64x128xf32>
    %cst_27 = arith.constant dense<0.000000e+00> : vector<64x32xf32>
    %38 = tpu.matmul %37, %26, %cst_27 {dimension_numbers = #tpu.dot_dimension_numbers<[1], [0], [0], [1], [0, 0, 1, 1], [], []>} : vector<64x128xf32>, vector<128x32xf32>, vector<64x32xf32> -> vector<64x32xf32>
    %c0_28 = arith.constant 0 : index
    %c0_29 = arith.constant 0 : index
    %39 = vector.load %arg11[%c0_28, %c0_29] : memref<128x128xf32, #tpu.memory_space<vmem>>, vector<32x128xf32>
    %cst_30 = arith.constant dense<0.000000e+00> : vector<64x128xf32>
    %40 = tpu.matmul %38, %39, %cst_30 {dimension_numbers = #tpu.dot_dimension_numbers<[1], [0], [0], [1], [0, 0, 1, 1], [], []>} : vector<64x32xf32>, vector<32x128xf32>, vector<64x128xf32> -> vector<64x128xf32>
    %41 = arith.addf %23, %40 : vector<64x128xf32>
    %42 = vector.extract_strided_slice %12 {offsets = [0, 32], sizes = [64, 32], strides = [1, 1]} : vector<64x128xf32> to vector<64x32xf32>
    %43 = vector.extract_strided_slice %17 {offsets = [0, 32], sizes = [128, 32], strides = [1, 1]} : vector<128x128xf32> to vector<128x32xf32>
    %44 = vector.extract_strided_slice %22 {offsets = [0, 32], sizes = [128, 32], strides = [1, 1]} : vector<128x128xf32> to vector<128x32xf32>
    %cst_31 = arith.constant dense<0.000000e+00> : vector<64x128xf32>
    %45 = tpu.matmul %42, %43, %cst_31 {dimension_numbers = #tpu.dot_dimension_numbers<[1], [1], [0], [0], [0, 0, 1, 0], [], []>} : vector<64x32xf32>, vector<128x32xf32>, vector<64x128xf32> -> vector<64x128xf32>
    %cst_32 = arith.constant dense<0xFF800000> : vector<64xf32>
    %46 = vector.multi_reduction <maximumf>, %45, %cst_32 [1] : vector<64x128xf32> to vector<64xf32>
    %47 = vector.shape_cast %46 : vector<64xf32> to vector<64x1xf32>
    %48 = vector.broadcast %47 : vector<64x1xf32> to vector<64x128xf32>
    %49 = arith.subf %45, %48 : vector<64x128xf32>
    %50 = math.exp %49 : vector<64x128xf32>
    %cst_33 = arith.constant dense<0.000000e+00> : vector<64xf32>
    %51 = vector.multi_reduction <add>, %50, %cst_33 [1] : vector<64x128xf32> to vector<64xf32>
    %52 = vector.shape_cast %51 : vector<64xf32> to vector<64x1xf32>
    %53 = tpu.reciprocal %52 {approx = true} : vector<64x1xf32> -> vector<64x1xf32>
    %54 = vector.broadcast %53 : vector<64x1xf32> to vector<64x128xf32>
    %55 = arith.mulf %50, %54 : vector<64x128xf32>
    %cst_34 = arith.constant dense<0.000000e+00> : vector<64x32xf32>
    %56 = tpu.matmul %55, %44, %cst_34 {dimension_numbers = #tpu.dot_dimension_numbers<[1], [0], [0], [1], [0, 0, 1, 1], [], []>} : vector<64x128xf32>, vector<128x32xf32>, vector<64x32xf32> -> vector<64x32xf32>
    %c32 = arith.constant 32 : index
    %c0_35 = arith.constant 0 : index
    %57 = vector.load %arg11[%c32, %c0_35] : memref<128x128xf32, #tpu.memory_space<vmem>>, vector<32x128xf32>
    %cst_36 = arith.constant dense<0.000000e+00> : vector<64x128xf32>
    %58 = tpu.matmul %56, %57, %cst_36 {dimension_numbers = #tpu.dot_dimension_numbers<[1], [0], [0], [1], [0, 0, 1, 1], [], []>} : vector<64x32xf32>, vector<32x128xf32>, vector<64x128xf32> -> vector<64x128xf32>
    %59 = arith.addf %41, %58 : vector<64x128xf32>
    %60 = vector.extract_strided_slice %12 {offsets = [0, 64], sizes = [64, 32], strides = [1, 1]} : vector<64x128xf32> to vector<64x32xf32>
    %61 = vector.extract_strided_slice %17 {offsets = [0, 64], sizes = [128, 32], strides = [1, 1]} : vector<128x128xf32> to vector<128x32xf32>
    %62 = vector.extract_strided_slice %22 {offsets = [0, 64], sizes = [128, 32], strides = [1, 1]} : vector<128x128xf32> to vector<128x32xf32>
    %cst_37 = arith.constant dense<0.000000e+00> : vector<64x128xf32>
    %63 = tpu.matmul %60, %61, %cst_37 {dimension_numbers = #tpu.dot_dimension_numbers<[1], [1], [0], [0], [0, 0, 1, 0], [], []>} : vector<64x32xf32>, vector<128x32xf32>, vector<64x128xf32> -> vector<64x128xf32>
    %cst_38 = arith.constant dense<0xFF800000> : vector<64xf32>
    %64 = vector.multi_reduction <maximumf>, %63, %cst_38 [1] : vector<64x128xf32> to vector<64xf32>
    %65 = vector.shape_cast %64 : vector<64xf32> to vector<64x1xf32>
    %66 = vector.broadcast %65 : vector<64x1xf32> to vector<64x128xf32>
    %67 = arith.subf %63, %66 : vector<64x128xf32>
    %68 = math.exp %67 : vector<64x128xf32>
    %cst_39 = arith.constant dense<0.000000e+00> : vector<64xf32>
    %69 = vector.multi_reduction <add>, %68, %cst_39 [1] : vector<64x128xf32> to vector<64xf32>
    %70 = vector.shape_cast %69 : vector<64xf32> to vector<64x1xf32>
    %71 = tpu.reciprocal %70 {approx = true} : vector<64x1xf32> -> vector<64x1xf32>
    %72 = vector.broadcast %71 : vector<64x1xf32> to vector<64x128xf32>
    %73 = arith.mulf %68, %72 : vector<64x128xf32>
    %cst_40 = arith.constant dense<0.000000e+00> : vector<64x32xf32>
    %74 = tpu.matmul %73, %62, %cst_40 {dimension_numbers = #tpu.dot_dimension_numbers<[1], [0], [0], [1], [0, 0, 1, 1], [], []>} : vector<64x128xf32>, vector<128x32xf32>, vector<64x32xf32> -> vector<64x32xf32>
    %c64 = arith.constant 64 : index
    %c0_41 = arith.constant 0 : index
    %75 = vector.load %arg11[%c64, %c0_41] : memref<128x128xf32, #tpu.memory_space<vmem>>, vector<32x128xf32>
    %cst_42 = arith.constant dense<0.000000e+00> : vector<64x128xf32>
    %76 = tpu.matmul %74, %75, %cst_42 {dimension_numbers = #tpu.dot_dimension_numbers<[1], [0], [0], [1], [0, 0, 1, 1], [], []>} : vector<64x32xf32>, vector<32x128xf32>, vector<64x128xf32> -> vector<64x128xf32>
    %77 = arith.addf %59, %76 : vector<64x128xf32>
    %78 = vector.extract_strided_slice %12 {offsets = [0, 96], sizes = [64, 32], strides = [1, 1]} : vector<64x128xf32> to vector<64x32xf32>
    %79 = vector.extract_strided_slice %17 {offsets = [0, 96], sizes = [128, 32], strides = [1, 1]} : vector<128x128xf32> to vector<128x32xf32>
    %80 = vector.extract_strided_slice %22 {offsets = [0, 96], sizes = [128, 32], strides = [1, 1]} : vector<128x128xf32> to vector<128x32xf32>
    %cst_43 = arith.constant dense<0.000000e+00> : vector<64x128xf32>
    %81 = tpu.matmul %78, %79, %cst_43 {dimension_numbers = #tpu.dot_dimension_numbers<[1], [1], [0], [0], [0, 0, 1, 0], [], []>} : vector<64x32xf32>, vector<128x32xf32>, vector<64x128xf32> -> vector<64x128xf32>
    %cst_44 = arith.constant dense<0xFF800000> : vector<64xf32>
    %82 = vector.multi_reduction <maximumf>, %81, %cst_44 [1] : vector<64x128xf32> to vector<64xf32>
    %83 = vector.shape_cast %82 : vector<64xf32> to vector<64x1xf32>
    %84 = vector.broadcast %83 : vector<64x1xf32> to vector<64x128xf32>
    %85 = arith.subf %81, %84 : vector<64x128xf32>
    %86 = math.exp %85 : vector<64x128xf32>
    %cst_45 = arith.constant dense<0.000000e+00> : vector<64xf32>
    %87 = vector.multi_reduction <add>, %86, %cst_45 [1] : vector<64x128xf32> to vector<64xf32>
    %88 = vector.shape_cast %87 : vector<64xf32> to vector<64x1xf32>
    %89 = tpu.reciprocal %88 {approx = true} : vector<64x1xf32> -> vector<64x1xf32>
    %90 = vector.broadcast %89 : vector<64x1xf32> to vector<64x128xf32>
    %91 = arith.mulf %86, %90 : vector<64x128xf32>
    %cst_46 = arith.constant dense<0.000000e+00> : vector<64x32xf32>
    %92 = tpu.matmul %91, %80, %cst_46 {dimension_numbers = #tpu.dot_dimension_numbers<[1], [0], [0], [1], [0, 0, 1, 1], [], []>} : vector<64x128xf32>, vector<128x32xf32>, vector<64x32xf32> -> vector<64x32xf32>
    %c96 = arith.constant 96 : index
    %c0_47 = arith.constant 0 : index
    %93 = vector.load %arg11[%c96, %c0_47] : memref<128x128xf32, #tpu.memory_space<vmem>>, vector<32x128xf32>
    %cst_48 = arith.constant dense<0.000000e+00> : vector<64x128xf32>
    %94 = tpu.matmul %92, %93, %cst_48 {dimension_numbers = #tpu.dot_dimension_numbers<[1], [0], [0], [1], [0, 0, 1, 1], [], []>} : vector<64x32xf32>, vector<32x128xf32>, vector<64x128xf32> -> vector<64x128xf32>
    %95 = arith.addf %77, %94 : vector<64x128xf32>
    %c0_49 = arith.constant 0 : index
    %c0_50 = arith.constant 0 : index
    %96 = vector.load %arg12[%c0_49, %c0_50] : memref<1x128xf32, #tpu.memory_space<vmem>>, vector<1x128xf32>
    %97 = vector.broadcast %96 : vector<1x128xf32> to vector<64x128xf32>
    %98 = arith.addf %95, %97 : vector<64x128xf32>
    %c0_51 = arith.constant 0 : index
    %c0_52 = arith.constant 0 : index
    %c0_53 = arith.constant 0 : index
    %99 = vector.load %arg13[%c0_51, %c0_52, %c0_53] : memref<1x64x128xf32, #tpu.memory_space<vmem>>, vector<1x64x128xf32>
    %100 = vector.shape_cast %99 : vector<1x64x128xf32> to vector<64x128xf32>
    %101 = vector.shape_cast %98 : vector<64x128xf32> to vector<1x64x128xf32>
    tpu.vector_store %arg13[%c0_51, %c0_52, %c0_53], %101 {strides = array<i32>} : memref<1x64x128xf32, #tpu.memory_space<vmem>>, vector<1x64x128xf32>,
    return
  }
  func.func @transform_0(%arg0: i32, %arg1: i32) -> (i32, i32, i32) {
    %c0_i32 = arith.constant 0 : i32
    %c0_i32_0 = arith.constant 0 : i32
    return %arg0, %arg1, %c0_i32 : i32, i32, i32
  }
  func.func @transform_1(%arg0: i32, %arg1: i32) -> (i32, i32, i32) {
    %c0_i32 = arith.constant 0 : i32
    %c0_i32_0 = arith.constant 0 : i32
    %c0_i32_1 = arith.constant 0 : i32
    return %arg0, %c0_i32, %c0_i32_0 : i32, i32, i32
  }
  func.func @transform_2(%arg0: i32, %arg1: i32) -> (i32, i32, i32) {
    %c0_i32 = arith.constant 0 : i32
    %c0_i32_0 = arith.constant 0 : i32
    %c0_i32_1 = arith.constant 0 : i32
    return %arg0, %c0_i32, %c0_i32_0 : i32, i32, i32
  }
  func.func @transform_3(%arg0: i32, %arg1: i32) -> (i32, i32) {
    %c0_i32 = arith.constant 0 : i32
    %c0_i32_0 = arith.constant 0 : i32
    %c0_i32_1 = arith.constant 0 : i32
    return %c0_i32, %c0_i32_0 : i32, i32
  }
  func.func @transform_4(%arg0: i32, %arg1: i32) -> (i32, i32) {
    %c0_i32 = arith.constant 0 : i32
    %c0_i32_0 = arith.constant 0 : i32
    %c0_i32_1 = arith.constant 0 : i32
    return %c0_i32, %c0_i32_0 : i32, i32
  }
  func.func @transform_5(%arg0: i32, %arg1: i32) -> (i32, i32) {
    %c0_i32 = arith.constant 0 : i32
    %c0_i32_0 = arith.constant 0 : i32
    %c0_i32_1 = arith.constant 0 : i32
    return %c0_i32, %c0_i32_0 : i32, i32
  }
  func.func @transform_6(%arg0: i32, %arg1: i32) -> (i32, i32) {
    %c0_i32 = arith.constant 0 : i32
    %c0_i32_0 = arith.constant 0 : i32
    %c0_i32_1 = arith.constant 0 : i32
    return %c0_i32, %c0_i32_0 : i32, i32
  }
  func.func @transform_7(%arg0: i32, %arg1: i32) -> (i32, i32) {
    %c0_i32 = arith.constant 0 : i32
    %c0_i32_0 = arith.constant 0 : i32
    %c0_i32_1 = arith.constant 0 : i32
    return %c0_i32, %c0_i32_0 : i32, i32
  }
  func.func @transform_8(%arg0: i32, %arg1: i32) -> (i32, i32) {
    %c0_i32 = arith.constant 0 : i32
    %c0_i32_0 = arith.constant 0 : i32
    %c0_i32_1 = arith.constant 0 : i32
    return %c0_i32, %c0_i32_0 : i32, i32
  }
  func.func @transform_9(%arg0: i32, %arg1: i32) -> (i32, i32) {
    %c0_i32 = arith.constant 0 : i32
    %c0_i32_0 = arith.constant 0 : i32
    %c0_i32_1 = arith.constant 0 : i32
    return %c0_i32, %c0_i32_0 : i32, i32
  }
  func.func @transform_10(%arg0: i32, %arg1: i32) -> (i32, i32) {
    %c0_i32 = arith.constant 0 : i32
    %c0_i32_0 = arith.constant 0 : i32
    %c0_i32_1 = arith.constant 0 : i32
    return %c0_i32, %c0_i32_0 : i32, i32
  }
  func.func @transform_11(%arg0: i32, %arg1: i32) -> (i32, i32, i32) {
    %c0_i32 = arith.constant 0 : i32
    %c0_i32_0 = arith.constant 0 : i32
    return %arg0, %arg1, %c0_i32 : i32, i32, i32
  }
}

</mosaic_0001>

<llo_original>
// kernel: tpu_custom_call.1
$region0: #{tpu_custom_call.1}
  #allocation0 [shape = 'u32[]', space=smem, size = 0x4, offset = 0x4, fixed_abs, tag = 'smem constant byte address 0x4 - core index']
  #allocation1 [shape = 'u32[144,128]{1,0:T(1,128)}', space=vmem, size = 0x12000, scoped, tag = 'internal scratch']
  %s0 = inlined_call_operand.hbm [shape: f32[2,128,128], index: 0, kind: input, shape index: {}]
  %s1 = inlined_call_operand.hbm [shape: f32[2,128,128], index: 1, kind: input, shape index: {}]
  %s2 = inlined_call_operand.hbm [shape: f32[2,128,128], index: 2, kind: input, shape index: {}]
  %s3 = inlined_call_operand.hbm [shape: f32[128,128], index: 3, kind: input, shape index: {}]
  %s4 = inlined_call_operand.hbm [shape: f32[1,128], index: 4, kind: input, shape index: {}]
  %s5 = inlined_call_operand.hbm [shape: f32[128,128], index: 5, kind: input, shape index: {}]
  %s6 = inlined_call_operand.hbm [shape: f32[1,128], index: 6, kind: input, shape index: {}]
  %s7 = inlined_call_operand.hbm [shape: f32[128,128], index: 7, kind: input, shape index: {}]
  %s8 = inlined_call_operand.hbm [shape: f32[1,128], index: 8, kind: input, shape index: {}]
  %s9 = inlined_call_operand.hbm [shape: f32[128,128], index: 9, kind: input, shape index: {}]
  %s10 = inlined_call_operand.hbm [shape: f32[1,128], index: 10, kind: input, shape index: {}]
  %s11 = inlined_call_operand.hbm [shape: f32[2,128,128], index: 11, kind: output, shape index: {}]
  %s12 = sld [smem:[#allocation0]]
  $region121: #{tpu_custom_call.1} parent=0
    _
  %s14 = ssub.s32 1, %s12
  %s15 = scalar_select 0, %s14, %s12
  $region1: #{tpu_custom_call.1} parent=0
    #allocation2 [shape = 'u8[65536]{0}', space=vmem, size = 0x10000, scoped, tag = 'input window, operand 0']
    #allocation3 [shape = 's32[2]{0}', space=sflag, size = 0x8, scoped, tag = 'scoped memory for tpu_custom_call.1']
    #allocation4 [shape = 's32[2]{0}', space=sflag, size = 0x8, scoped, tag = 'scoped memory for tpu_custom_call.1']
    #allocation5 [shape = 'u8[131072]{0}', space=vmem, size = 0x20000, scoped, tag = 'input window, operand 1']
    #allocation6 [shape = 's32[2]{0}', space=sflag, size = 0x8, scoped, tag = 'scoped memory for tpu_custom_call.1']
    #allocation7 [shape = 'u8[131072]{0}', space=vmem, size = 0x20000, scoped, tag = 'input window, operand 2']
    #allocation8 [shape = 'u8[65536]{0}', space=vmem, size = 0x10000, scoped, tag = 'input window, operand 3, single buffered']
    #allocation9 [shape = 's32[1]{0}', space=sflag, size = 0x4, scoped, tag = 'scoped memory for tpu_custom_call.1']
    #allocation10 [shape = 'u8[512]{0}', space=vmem, size = 0x400, scoped, tag = 'input window, operand 4, single buffered']
    #allocation11 [shape = 'u8[65536]{0}', space=vmem, size = 0x10000, scoped, tag = 'input window, operand 5, single buffered']
    #allocation12 [shape = 's32[1]{0}', space=sflag, size = 0x4, scoped, tag = 'scoped memory for tpu_custom_call.1']
    #allocation13 [shape = 'u8[512]{0}', space=vmem, size = 0x400, scoped, tag = 'input window, operand 6, single buffered']
    #allocation14 [shape = 'u8[65536]{0}', space=vmem, size = 0x10000, scoped, tag = 'input window, operand 7, single buffered']
    #allocation15 [shape = 's32[1]{0}', space=sflag, size = 0x4, scoped, tag = 'scoped memory for tpu_custom_call.1']
    #allocation16 [shape = 'u8[512]{0}', space=vmem, size = 0x400, scoped, tag = 'input window, operand 8, single buffered']
    #allocation17 [shape = 'u8[65536]{0}', space=vmem, size = 0x10000, scoped, tag = 'input window, operand 9, single buffered']
    #allocation18 [shape = 's32[1]{0}', space=sflag, size = 0x4, scoped, tag = 'scoped memory for tpu_custom_call.1']
    #allocation19 [shape = 'u8[512]{0}', space=vmem, size = 0x400, scoped, tag = 'input window, operand 10, single buffered']
    #allocation20 [shape = 'u8[65536]{0}', space=vmem, size = 0x10000, scoped, tag = 'output window, operand 0']
    %16 = vsyncpa [#allocation3], 0
    %s17 = scalar_lea.sflag [#allocation3], 1
    %18 = vsyncpa %s17, 0
    %19 = vsyncpa [#allocation6], 0
    %s20 = scalar_lea.sflag [#allocation6], 1
    %21 = vsyncpa %s20, 0
    %22 = vsyncpa [#allocation9], 0
    %23 = vsyncpa [#allocation12], 0
    %24 = vsyncpa [#allocation15], 0
    %25 = vsyncpa [#allocation18], 0
    %26 = vsyncpa [#allocation4], 0
    %s27 = scalar_lea.sflag [#allocation4], 1
    %28 = vsyncpa %s27, 0
    loop: start=0, step=1, limit=6
    $region2: #{tpu_custom_call.1} parent=1 // loop_pre_header
      _
    $region3: #{tpu_custom_call.1} parent=1 // loop_header
      %s30 = sphi 0, %s34
      %p31 = scmp.ge.s32.totalorder %s30, 6
      %s37 = sphi 0, %s49
      %s38 = sphi 0, %s45
      %s39 = sphi 0, %s37
      %s40 = sphi 0, %s38
      %s41 = sphi 0, %s39
      %s42 = sphi 0, %s40
      %s54 = sphi 0, %s56
      %s57 = sphi 0, %s54
      %s58 = sphi 0, %s57
      %s74 = sphi 0, %s58
      %s80 = sphi 0, %s82
      %s83 = sphi 0, %s80
      %s84 = sphi 0, %s83
      %s100 = sphi 0, %s84
      %s106 = sphi 0, %s108
      %s109 = sphi 0, %s106
      %s110 = sphi 0, %s109
      %s126 = sphi 0, %s110
      %s130 = sphi 0, %s130
      %s132 = sphi 0, %s130
      %s133 = sphi 0, %s132
      %s147 = sphi 0, %s133
      %s151 = sphi 0, %s151
      %s153 = sphi 0, %s151
      %s154 = sphi 0, %s153
      %s168 = sphi 0, %s154
      %s172 = sphi 0, %s172
      %s174 = sphi 0, %s172
      %s175 = sphi 0, %s174
      %s189 = sphi 0, %s175
      %s193 = sphi 0, %s193
      %s195 = sphi 0, %s193
      %s196 = sphi 0, %s195
      %s210 = sphi 0, %s196
      %s214 = sphi 0, %s214
      %s216 = sphi 0, %s214
      %s217 = sphi 0, %s216
      %s231 = sphi 0, %s217
      %s235 = sphi 0, %s235
      %s237 = sphi 0, %s235
      %s238 = sphi 0, %s237
      %s252 = sphi 0, %s238
      %s256 = sphi 0, %s256
      %s258 = sphi 0, %s256
      %s259 = sphi 0, %s258
      %s273 = sphi 0, %s259
      %s277 = sphi 0, %s277
      %s279 = sphi 0, %s277
      %s280 = sphi 0, %s279
      %s294 = sphi 0, %s280
      %s302 = sphi 0, %s304
      %s305 = sphi 0, %s302
      %s306 = sphi 0, %s305
      %s322 = sphi 0, %s306
    $region4: #{tpu_custom_call.1} parent=1 // loop_header_branch
      %33 = sbr.rel (%p31) target = $region8
    $region5: #{tpu_custom_call.1} parent=1 // loop_body
      %s35 = ssub.s32 %s30, 1
      %s36 = ssub.s32 %s30, 2
      %s43 = sadd.s32 1, %s38
      %p44 = scmp.ge.s32.totalorder %s43, 2
      %s45 = scalar_select %p44, 0, %s43
      %s46 = sadd.s32 1, %s37
      %s47 = scalar_select %p44, %s46, %s37
      %p48 = scmp.ge.s32.totalorder %s47, 2
      %s49 = scalar_select %p48, 0, %s47
      %s50 = ssub.s32 %s37, %s49
      %s51 = ssub.s32 %s38, %s45
      %s52 = sor.u32 %s50, %s51
      %p53 = scmp.eq.s32.totalorder %s52, 0
      %s55 = sadd.s32 %s54, 1
      %s56 = scalar_select %p53, %s54, %s55
      %p59 = pneg %p53
      %p60 = scmp.eq.s32.totalorder %s30, 3
      %p61 = por %p59, %p60
      %p62 = scmp.ne.s32.totalorder %s54, %s57
      %p63 = scmp.eq.s32.totalorder %s30, 0
      %p64 = por %p62, %p63
      %p65 = scmp.ne.s32.totalorder %s54, %s57
      %p66 = scmp.eq.s32.totalorder %s35, 3
      %p67 = por %p65, %p66
      %p68 = scmp.ne.s32.totalorder %s57, %s58
      %p69 = scmp.eq.s32.totalorder %s35, 0
      %p70 = por %p68, %p69
      %p71 = scmp.ne.s32.totalorder %s57, %s58
      %p72 = scmp.eq.s32.totalorder %s36, 3
      %p73 = por %p71, %p72
      %p75 = scmp.ne.s32.totalorder %s58, %s74
      %p76 = scmp.eq.s32.totalorder %s36, 0
      %p77 = por %p75, %p76
      %s78 = ssub.s32 %s37, %s49
      %p79 = scmp.eq.s32.totalorder %s78, 0
      %s81 = sadd.s32 %s80, 1
      %s82 = scalar_select %p79, %s80, %s81
      %p85 = pneg %p79
      %p86 = scmp.eq.s32.totalorder %s30, 3
      %p87 = por %p85, %p86
      %p88 = scmp.ne.s32.totalorder %s80, %s83
      %p89 = scmp.eq.s32.totalorder %s30, 0
      %p90 = por %p88, %p89
      %p91 = scmp.ne.s32.totalorder %s80, %s83
      %p92 = scmp.eq.s32.totalorder %s35, 3
      %p93 = por %p91, %p92
      %p94 = scmp.ne.s32.totalorder %s83, %s84
      %p95 = scmp.eq.s32.totalorder %s35, 0
      %p96 = por %p94, %p95
      %p97 = scmp.ne.s32.totalorder %s83, %s84
      %p98 = scmp.eq.s32.totalorder %s36, 3
      %p99 = por %p97, %p98
      %p101 = scmp.ne.s32.totalorder %s84, %s100
      %p102 = scmp.eq.s32.totalorder %s36, 0
      %p103 = por %p101, %p102
      %s104 = ssub.s32 %s37, %s49
      %p105 = scmp.eq.s32.totalorder %s104, 0
      %s107 = sadd.s32 %s106, 1
      %s108 = scalar_select %p105, %s106, %s107
      %p111 = pneg %p105
      %p112 = scmp.eq.s32.totalorder %s30, 3
      %p113 = por %p111, %p112
      %p114 = scmp.ne.s32.totalorder %s106, %s109
      %p115 = scmp.eq.s32.totalorder %s30, 0
      %p116 = por %p114, %p115
      %p117 = scmp.ne.s32.totalorder %s106, %s109
      %p118 = scmp.eq.s32.totalorder %s35, 3
      %p119 = por %p117, %p118
      %p120 = scmp.ne.s32.totalorder %s109, %s110
      %p121 = scmp.eq.s32.totalorder %s35, 0
      %p122 = por %p120, %p121
      %p123 = scmp.ne.s32.totalorder %s109, %s110
      %p124 = scmp.eq.s32.totalorder %s36, 3
      %p125 = por %p123, %p124
      %p127 = scmp.ne.s32.totalorder %s110, %s126
      %p128 = scmp.eq.s32.totalorder %s36, 0
      %p129 = por %p127, %p128
      %s131 = sadd.s32 %s130, 1
      %p134 = scmp.eq.s32.totalorder %s30, 3
      %p135 = scmp.ne.s32.totalorder %s130, %s132
      %p136 = scmp.eq.s32.totalorder %s30, 0
      %p137 = por %p135, %p136
      %p138 = scmp.ne.s32.totalorder %s130, %s132
      %p139 = scmp.eq.s32.totalorder %s35, 3
      %p140 = por %p138, %p139
      %p141 = scmp.ne.s32.totalorder %s132, %s133
      %p142 = scmp.eq.s32.totalorder %s35, 0
      %p143 = por %p141, %p142
      %p144 = scmp.ne.s32.totalorder %s132, %s133
      %p145 = scmp.eq.s32.totalorder %s36, 3
      %p146 = por %p144, %p145
      %p148 = scmp.ne.s32.totalorder %s133, %s147
      %p149 = scmp.eq.s32.totalorder %s36, 0
      %p150 = por %p148, %p149
      %s152 = sadd.s32 %s151, 1
      %p155 = scmp.eq.s32.totalorder %s30, 3
      %p156 = scmp.ne.s32.totalorder %s151, %s153
      %p157 = scmp.eq.s32.totalorder %s30, 0
      %p158 = por %p156, %p157
      %p159 = scmp.ne.s32.totalorder %s151, %s153
      %p160 = scmp.eq.s32.totalorder %s35, 3
      %p161 = por %p159, %p160
      %p162 = scmp.ne.s32.totalorder %s153, %s154
      %p163 = scmp.eq.s32.totalorder %s35, 0
      %p164 = por %p162, %p163
      %p165 = scmp.ne.s32.totalorder %s153, %s154
      %p166 = scmp.eq.s32.totalorder %s36, 3
      %p167 = por %p165, %p166
      %p169 = scmp.ne.s32.totalorder %s154, %s168
      %p170 = scmp.eq.s32.totalorder %s36, 0
      %p171 = por %p169, %p170
      %s173 = sadd.s32 %s172, 1
      %p176 = scmp.eq.s32.totalorder %s30, 3
      %p177 = scmp.ne.s32.totalorder %s172, %s174
      %p178 = scmp.eq.s32.totalorder %s30, 0
      %p179 = por %p177, %p178
      %p180 = scmp.ne.s32.totalorder %s172, %s174
      %p181 = scmp.eq.s32.totalorder %s35, 3
      %p182 = por %p180, %p181
      %p183 = scmp.ne.s32.totalorder %s174, %s175
      %p184 = scmp.eq.s32.totalorder %s35, 0
      %p185 = por %p183, %p184
      %p186 = scmp.ne.s32.totalorder %s174, %s175
      %p187 = scmp.eq.s32.totalorder %s36, 3
      %p188 = por %p186, %p187
      %p190 = scmp.ne.s32.totalorder %s175, %s189
      %p191 = scmp.eq.s32.totalorder %s36, 0
      %p192 = por %p190, %p191
      %s194 = sadd.s32 %s193, 1
      %p197 = scmp.eq.s32.totalorder %s30, 3
      %p198 = scmp.ne.s32.totalorder %s193, %s195
      %p199 = scmp.eq.s32.totalorder %s30, 0
      %p200 = por %p198, %p199
      %p201 = scmp.ne.s32.totalorder %s193, %s195
      %p202 = scmp.eq.s32.totalorder %s35, 3
      %p203 = por %p201, %p202
      %p204 = scmp.ne.s32.totalorder %s195, %s196
      %p205 = scmp.eq.s32.totalorder %s35, 0
      %p206 = por %p204, %p205
      %p207 = scmp.ne.s32.totalorder %s195, %s196
      %p208 = scmp.eq.s32.totalorder %s36, 3
      %p209 = por %p207, %p208
      %p211 = scmp.ne.s32.totalorder %s196, %s210
      %p212 = scmp.eq.s32.totalorder %s36, 0
      %p213 = por %p211, %p212
      %s215 = sadd.s32 %s214, 1
      %p218 = scmp.eq.s32.totalorder %s30, 3
      %p219 = scmp.ne.s32.totalorder %s214, %s216
      %p220 = scmp.eq.s32.totalorder %s30, 0
      %p221 = por %p219, %p220
      %p222 = scmp.ne.s32.totalorder %s214, %s216
      %p223 = scmp.eq.s32.totalorder %s35, 3
      %p224 = por %p222, %p223
      %p225 = scmp.ne.s32.totalorder %s216, %s217
      %p226 = scmp.eq.s32.totalorder %s35, 0
      %p227 = por %p225, %p226
      %p228 = scmp.ne.s32.totalorder %s216, %s217
      %p229 = scmp.eq.s32.totalorder %s36, 3
      %p230 = por %p228, %p229
      %p232 = scmp.ne.s32.totalorder %s217, %s231
      %p233 = scmp.eq.s32.totalorder %s36, 0
      %p234 = por %p232, %p233
      %s236 = sadd.s32 %s235, 1
      %p239 = scmp.eq.s32.totalorder %s30, 3
      %p240 = scmp.ne.s32.totalorder %s235, %s237
      %p241 = scmp.eq.s32.totalorder %s30, 0
      %p242 = por %p240, %p241
      %p243 = scmp.ne.s32.totalorder %s235, %s237
      %p244 = scmp.eq.s32.totalorder %s35, 3
      %p245 = por %p243, %p244
      %p246 = scmp.ne.s32.totalorder %s237, %s238
      %p247 = scmp.eq.s32.totalorder %s35, 0
      %p248 = por %p246, %p247
      %p249 = scmp.ne.s32.totalorder %s237, %s238
      %p250 = scmp.eq.s32.totalorder %s36, 3
      %p251 = por %p249, %p250
      %p253 = scmp.ne.s32.totalorder %s238, %s252
      %p254 = scmp.eq.s32.totalorder %s36, 0
      %p255 = por %p253, %p254
      %s257 = sadd.s32 %s256, 1
      %p260 = scmp.eq.s32.totalorder %s30, 3
      %p261 = scmp.ne.s32.totalorder %s256, %s258
      %p262 = scmp.eq.s32.totalorder %s30, 0
      %p263 = por %p261, %p262
      %p264 = scmp.ne.s32.totalorder %s256, %s258
      %p265 = scmp.eq.s32.totalorder %s35, 3
      %p266 = por %p264, %p265
      %p267 = scmp.ne.s32.totalorder %s258, %s259
      %p268 = scmp.eq.s32.totalorder %s35, 0
      %p269 = por %p267, %p268
      %p270 = scmp.ne.s32.totalorder %s258, %s259
      %p271 = scmp.eq.s32.totalorder %s36, 3
      %p272 = por %p270, %p271
      %p274 = scmp.ne.s32.totalorder %s259, %s273
      %p275 = scmp.eq.s32.totalorder %s36, 0
      %p276 = por %p274, %p275
      %s278 = sadd.s32 %s277, 1
      %p281 = scmp.eq.s32.totalorder %s30, 3
      %p282 = scmp.ne.s32.totalorder %s277, %s279
      %p283 = scmp.eq.s32.totalorder %s30, 0
      %p284 = por %p282, %p283
      %p285 = scmp.ne.s32.totalorder %s277, %s279
      %p286 = scmp.eq.s32.totalorder %s35, 3
      %p287 = por %p285, %p286
      %p288 = scmp.ne.s32.totalorder %s279, %s280
      %p289 = scmp.eq.s32.totalorder %s35, 0
      %p290 = por %p288, %p289
      %p291 = scmp.ne.s32.totalorder %s279, %s280
      %p292 = scmp.eq.s32.totalorder %s36, 3
      %p293 = por %p291, %p292
      %p295 = scmp.ne.s32.totalorder %s280, %s294
      %p296 = scmp.eq.s32.totalorder %s36, 0
      %p297 = por %p295, %p296
      %s298 = ssub.s32 %s37, %s49
      %s299 = ssub.s32 %s38, %s45
      %s300 = sor.u32 %s298, %s299
      %p301 = scmp.eq.s32.totalorder %s300, 0
      %s303 = sadd.s32 %s302, 1
      %s304 = scalar_select %p301, %s302, %s303
      %p307 = pneg %p301
      %p308 = scmp.eq.s32.totalorder %s30, 3
      %p309 = por %p307, %p308
      %p310 = scmp.ne.s32.totalorder %s302, %s305
      %p311 = scmp.eq.s32.totalorder %s30, 0
      %p312 = por %p310, %p311
      %p313 = scmp.ne.s32.totalorder %s302, %s305
      %p314 = scmp.eq.s32.totalorder %s35, 3
      %p315 = por %p313, %p314
      %p316 = scmp.ne.s32.totalorder %s305, %s306
      %p317 = scmp.eq.s32.totalorder %s35, 0
      %p318 = por %p316, %p317
      %p319 = scmp.ne.s32.totalorder %s305, %s306
      %p320 = scmp.eq.s32.totalorder %s36, 3
      %p321 = por %p319, %p320
      %p323 = scmp.ne.s32.totalorder %s306, %s322
      %p324 = scmp.eq.s32.totalorder %s36, 0
      %p325 = por %p323, %p324
      %p326 = scmp.le.s32.totalorder 1, %s30
      %p327 = scmp.lt.s32.totalorder %s30, 5
      %p328 = pnand %p326, %p327
      %p329 = pneg %p328
      // Predicated region
      $region9: #{tpu_custom_call.1} parent=5 // pred_check
        _
      $region10: #{tpu_custom_call.1} parent=5 // pred_check_branch
        %331 = sbr.rel (%p328) target = $region12
      $region11: #{tpu_custom_call.1} parent=5 // pred_region
        %s332 = ssub.s32 %s30, 1
        // Predicated region
        $region13: #{tpu_custom_call.1} parent=11 // pred_check
          %p333 = pneg %p143
        $region14: #{tpu_custom_call.1} parent=11 // pred_check_branch
          %335 = sbr.rel (%p333) target = $region16
        $region15: #{tpu_custom_call.1} parent=11 // pred_region
          %s337 = ssub.s32 2048, 2048
          %338 = vsyncadd [#allocation9], %s337
          %s339 = sshll.u32 [#allocation8], 4
          %s340 = int_to_ptr.vmem [resolvable:$true] %s339
          %345 = dma.hbm_to_vmem [thread:$0]  %s3, 2048, %s340, [#allocation9], 128, 128, 8
        $region16: #{tpu_custom_call.1} parent=11 // pred_fallthru
          _
        // Predicated region
        $region17: #{tpu_custom_call.1} parent=11 // pred_check
          %p346 = pneg %p164
        $region18: #{tpu_custom_call.1} parent=11 // pred_check_branch
          %348 = sbr.rel (%p346) target = $region20
        $region19: #{tpu_custom_call.1} parent=11 // pred_region
          %s350 = ssub.s32 16, 16
          %351 = vsyncadd [#allocation9], %s350
          %s353 = sshll.u32 [#allocation10], 4
          %s354 = int_to_ptr.vmem [resolvable:$true] %s353
          %356 = dma.hbm_to_vmem [thread:$0]  %s4, 16, %s354, [#allocation9]
        $region20: #{tpu_custom_call.1} parent=11 // pred_fallthru
          _
        // Predicated region
        $region21: #{tpu_custom_call.1} parent=11 // pred_check
          %p357 = pneg %p185
        $region22: #{tpu_custom_call.1} parent=11 // pred_check_branch
          %359 = sbr.rel (%p357) target = $region24
        $region23: #{tpu_custom_call.1} parent=11 // pred_region
          %s361 = ssub.s32 2048, 2048
          %362 = vsyncadd [#allocation12], %s361
          %s363 = sshll.u32 [#allocation11], 4
          %s364 = int_to_ptr.vmem [resolvable:$true] %s363
          %369 = dma.hbm_to_vmem [thread:$0]  %s5, 2048, %s364, [#allocation12], 128, 128, 8
        $region24: #{tpu_custom_call.1} parent=11 // pred_fallthru
          _
        // Predicated region
        $region25: #{tpu_custom_call.1} parent=11 // pred_check
          %p370 = pneg %p206
        $region26: #{tpu_custom_call.1} parent=11 // pred_check_branch
          %372 = sbr.rel (%p370) target = $region28
        $region27: #{tpu_custom_call.1} parent=11 // pred_region
          %s374 = ssub.s32 16, 16
          %375 = vsyncadd [#allocation12], %s374
          %s377 = sshll.u32 [#allocation13], 4
          %s378 = int_to_ptr.vmem [resolvable:$true] %s377
          %380 = dma.hbm_to_vmem [thread:$0]  %s6, 16, %s378, [#allocation12]
        $region28: #{tpu_custom_call.1} parent=11 // pred_fallthru
          _
        // Predicated region
        $region29: #{tpu_custom_call.1} parent=11 // pred_check
          %p381 = pneg %p227
        $region30: #{tpu_custom_call.1} parent=11 // pred_check_branch
          %383 = sbr.rel (%p381) target = $region32
        $region31: #{tpu_custom_call.1} parent=11 // pred_region
          %s385 = ssub.s32 2048, 2048
          %386 = vsyncadd [#allocation15], %s385
          %s387 = sshll.u32 [#allocation14], 4
          %s388 = int_to_ptr.vmem [resolvable:$true] %s387
          %393 = dma.hbm_to_vmem [thread:$0]  %s7, 2048, %s388, [#allocation15], 128, 128, 8
        $region32: #{tpu_custom_call.1} parent=11 // pred_fallthru
          _
        // Predicated region
        $region33: #{tpu_custom_call.1} parent=11 // pred_check
          %p394 = pneg %p248
        $region34: #{tpu_custom_call.1} parent=11 // pred_check_branch
          %396 = sbr.rel (%p394) target = $region36
        $region35: #{tpu_custom_call.1} parent=11 // pred_region
          %s398 = ssub.s32 16, 16
          %399 = vsyncadd [#allocation15], %s398
          %s401 = sshll.u32 [#allocation16], 4
          %s402 = int_to_ptr.vmem [resolvable:$true] %s401
          %404 = dma.hbm_to_vmem [thread:$0]  %s8, 16, %s402, [#allocation15]
        $region36: #{tpu_custom_call.1} parent=11 // pred_fallthru
          _
        // Predicated region
        $region37: #{tpu_custom_call.1} parent=11 // pred_check
          %p405 = pneg %p269
        $region38: #{tpu_custom_call.1} parent=11 // pred_check_branch
          %407 = sbr.rel (%p405) target = $region40
        $region39: #{tpu_custom_call.1} parent=11 // pred_region
          %s409 = ssub.s32 2048, 2048
          %410 = vsyncadd [#allocation18], %s409
          %s411 = sshll.u32 [#allocation17], 4
          %s412 = int_to_ptr.vmem [resolvable:$true] %s411
          %417 = dma.hbm_to_vmem [thread:$0]  %s9, 2048, %s412, [#allocation18], 128, 128, 8
        $region40: #{tpu_custom_call.1} parent=11 // pred_fallthru
          _
        // Predicated region
        $region41: #{tpu_custom_call.1} parent=11 // pred_check
          %p418 = pneg %p290
        $region42: #{tpu_custom_call.1} parent=11 // pred_check_branch
          %420 = sbr.rel (%p418) target = $region44
        $region43: #{tpu_custom_call.1} parent=11 // pred_region
          %s422 = ssub.s32 16, 16
          %423 = vsyncadd [#allocation18], %s422
          %s425 = sshll.u32 [#allocation19], 4
          %s426 = int_to_ptr.vmem [resolvable:$true] %s425
          %428 = dma.hbm_to_vmem [thread:$0]  %s10, 16, %s426, [#allocation18]
        $region44: #{tpu_custom_call.1} parent=11 // pred_fallthru
          _
      $region12: #{tpu_custom_call.1} parent=5 // pred_fallthru
        _
      %p429 = scmp.lt.s32.totalorder %s30, 4
      // Predicated region
      $region45: #{tpu_custom_call.1} parent=5 // pred_check
        %p430 = pneg %p429
      $region46: #{tpu_custom_call.1} parent=5 // pred_check_branch
        %432 = sbr.rel (%p430) target = $region48
      $region47: #{tpu_custom_call.1} parent=5 // pred_region
        // Predicated region
        $region49: #{tpu_custom_call.1} parent=47 // pred_check
          %p433 = pneg %p64
        $region50: #{tpu_custom_call.1} parent=47 // pred_check_branch
          %435 = sbr.rel (%p433) target = $region52
        $region51: #{tpu_custom_call.1} parent=47 // pred_region
          %s436 = sand.u32 %s54, 1
          %s437 = scalar_lea.sflag [#allocation3], %s436
          %s438 = sand.u32 %s54, 1
          %s439 = smul.addr %s438, 64
          %s440 = scalar_lea.vmem [#allocation2], %s439
          %s441 = smul.u32 8, %s38
          %s443 = ssub.s32 1024, 1024
          %444 = vsyncadd %s437, %s443
          %s445 = smul.addr %s37, 16
          %s446 = sadd.s32 %s441, %s445
          %s447 = smul.addr %s446, 128
          %s448 = scalar_lea.hbm %s0, %s447
          %s449 = sshll.u32 %s440, 4
          %s450 = int_to_ptr.vmem [resolvable:$true] %s449
          %455 = dma.hbm_to_vmem [thread:$0]  %s448, 1024, %s450, %s437, 128, 128, 8
        $region52: #{tpu_custom_call.1} parent=47 // pred_fallthru
          _
        // Predicated region
        $region53: #{tpu_custom_call.1} parent=47 // pred_check
          %p456 = pneg %p90
        $region54: #{tpu_custom_call.1} parent=47 // pred_check_branch
          %458 = sbr.rel (%p456) target = $region56
        $region55: #{tpu_custom_call.1} parent=47 // pred_region
          %s459 = sand.u32 %s30, 1
          %s460 = scalar_lea.sflag [#allocation6], %s459
          %s461 = sand.u32 %s80, 1
          %s462 = smul.addr %s461, 128
          %s463 = scalar_lea.vmem [#allocation5], %s462
          %s465 = ssub.s32 2048, 2048
          %466 = vsyncadd %s460, %s465
          %s467 = smul.addr %s37, 16
          %s468 = smul.addr %s467, 128
          %s469 = scalar_lea.hbm %s1, %s468
          %s470 = sshll.u32 %s463, 4
          %s471 = int_to_ptr.vmem [resolvable:$true] %s470
          %476 = dma.hbm_to_vmem [thread:$0]  %s469, 2048, %s471, %s460, 128, 128, 8
        $region56: #{tpu_custom_call.1} parent=47 // pred_fallthru
          _
        // Predicated region
        $region57: #{tpu_custom_call.1} parent=47 // pred_check
          %p477 = pneg %p116
        $region58: #{tpu_custom_call.1} parent=47 // pred_check_branch
          %479 = sbr.rel (%p477) target = $region60
        $region59: #{tpu_custom_call.1} parent=47 // pred_region
          %s480 = sand.u32 %s30, 1
          %s481 = scalar_lea.sflag [#allocation6], %s480
          %s482 = sand.u32 %s106, 1
          %s483 = smul.addr %s482, 128
          %s484 = scalar_lea.vmem [#allocation7], %s483
          %s486 = ssub.s32 2048, 2048
          %487 = vsyncadd %s481, %s486
          %s488 = smul.addr %s37, 16
          %s489 = smul.addr %s488, 128
          %s490 = scalar_lea.hbm %s2, %s489
          %s491 = sshll.u32 %s484, 4
          %s492 = int_to_ptr.vmem [resolvable:$true] %s491
          %497 = dma.hbm_to_vmem [thread:$0]  %s490, 2048, %s492, %s481, 128, 128, 8
        $region60: #{tpu_custom_call.1} parent=47 // pred_fallthru
          _
      $region48: #{tpu_custom_call.1} parent=5 // pred_fallthru
        _
      %p498 = scmp.le.s32.totalorder 1, %s30
      %p499 = scmp.lt.s32.totalorder %s30, 5
      %p500 = pnand %p498, %p499
      %p501 = pneg %p500
      // Predicated region
      $region61: #{tpu_custom_call.1} parent=5 // pred_check
        _
      $region62: #{tpu_custom_call.1} parent=5 // pred_check_branch
        %503 = sbr.rel (%p500) target = $region64
      $region63: #{tpu_custom_call.1} parent=5 // pred_region
        %s504 = ssub.s32 %s30, 1
        %s505 = sand.u32 %s57, 1
        %s506 = scalar_lea.sflag [#allocation3], %s505
        %s507 = sand.u32 %s57, 1
        %s508 = smul.addr %s507, 64
        %s509 = scalar_lea.vmem [#allocation2], %s508
        // Predicated region
        $region65: #{tpu_custom_call.1} parent=63 // pred_check
          %p510 = pneg %p70
        $region66: #{tpu_custom_call.1} parent=63 // pred_check_branch
          %512 = sbr.rel (%p510) target = $region68
        $region67: #{tpu_custom_call.1} parent=63 // pred_region
          %513 = dma.done %s506, 1024
        $region68: #{tpu_custom_call.1} parent=63 // pred_fallthru
          _
        %s514 = sand.u32 %s35, 1
        %s515 = scalar_lea.sflag [#allocation6], %s514
        %s516 = sand.u32 %s83, 1
        %s517 = smul.addr %s516, 128
        %s518 = scalar_lea.vmem [#allocation5], %s517
        // Predicated region
        $region69: #{tpu_custom_call.1} parent=63 // pred_check
          %p519 = pneg %p96
        $region70: #{tpu_custom_call.1} parent=63 // pred_check_branch
          %521 = sbr.rel (%p519) target = $region72
        $region71: #{tpu_custom_call.1} parent=63 // pred_region
          %522 = dma.done %s515, 2048
        $region72: #{tpu_custom_call.1} parent=63 // pred_fallthru
          _
        %s523 = sand.u32 %s35, 1
        %s524 = scalar_lea.sflag [#allocation6], %s523
        %s525 = sand.u32 %s109, 1
        %s526 = smul.addr %s525, 128
        %s527 = scalar_lea.vmem [#allocation7], %s526
        // Predicated region
        $region73: #{tpu_custom_call.1} parent=63 // pred_check
          %p528 = pneg %p122
        $region74: #{tpu_custom_call.1} parent=63 // pred_check_branch
          %530 = sbr.rel (%p528) target = $region76
        $region75: #{tpu_custom_call.1} parent=63 // pred_region
          %531 = dma.done %s524, 2048
        $region76: #{tpu_custom_call.1} parent=63 // pred_fallthru
          _
        // Predicated region
        $region77: #{tpu_custom_call.1} parent=63 // pred_check
          %p532 = pneg %p143
        $region78: #{tpu_custom_call.1} parent=63 // pred_check_branch
          %534 = sbr.rel (%p532) target = $region80
        $region79: #{tpu_custom_call.1} parent=63 // pred_region
          %535 = dma.done [#allocation9], 2048
        $region80: #{tpu_custom_call.1} parent=63 // pred_fallthru
          _
        // Predicated region
        $region81: #{tpu_custom_call.1} parent=63 // pred_check
          %p536 = pneg %p164
        $region82: #{tpu_custom_call.1} parent=63 // pred_check_branch
          %538 = sbr.rel (%p536) target = $region84
        $region83: #{tpu_custom_call.1} parent=63 // pred_region
          %539 = dma.done [#allocation9], 16
        $region84: #{tpu_custom_call.1} parent=63 // pred_fallthru
          _
        // Predicated region
        $region85: #{tpu_custom_call.1} parent=63 // pred_check
          %p540 = pneg %p185
        $region86: #{tpu_custom_call.1} parent=63 // pred_check_branch
          %542 = sbr.rel (%p540) target = $region88
        $region87: #{tpu_custom_call.1} parent=63 // pred_region
          %543 = dma.done [#allocation12], 2048
        $region88: #{tpu_custom_call.1} parent=63 // pred_fallthru
          _
        // Predicated region
        $region89: #{tpu_custom_call.1} parent=63 // pred_check
          %p544 = pneg %p206
        $region90: #{tpu_custom_call.1} parent=63 // pred_check_branch
          %546 = sbr.rel (%p544) target = $region92
        $region91: #{tpu_custom_call.1} parent=63 // pred_region
          %547 = dma.done [#allocation12], 16
        $region92: #{tpu_custom_call.1} parent=63 // pred_fallthru
          _
        // Predicated region
        $region93: #{tpu_custom_call.1} parent=63 // pred_check
          %p548 = pneg %p227
        $region94: #{tpu_custom_call.1} parent=63 // pred_check_branch
          %550 = sbr.rel (%p548) target = $region96
        $region95: #{tpu_custom_call.1} parent=63 // pred_region
          %551 = dma.done [#allocation15], 2048
        $region96: #{tpu_custom_call.1} parent=63 // pred_fallthru
          _
        // Predicated region
        $region97: #{tpu_custom_call.1} parent=63 // pred_check
          %p552 = pneg %p248
        $region98: #{tpu_custom_call.1} parent=63 // pred_check_branch
          %554 = sbr.rel (%p552) target = $region100
        $region99: #{tpu_custom_call.1} parent=63 // pred_region
          %555 = dma.done [#allocation15], 16
        $region100: #{tpu_custom_call.1} parent=63 // pred_fallthru
          _
        // Predicated region
        $region101: #{tpu_custom_call.1} parent=63 // pred_check
          %p556 = pneg %p269
        $region102: #{tpu_custom_call.1} parent=63 // pred_check_branch
          %558 = sbr.rel (%p556) target = $region104
        $region103: #{tpu_custom_call.1} parent=63 // pred_region
          %559 = dma.done [#allocation18], 2048
        $region104: #{tpu_custom_call.1} parent=63 // pred_fallthru
          _
        // Predicated region
        $region105: #{tpu_custom_call.1} parent=63 // pred_check
          %p560 = pneg %p290
        $region106: #{tpu_custom_call.1} parent=63 // pred_check_branch
          %562 = sbr.rel (%p560) target = $region108
        $region107: #{tpu_custom_call.1} parent=63 // pred_region
          %563 = dma.done [#allocation18], 16
        $region108: #{tpu_custom_call.1} parent=63 // pred_fallthru
          _
        %s564 = sand.u32 %s57, 1
        %s565 = scalar_lea.sflag [#allocation3], %s564
        %s566 = sand.u32 %s57, 1
        %s567 = smul.addr %s566, 64
        %s568 = scalar_lea.vmem [#allocation2], %s567
        %p569 = pneg %p70
        %p570 = pneg %p67
        %s571 = sand.u32 %s35, 1
        %s572 = scalar_lea.sflag [#allocation6], %s571
        %s573 = sand.u32 %s83, 1
        %s574 = smul.addr %s573, 128
        %s575 = scalar_lea.vmem [#allocation5], %s574
        %p576 = pneg %p96
        %p577 = pneg %p93
        %s578 = sand.u32 %s35, 1
        %s579 = scalar_lea.sflag [#allocation6], %s578
        %s580 = sand.u32 %s109, 1
        %s581 = smul.addr %s580, 128
        %s582 = scalar_lea.vmem [#allocation7], %s581
        %p583 = pneg %p122
        %p584 = pneg %p119
        %p585 = pneg %p143
        %p586 = pneg %p140
        %p587 = pneg %p164
        %p588 = pneg %p161
        %p589 = pneg %p185
        %p590 = pneg %p182
        %p591 = pneg %p206
        %p592 = pneg %p203
        %p593 = pneg %p227
        %p594 = pneg %p224
        %p595 = pneg %p248
        %p596 = pneg %p245
        %p597 = pneg %p269
        %p598 = pneg %p266
        %p599 = pneg %p290
        %p600 = pneg %p287
        %p601 = pneg %p318
        %p602 = pneg %p315
        %s603 = sand.u32 %s305, 1
        %s604 = scalar_lea.sflag [#allocation4], %s603
        %s605 = sand.u32 %s305, 1
        %s606 = smul.addr %s605, 64
        %s607 = scalar_lea.vmem [#allocation20], %s606
        %s608 = smul.u32 8, %s40
        %s609 = smul.u32 8, %s40
        %v610 = vld [vmem:[%s509] sm:$0xff]
        %v611 = vld [vmem:[%s509 + $0x8] sm:$0xff]
        %v612 = vld [vmem:[%s509 + $0x10] sm:$0xff]
        %v613 = vld [vmem:[%s509 + $0x18] sm:$0xff]
        %v614 = vld [vmem:[%s509 + $0x20] sm:$0xff]
        %v615 = vld [vmem:[%s509 + $0x28] sm:$0xff]
        %v616 = vld [vmem:[%s509 + $0x30] sm:$0xff]
        %v617 = vld [vmem:[%s509 + $0x38] sm:$0xff]
        %v618 = vld [vmem:[%s518] sm:$0xff]
        %v619 = vld [vmem:[%s518 + $0x8] sm:$0xff]
        %v620 = vld [vmem:[%s518 + $0x10] sm:$0xff]
        %v621 = vld [vmem:[%s518 + $0x18] sm:$0xff]
        %v622 = vld [vmem:[%s518 + $0x20] sm:$0xff]
        %v623 = vld [vmem:[%s518 + $0x28] sm:$0xff]
        %v624 = vld [vmem:[%s518 + $0x30] sm:$0xff]
        %v625 = vld [vmem:[%s518 + $0x38] sm:$0xff]
        %v626 = vld [vmem:[%s518 + $0x40] sm:$0xff]
        %v627 = vld [vmem:[%s518 + $0x48] sm:$0xff]
        %v628 = vld [vmem:[%s518 + $0x50] sm:$0xff]
        %v629 = vld [vmem:[%s518 + $0x58] sm:$0xff]
        %v630 = vld [vmem:[%s518 + $0x60] sm:$0xff]
        %v631 = vld [vmem:[%s518 + $0x68] sm:$0xff]
        %v632 = vld [vmem:[%s518 + $0x70] sm:$0xff]
        %v633 = vld [vmem:[%s518 + $0x78] sm:$0xff]
        %v634 = vld [vmem:[%s527] sm:$0xff]
        %v635 = vld [vmem:[%s527 + $0x8] sm:$0xff]
        %v636 = vld [vmem:[%s527 + $0x10] sm:$0xff]
        %v637 = vld [vmem:[%s527 + $0x18] sm:$0xff]
        %v638 = vld [vmem:[%s527 + $0x20] sm:$0xff]
        %v639 = vld [vmem:[%s527 + $0x28] sm:$0xff]
        %v640 = vld [vmem:[%s527 + $0x30] sm:$0xff]
        %v641 = vld [vmem:[%s527 + $0x38] sm:$0xff]
        %v642 = vld [vmem:[%s527 + $0x40] sm:$0xff]
        %v643 = vld [vmem:[%s527 + $0x48] sm:$0xff]
        %v644 = vld [vmem:[%s527 + $0x50] sm:$0xff]
        %v645 = vld [vmem:[%s527 + $0x58] sm:$0xff]
        %v646 = vld [vmem:[%s527 + $0x60] sm:$0xff]
        %v647 = vld [vmem:[%s527 + $0x68] sm:$0xff]
        %v648 = vld [vmem:[%s527 + $0x70] sm:$0xff]
        %v649 = vld [vmem:[%s527 + $0x78] sm:$0xff]
        %v650 = vld [vmem:[#allocation8] sm:$0xff]
        %v651 = vld [vmem:[#allocation8 + $0x8] sm:$0xff]
        %v652 = vld [vmem:[#allocation8 + $0x10] sm:$0xff]
        %v653 = vld [vmem:[#allocation8 + $0x18] sm:$0xff]
        %v654 = vld [vmem:[#allocation8 + $0x20] sm:$0xff]
        %v655 = vld [vmem:[#allocation8 + $0x28] sm:$0xff]
        %v656 = vld [vmem:[#allocation8 + $0x30] sm:$0xff]
        %v657 = vld [vmem:[#allocation8 + $0x38] sm:$0xff]
        %v658 = vld [vmem:[#allocation8 + $0x40] sm:$0xff]
        %v659 = vld [vmem:[#allocation8 + $0x48] sm:$0xff]
        %v660 = vld [vmem:[#allocation8 + $0x50] sm:$0xff]
        %v661 = vld [vmem:[#allocation8 + $0x58] sm:$0xff]
        %v662 = vld [vmem:[#allocation8 + $0x60] sm:$0xff]
        %v663 = vld [vmem:[#allocation8 + $0x68] sm:$0xff]
        %v664 = vld [vmem:[#allocation8 + $0x70] sm:$0xff]
        %v665 = vld [vmem:[#allocation8 + $0x78] sm:$0xff]
        %v666 = vld [vmem:[#allocation10] sm:$0x1]
        %v668 = vlaneseq
        %v669 = vshrl.u32 %v668, 7
        %v670 = vsub.s32 0, %v669
        %v671 = vrot.slane %v666, %v670
        %673 = vmatprep.subr.mxu0 0.0
        %674 = vmatpush1.msra.mxu0 %v650
        %675 = vmatprep.subr.mxu0 0.0
        %676 = vmatpush1.msra.mxu0 %v651
        %677 = vmatprep.subr.mxu0 0.0
        %678 = vmatpush1.msra.mxu0 %v652
        %679 = vmatprep.subr.mxu0 0.0
        %680 = vmatpush1.msra.mxu0 %v653
        %681 = vmatprep.subr.mxu0 0.0
        %682 = vmatpush1.msra.mxu0 %v654
        %683 = vmatprep.subr.mxu0 0.0
        %684 = vmatpush1.msra.mxu0 %v655
        %685 = vmatprep.subr.mxu0 0.0
        %686 = vmatpush1.msra.mxu0 %v656
        %687 = vmatprep.subr.mxu0 0.0
        %688 = vmatpush1.msra.mxu0 %v657
        %689 = vmatprep.subr.mxu0 0.0
        %690 = vmatpush1.msra.mxu0 %v658
        %691 = vmatprep.subr.mxu0 0.0
        %692 = vmatpush1.msra.mxu0 %v659
        %693 = vmatprep.subr.mxu0 0.0
        %694 = vmatpush1.msra.mxu0 %v660
        %695 = vmatprep.subr.mxu0 0.0
        %696 = vmatpush1.msra.mxu0 %v661
        %697 = vmatprep.subr.mxu0 0.0
        %698 = vmatpush1.msra.mxu0 %v662
        %699 = vmatprep.subr.mxu0 0.0
        %700 = vmatpush1.msra.mxu0 %v663
        %701 = vmatprep.subr.mxu0 0.0
        %702 = vmatpush1.msra.mxu0 %v664
        %703 = vmatprep.subr.mxu0 0.0
        %704 = vmatpush1.msra.mxu0 %v665
        %705 = vmatprep.subr.mxu0 0.0
        %706 = vmatpush1.msra.mxu0 0.0
        %707 = vmatprep.subr.mxu0 0.0
        %708 = vmatpush1.msra.mxu0 0.0
        %709 = vmatprep.subr.mxu0 0.0
        %710 = vmatpush1.msra.mxu0 0.0
        %711 = vmatprep.subr.mxu0 0.0
        %712 = vmatpush1.msra.mxu0 0.0
        %713 = vmatprep.subr.mxu0 0.0
        %714 = vmatpush1.msra.mxu0 0.0
        %715 = vmatprep.subr.mxu0 0.0
        %716 = vmatpush1.msra.mxu0 0.0
        %717 = vmatprep.subr.mxu0 0.0
        %718 = vmatpush1.msra.mxu0 0.0
        %719 = vmatprep.subr.mxu0 0.0
        %720 = vmatpush1.msra.mxu0 0.0
        %721 = vmatprep.subr.mxu0 0.0
        %722 = vmatpush1.msra.mxu0 0.0
        %723 = vmatprep.subr.mxu0 0.0
        %724 = vmatpush1.msra.mxu0 0.0
        %725 = vmatprep.subr.mxu0 0.0
        %726 = vmatpush1.msra.mxu0 0.0
        %727 = vmatprep.subr.mxu0 0.0
        %728 = vmatpush1.msra.mxu0 0.0
        %729 = vmatprep.subr.mxu0 0.0
        %730 = vmatpush1.msra.mxu0 0.0
        %731 = vmatprep.subr.mxu0 0.0
        %732 = vmatpush1.msra.mxu0 0.0
        %733 = vmatprep.subr.mxu0 0.0
        %734 = vmatpush1.msra.mxu0 0.0
        %735 = vmatprep.subr.mxu0 0.0
        %736 = vmatpush1.msra.mxu0 0.0
        %737 = vmatprep.mubr.f32.mxu0 0.0
        %738 = vmatmul.mubr.f32.gmra.mrb[0].mxu0 %v610
        %v739 = vpop.f32.mrb[0].mxu0
        %v740 = vadd.f32 %v671, %v739
        %v741 = vpop.f32.mrb[0].mxu0
        %742 = vmatprep.mubr.f32.mxu0 0.0
        %743 = vmatmul.mubr.f32.gmra.mrb[0].mxu0 %v611
        %v744 = vpop.f32.mrb[0].mxu0
        %v745 = vadd.f32 %v671, %v744
        %v746 = vpop.f32.mrb[0].mxu0
        %747 = vmatprep.mubr.f32.mxu0 0.0
        %748 = vmatmul.mubr.f32.gmra.mrb[0].mxu0 %v612
        %v749 = vpop.f32.mrb[0].mxu0
        %v750 = vadd.f32 %v671, %v749
        %v751 = vpop.f32.mrb[0].mxu0
        %752 = vmatprep.mubr.f32.mxu0 0.0
        %753 = vmatmul.mubr.f32.gmra.mrb[0].mxu0 %v613
        %v754 = vpop.f32.mrb[0].mxu0
        %v755 = vadd.f32 %v671, %v754
        %v756 = vpop.f32.mrb[0].mxu0
        %757 = vmatprep.mubr.f32.mxu0 0.0
        %758 = vmatmul.mubr.f32.gmra.mrb[0].mxu0 %v614
        %v759 = vpop.f32.mrb[0].mxu0
        %v760 = vadd.f32 %v671, %v759
        %v761 = vpop.f32.mrb[0].mxu0
        %762 = vmatprep.mubr.f32.mxu0 0.0
        %763 = vmatmul.mubr.f32.gmra.mrb[0].mxu0 %v615
        %v764 = vpop.f32.mrb[0].mxu0
        %v765 = vadd.f32 %v671, %v764
        %v766 = vpop.f32.mrb[0].mxu0
        %767 = vmatprep.mubr.f32.mxu0 0.0
        %768 = vmatmul.mubr.f32.gmra.mrb[0].mxu0 %v616
        %v769 = vpop.f32.mrb[0].mxu0
        %v770 = vadd.f32 %v671, %v769
        %v771 = vpop.f32.mrb[0].mxu0
        %772 = vmatprep.mubr.f32.mxu0 0.0
        %773 = vmatmul.mubr.f32.gmra.mrb[0].mxu0 %v617
        %v774 = vpop.f32.mrb[0].mxu0
        %v775 = vadd.f32 %v671, %v774
        %v776 = vpop.f32.mrb[0].mxu0
        %777 = vdwg.mxu0
        %v778 = vmul.f32 %v740, 0.17677669
        %v779 = vmul.f32 %v745, 0.17677669
        %v780 = vmul.f32 %v750, 0.17677669
        %v781 = vmul.f32 %v755, 0.17677669
        %v782 = vmul.f32 %v760, 0.17677669
        %v783 = vmul.f32 %v765, 0.17677669
        %v784 = vmul.f32 %v770, 0.17677669
        %v785 = vmul.f32 %v775, 0.17677669
        %v786 = vld [vmem:[#allocation11] sm:$0xff]
        %v787 = vld [vmem:[#allocation11 + $0x8] sm:$0xff]
        %v788 = vld [vmem:[#allocation11 + $0x10] sm:$0xff]
        %v789 = vld [vmem:[#allocation11 + $0x18] sm:$0xff]
        %v790 = vld [vmem:[#allocation11 + $0x20] sm:$0xff]
        %v791 = vld [vmem:[#allocation11 + $0x28] sm:$0xff]
        %v792 = vld [vmem:[#allocation11 + $0x30] sm:$0xff]
        %v793 = vld [vmem:[#allocation11 + $0x38] sm:$0xff]
        %v794 = vld [vmem:[#allocation11 + $0x40] sm:$0xff]
        %v795 = vld [vmem:[#allocation11 + $0x48] sm:$0xff]
        %v796 = vld [vmem:[#allocation11 + $0x50] sm:$0xff]
        %v797 = vld [vmem:[#allocation11 + $0x58] sm:$0xff]
        %v798 = vld [vmem:[#allocation11 + $0x60] sm:$0xff]
        %v799 = vld [vmem:[#allocation11 + $0x68] sm:$0xff]
        %v800 = vld [vmem:[#allocation11 + $0x70] sm:$0xff]
        %v801 = vld [vmem:[#allocation11 + $0x78] sm:$0xff]
        %v802 = vld [vmem:[#allocation13] sm:$0x1]
        %v804 = vlaneseq
        %v805 = vshrl.u32 %v804, 7
        %v806 = vsub.s32 0, %v805
        %v807 = vrot.slane %v802, %v806
        %809 = vmatprep.subr.mxu0 0.0
        %810 = vmatpush1.msra.mxu0 %v786
        %811 = vmatprep.subr.mxu0 0.0
        %812 = vmatpush1.msra.mxu0 %v787
        %813 = vmatprep.subr.mxu0 0.0
        %814 = vmatpush1.msra.mxu0 %v788
        %815 = vmatprep.subr.mxu0 0.0
        %816 = vmatpush1.msra.mxu0 %v789
        %817 = vmatprep.subr.mxu0 0.0
        %818 = vmatpush1.msra.mxu0 %v790
        %819 = vmatprep.subr.mxu0 0.0
        %820 = vmatpush1.msra.mxu0 %v791
        %821 = vmatprep.subr.mxu0 0.0
        %822 = vmatpush1.msra.mxu0 %v792
        %823 = vmatprep.subr.mxu0 0.0
        %824 = vmatpush1.msra.mxu0 %v793
        %825 = vmatprep.subr.mxu0 0.0
        %826 = vmatpush1.msra.mxu0 %v794
        %827 = vmatprep.subr.mxu0 0.0
        %828 = vmatpush1.msra.mxu0 %v795
        %829 = vmatprep.subr.mxu0 0.0
        %830 = vmatpush1.msra.mxu0 %v796
        %831 = vmatprep.subr.mxu0 0.0
        %832 = vmatpush1.msra.mxu0 %v797
        %833 = vmatprep.subr.mxu0 0.0
        %834 = vmatpush1.msra.mxu0 %v798
        %835 = vmatprep.subr.mxu0 0.0
        %836 = vmatpush1.msra.mxu0 %v799
        %837 = vmatprep.subr.mxu0 0.0
        %838 = vmatpush1.msra.mxu0 %v800
        %839 = vmatprep.subr.mxu0 0.0
        %840 = vmatpush1.msra.mxu0 %v801
        %841 = vmatprep.subr.mxu0 0.0
        %842 = vmatpush1.msra.mxu0 0.0
        %843 = vmatprep.subr.mxu0 0.0
        %844 = vmatpush1.msra.mxu0 0.0
        %845 = vmatprep.subr.mxu0 0.0
        %846 = vmatpush1.msra.mxu0 0.0
        %847 = vmatprep.subr.mxu0 0.0
        %848 = vmatpush1.msra.mxu0 0.0
        %849 = vmatprep.subr.mxu0 0.0
        %850 = vmatpush1.msra.mxu0 0.0
        %851 = vmatprep.subr.mxu0 0.0
        %852 = vmatpush1.msra.mxu0 0.0
        %853 = vmatprep.subr.mxu0 0.0
        %854 = vmatpush1.msra.mxu0 0.0
        %855 = vmatprep.subr.mxu0 0.0
        %856 = vmatpush1.msra.mxu0 0.0
        %857 = vmatprep.subr.mxu0 0.0
        %858 = vmatpush1.msra.mxu0 0.0
        %859 = vmatprep.subr.mxu0 0.0
        %860 = vmatpush1.msra.mxu0 0.0
        %861 = vmatprep.subr.mxu0 0.0
        %862 = vmatpush1.msra.mxu0 0.0
        %863 = vmatprep.subr.mxu0 0.0
        %864 = vmatpush1.msra.mxu0 0.0
        %865 = vmatprep.subr.mxu0 0.0
        %866 = vmatpush1.msra.mxu0 0.0
        %867 = vmatprep.subr.mxu0 0.0
        %868 = vmatpush1.msra.mxu0 0.0
        %869 = vmatprep.subr.mxu0 0.0
        %870 = vmatpush1.msra.mxu0 0.0
        %871 = vmatprep.subr.mxu0 0.0
        %872 = vmatpush1.msra.mxu0 0.0
        %873 = vmatprep.mubr.f32.mxu0 0.0
        %874 = vmatmul.mubr.f32.gmra.mrb[0].mxu0 %v618
        %v875 = vpop.f32.mrb[0].mxu0
        %v876 = vadd.f32 %v807, %v875
        %v877 = vpop.f32.mrb[0].mxu0
        %878 = vmatprep.mubr.f32.mxu0 0.0
        %879 = vmatmul.mubr.f32.gmra.mrb[0].mxu0 %v619
        %v880 = vpop.f32.mrb[0].mxu0
        %v881 = vadd.f32 %v807, %v880
        %v882 = vpop.f32.mrb[0].mxu0
        %883 = vmatprep.mubr.f32.mxu0 0.0
        %884 = vmatmul.mubr.f32.gmra.mrb[0].mxu0 %v620
        %v885 = vpop.f32.mrb[0].mxu0
        %v886 = vadd.f32 %v807, %v885
        %v887 = vpop.f32.mrb[0].mxu0
        %888 = vmatprep.mubr.f32.mxu0 0.0
        %889 = vmatmul.mubr.f32.gmra.mrb[0].mxu0 %v621
        %v890 = vpop.f32.mrb[0].mxu0
        %v891 = vadd.f32 %v807, %v890
        %v892 = vpop.f32.mrb[0].mxu0
        %893 = vmatprep.mubr.f32.mxu0 0.0
        %894 = vmatmul.mubr.f32.gmra.mrb[0].mxu0 %v622
        %v895 = vpop.f32.mrb[0].mxu0
        %v896 = vadd.f32 %v807, %v895
        %v897 = vpop.f32.mrb[0].mxu0
        %898 = vmatprep.mubr.f32.mxu0 0.0
        %899 = vmatmul.mubr.f32.gmra.mrb[0].mxu0 %v623
        %v900 = vpop.f32.mrb[0].mxu0
        %v901 = vadd.f32 %v807, %v900
        %v902 = vpop.f32.mrb[0].mxu0
        %903 = vmatprep.mubr.f32.mxu0 0.0
        %904 = vmatmul.mubr.f32.gmra.mrb[0].mxu0 %v624
        %v905 = vpop.f32.mrb[0].mxu0
        %v906 = vadd.f32 %v807, %v905
        %v907 = vpop.f32.mrb[0].mxu0
        %908 = vmatprep.mubr.f32.mxu0 0.0
        %909 = vmatmul.mubr.f32.gmra.mrb[0].mxu0 %v625
        %v910 = vpop.f32.mrb[0].mxu0
        %v911 = vadd.f32 %v807, %v910
        %v912 = vpop.f32.mrb[0].mxu0
        %913 = vmatprep.mubr.f32.mxu0 0.0
        %914 = vmatmul.mubr.f32.gmra.mrb[0].mxu0 %v626
        %v915 = vpop.f32.mrb[0].mxu0
        %v916 = vadd.f32 %v807, %v915
        %v917 = vpop.f32.mrb[0].mxu0
        %918 = vmatprep.mubr.f32.mxu0 0.0
        %919 = vmatmul.mubr.f32.gmra.mrb[0].mxu0 %v627
        %v920 = vpop.f32.mrb[0].mxu0
        %v921 = vadd.f32 %v807, %v920
        %v922 = vpop.f32.mrb[0].mxu0
        %923 = vmatprep.mubr.f32.mxu0 0.0
        %924 = vmatmul.mubr.f32.gmra.mrb[0].mxu0 %v628
        %v925 = vpop.f32.mrb[0].mxu0
        %v926 = vadd.f32 %v807, %v925
        %v927 = vpop.f32.mrb[0].mxu0
        %928 = vmatprep.mubr.f32.mxu0 0.0
        %929 = vmatmul.mubr.f32.gmra.mrb[0].mxu0 %v629
        %v930 = vpop.f32.mrb[0].mxu0
        %v931 = vadd.f32 %v807, %v930
        %v932 = vpop.f32.mrb[0].mxu0
        %933 = vmatprep.mubr.f32.mxu0 0.0
        %934 = vmatmul.mubr.f32.gmra.mrb[0].mxu0 %v630
        %v935 = vpop.f32.mrb[0].mxu0
        %v936 = vadd.f32 %v807, %v935
        %v937 = vpop.f32.mrb[0].mxu0
        %938 = vmatprep.mubr.f32.mxu0 0.0
        %939 = vmatmul.mubr.f32.gmra.mrb[0].mxu0 %v631
        %v940 = vpop.f32.mrb[0].mxu0
        %v941 = vadd.f32 %v807, %v940
        %v942 = vpop.f32.mrb[0].mxu0
        %943 = vmatprep.mubr.f32.mxu0 0.0
        %944 = vmatmul.mubr.f32.gmra.mrb[0].mxu0 %v632
        %v945 = vpop.f32.mrb[0].mxu0
        %v946 = vadd.f32 %v807, %v945
        %v947 = vpop.f32.mrb[0].mxu0
        %948 = vmatprep.mubr.f32.mxu0 0.0
        %949 = vmatmul.mubr.f32.gmra.mrb[0].mxu0 %v633
        %v950 = vpop.f32.mrb[0].mxu0
        %v951 = vadd.f32 %v807, %v950
        %v952 = vpop.f32.mrb[0].mxu0
        %953 = vdwg.mxu0
        %v954 = vld [vmem:[#allocation14] sm:$0xff]
        %v955 = vld [vmem:[#allocation14 + $0x8] sm:$0xff]
        %v956 = vld [vmem:[#allocation14 + $0x10] sm:$0xff]
        %v957 = vld [vmem:[#allocation14 + $0x18] sm:$0xff]
        %v958 = vld [vmem:[#allocation14 + $0x20] sm:$0xff]
        %v959 = vld [vmem:[#allocation14 + $0x28] sm:$0xff]
        %v960 = vld [vmem:[#allocation14 + $0x30] sm:$0xff]
        %v961 = vld [vmem:[#allocation14 + $0x38] sm:$0xff]
        %v962 = vld [vmem:[#allocation14 + $0x40] sm:$0xff]
        %v963 = vld [vmem:[#allocation14 + $0x48] sm:$0xff]
        %v964 = vld [vmem:[#allocation14 + $0x50] sm:$0xff]
        %v965 = vld [vmem:[#allocation14 + $0x58] sm:$0xff]
        %v966 = vld [vmem:[#allocation14 + $0x60] sm:$0xff]
        %v967 = vld [vmem:[#allocation14 + $0x68] sm:$0xff]
        %v968 = vld [vmem:[#allocation14 + $0x70] sm:$0xff]
        %v969 = vld [vmem:[#allocation14 + $0x78] sm:$0xff]
        %v970 = vld [vmem:[#allocation16] sm:$0x1]
        %v972 = vlaneseq
        %v973 = vshrl.u32 %v972, 7
        %v974 = vsub.s32 0, %v973
        %v975 = vrot.slane %v970, %v974
        %977 = vmatprep.subr.mxu0 0.0
        %978 = vmatpush1.msra.mxu0 %v954
        %979 = vmatprep.subr.mxu0 0.0
        %980 = vmatpush1.msra.mxu0 %v955
        %981 = vmatprep.subr.mxu0 0.0
        %982 = vmatpush1.msra.mxu0 %v956
        %983 = vmatprep.subr.mxu0 0.0
        %984 = vmatpush1.msra.mxu0 %v957
        %985 = vmatprep.subr.mxu0 0.0
        %986 = vmatpush1.msra.mxu0 %v958
        %987 = vmatprep.subr.mxu0 0.0
        %988 = vmatpush1.msra.mxu0 %v959
        %989 = vmatprep.subr.mxu0 0.0
        %990 = vmatpush1.msra.mxu0 %v960
        %991 = vmatprep.subr.mxu0 0.0
        %992 = vmatpush1.msra.mxu0 %v961
        %993 = vmatprep.subr.mxu0 0.0
        %994 = vmatpush1.msra.mxu0 %v962
        %995 = vmatprep.subr.mxu0 0.0
        %996 = vmatpush1.msra.mxu0 %v963
        %997 = vmatprep.subr.mxu0 0.0
        %998 = vmatpush1.msra.mxu0 %v964
        %999 = vmatprep.subr.mxu0 0.0
        %1000 = vmatpush1.msra.mxu0 %v965
        %1001 = vmatprep.subr.mxu0 0.0
        %1002 = vmatpush1.msra.mxu0 %v966
        %1003 = vmatprep.subr.mxu0 0.0
        %1004 = vmatpush1.msra.mxu0 %v967
        %1005 = vmatprep.subr.mxu0 0.0
        %1006 = vmatpush1.msra.mxu0 %v968
        %1007 = vmatprep.subr.mxu0 0.0
        %1008 = vmatpush1.msra.mxu0 %v969
        %1009 = vmatprep.subr.mxu0 0.0
        %1010 = vmatpush1.msra.mxu0 0.0
        %1011 = vmatprep.subr.mxu0 0.0
        %1012 = vmatpush1.msra.mxu0 0.0
        %1013 = vmatprep.subr.mxu0 0.0
        %1014 = vmatpush1.msra.mxu0 0.0
        %1015 = vmatprep.subr.mxu0 0.0
        %1016 = vmatpush1.msra.mxu0 0.0
        %1017 = vmatprep.subr.mxu0 0.0
        %1018 = vmatpush1.msra.mxu0 0.0
        %1019 = vmatprep.subr.mxu0 0.0
        %1020 = vmatpush1.msra.mxu0 0.0
        %1021 = vmatprep.subr.mxu0 0.0
        %1022 = vmatpush1.msra.mxu0 0.0
        %1023 = vmatprep.subr.mxu0 0.0
        %1024 = vmatpush1.msra.mxu0 0.0
        %1025 = vmatprep.subr.mxu0 0.0
        %1026 = vmatpush1.msra.mxu0 0.0
        %1027 = vmatprep.subr.mxu0 0.0
        %1028 = vmatpush1.msra.mxu0 0.0
        %1029 = vmatprep.subr.mxu0 0.0
        %1030 = vmatpush1.msra.mxu0 0.0
        %1031 = vmatprep.subr.mxu0 0.0
        %1032 = vmatpush1.msra.mxu0 0.0
        %1033 = vmatprep.subr.mxu0 0.0
        %1034 = vmatpush1.msra.mxu0 0.0
        %1035 = vmatprep.subr.mxu0 0.0
        %1036 = vmatpush1.msra.mxu0 0.0
        %1037 = vmatprep.subr.mxu0 0.0
        %1038 = vmatpush1.msra.mxu0 0.0
        %1039 = vmatprep.subr.mxu0 0.0
        %1040 = vmatpush1.msra.mxu0 0.0
        %1041 = vmatprep.mubr.f32.mxu0 0.0
        %1042 = vmatmul.mubr.f32.gmra.mrb[0].mxu0 %v634
        %v1043 = vpop.f32.mrb[0].mxu0
        %v1044 = vadd.f32 %v975, %v1043
        %v1045 = vpop.f32.mrb[0].mxu0
        %1046 = vmatprep.mubr.f32.mxu0 0.0
        %1047 = vmatmul.mubr.f32.gmra.mrb[0].mxu0 %v635
        %v1048 = vpop.f32.mrb[0].mxu0
        %v1049 = vadd.f32 %v975, %v1048
        %v1050 = vpop.f32.mrb[0].mxu0
        %1051 = vmatprep.mubr.f32.mxu0 0.0
        %1052 = vmatmul.mubr.f32.gmra.mrb[0].mxu0 %v636
        %v1053 = vpop.f32.mrb[0].mxu0
        %v1054 = vadd.f32 %v975, %v1053
        %v1055 = vpop.f32.mrb[0].mxu0
        %1056 = vmatprep.mubr.f32.mxu0 0.0
        %1057 = vmatmul.mubr.f32.gmra.mrb[0].mxu0 %v637
        %v1058 = vpop.f32.mrb[0].mxu0
        %v1059 = vadd.f32 %v975, %v1058
        %v1060 = vpop.f32.mrb[0].mxu0
        %1061 = vmatprep.mubr.f32.mxu0 0.0
        %1062 = vmatmul.mubr.f32.gmra.mrb[0].mxu0 %v638
        %v1063 = vpop.f32.mrb[0].mxu0
        %v1064 = vadd.f32 %v975, %v1063
        %v1065 = vpop.f32.mrb[0].mxu0
        %1066 = vmatprep.mubr.f32.mxu0 0.0
        %1067 = vmatmul.mubr.f32.gmra.mrb[0].mxu0 %v639
        %v1068 = vpop.f32.mrb[0].mxu0
        %v1069 = vadd.f32 %v975, %v1068
        %v1070 = vpop.f32.mrb[0].mxu0
        %1071 = vmatprep.mubr.f32.mxu0 0.0
        %1072 = vmatmul.mubr.f32.gmra.mrb[0].mxu0 %v640
        %v1073 = vpop.f32.mrb[0].mxu0
        %v1074 = vadd.f32 %v975, %v1073
        %v1075 = vpop.f32.mrb[0].mxu0
        %1076 = vmatprep.mubr.f32.mxu0 0.0
        %1077 = vmatmul.mubr.f32.gmra.mrb[0].mxu0 %v641
        %v1078 = vpop.f32.mrb[0].mxu0
        %v1079 = vadd.f32 %v975, %v1078
        %v1080 = vpop.f32.mrb[0].mxu0
        %1081 = vmatprep.mubr.f32.mxu0 0.0
        %1082 = vmatmul.mubr.f32.gmra.mrb[0].mxu0 %v642
        %v1083 = vpop.f32.mrb[0].mxu0
        %v1084 = vadd.f32 %v975, %v1083
        %v1085 = vpop.f32.mrb[0].mxu0
        %1086 = vmatprep.mubr.f32.mxu0 0.0
        %1087 = vmatmul.mubr.f32.gmra.mrb[0].mxu0 %v643
        %v1088 = vpop.f32.mrb[0].mxu0
        %v1089 = vadd.f32 %v975, %v1088
        %v1090 = vpop.f32.mrb[0].mxu0
        %1091 = vmatprep.mubr.f32.mxu0 0.0
        %1092 = vmatmul.mubr.f32.gmra.mrb[0].mxu0 %v644
        %v1093 = vpop.f32.mrb[0].mxu0
        %v1094 = vadd.f32 %v975, %v1093
        %v1095 = vpop.f32.mrb[0].mxu0
        %1096 = vmatprep.mubr.f32.mxu0 0.0
        %1097 = vmatmul.mubr.f32.gmra.mrb[0].mxu0 %v645
        %v1098 = vpop.f32.mrb[0].mxu0
        %v1099 = vadd.f32 %v975, %v1098
        %v1100 = vpop.f32.mrb[0].mxu0
        %1101 = vmatprep.mubr.f32.mxu0 0.0
        %1102 = vmatmul.mubr.f32.gmra.mrb[0].mxu0 %v646
        %v1103 = vpop.f32.mrb[0].mxu0
        %v1104 = vadd.f32 %v975, %v1103
        %v1105 = vpop.f32.mrb[0].mxu0
        %1106 = vmatprep.mubr.f32.mxu0 0.0
        %1107 = vmatmul.mubr.f32.gmra.mrb[0].mxu0 %v647
        %v1108 = vpop.f32.mrb[0].mxu0
        %v1109 = vadd.f32 %v975, %v1108
        %v1110 = vpop.f32.mrb[0].mxu0
        %1111 = vmatprep.mubr.f32.mxu0 0.0
        %1112 = vmatmul.mubr.f32.gmra.mrb[0].mxu0 %v648
        %v1113 = vpop.f32.mrb[0].mxu0
        %v1114 = vadd.f32 %v975, %v1113
        %v1115 = vpop.f32.mrb[0].mxu0
        %1116 = vmatprep.mubr.f32.mxu0 0.0
        %1117 = vmatmul.mubr.f32.gmra.mrb[0].mxu0 %v649
        %v1118 = vpop.f32.mrb[0].mxu0
        %v1119 = vadd.f32 %v975, %v1118
        %v1120 = vpop.f32.mrb[0].mxu0
        %1121 = vdwg.mxu0
        %vm1122 = vcmask 261120
        %v1124 = vsel %vm1122, %v778, 0
        %v1127 = vsel %vm1122, %v779, 0
        %v1130 = vsel %vm1122, %v780, 0
        %v1133 = vsel %vm1122, %v781, 0
        %v1136 = vsel %vm1122, %v782, 0
        %v1139 = vsel %vm1122, %v783, 0
        %v1142 = vsel %vm1122, %v784, 0
        %v1145 = vsel %vm1122, %v785, 0
        %v1148 = vsel %vm1122, %v876, 0
        %v1151 = vsel %vm1122, %v881, 0
        %v1154 = vsel %vm1122, %v886, 0
        %v1157 = vsel %vm1122, %v891, 0
        %v1160 = vsel %vm1122, %v896, 0
        %v1163 = vsel %vm1122, %v901, 0
        %v1166 = vsel %vm1122, %v906, 0
        %v1169 = vsel %vm1122, %v911, 0
        %v1172 = vsel %vm1122, %v916, 0
        %v1175 = vsel %vm1122, %v921, 0
        %v1178 = vsel %vm1122, %v926, 0
        %v1181 = vsel %vm1122, %v931, 0
        %v1184 = vsel %vm1122, %v936, 0
        %v1187 = vsel %vm1122, %v941, 0
        %v1190 = vsel %vm1122, %v946, 0
        %v1193 = vsel %vm1122, %v951, 0
        %1195 = vmatprep.subr.mxu0 0.0
        %1196 = vmatpush1.xpose.msra.mxu0 %v1148
        %1197 = vmatprep.subr.mxu0 0.0
        %1198 = vmatpush1.xpose.msra.mxu0 %v1151
        %1199 = vmatprep.subr.mxu0 0.0
        %1200 = vmatpush1.xpose.msra.mxu0 %v1154
        %1201 = vmatprep.subr.mxu0 0.0
        %1202 = vmatpush1.xpose.msra.mxu0 %v1157
        %1203 = vmatprep.subr.mxu0 0.0
        %1204 = vmatpush1.xpose.msra.mxu0 %v1160
        %1205 = vmatprep.subr.mxu0 0.0
        %1206 = vmatpush1.xpose.msra.mxu0 %v1163
        %1207 = vmatprep.subr.mxu0 0.0
        %1208 = vmatpush1.xpose.msra.mxu0 %v1166
        %1209 = vmatprep.subr.mxu0 0.0
        %1210 = vmatpush1.xpose.msra.mxu0 %v1169
        %1211 = vmatprep.subr.mxu0 0.0
        %1212 = vmatpush1.xpose.msra.mxu0 %v1172
        %1213 = vmatprep.subr.mxu0 0.0
        %1214 = vmatpush1.xpose.msra.mxu0 %v1175
        %1215 = vmatprep.subr.mxu0 0.0
        %1216 = vmatpush1.xpose.msra.mxu0 %v1178
        %1217 = vmatprep.subr.mxu0 0.0
        %1218 = vmatpush1.xpose.msra.mxu0 %v1181
        %1219 = vmatprep.subr.mxu0 0.0
        %1220 = vmatpush1.xpose.msra.mxu0 %v1184
        %1221 = vmatprep.subr.mxu0 0.0
        %1222 = vmatpush1.xpose.msra.mxu0 %v1187
        %1223 = vmatprep.subr.mxu0 0.0
        %1224 = vmatpush1.xpose.msra.mxu0 %v1190
        %1225 = vmatprep.subr.mxu0 0.0
        %1226 = vmatpush1.xpose.msra.mxu0 %v1193
        %1227 = vmatprep.subr.mxu0 0.0
        %1228 = vmatpush1.xpose.msra.mxu0 0.0
        %1229 = vmatprep.subr.mxu0 0.0
        %1230 = vmatpush1.xpose.msra.mxu0 0.0
        %1231 = vmatprep.subr.mxu0 0.0
        %1232 = vmatpush1.xpose.msra.mxu0 0.0
        %1233 = vmatprep.subr.mxu0 0.0
        %1234 = vmatpush1.xpose.msra.mxu0 0.0
        %1235 = vmatprep.subr.mxu0 0.0
        %1236 = vmatpush1.xpose.msra.mxu0 0.0
        %1237 = vmatprep.subr.mxu0 0.0
        %1238 = vmatpush1.xpose.msra.mxu0 0.0
        %1239 = vmatprep.subr.mxu0 0.0
        %1240 = vmatpush1.xpose.msra.mxu0 0.0
        %1241 = vmatprep.subr.mxu0 0.0
        %1242 = vmatpush1.xpose.msra.mxu0 0.0
        %1243 = vmatprep.subr.mxu0 0.0
        %1244 = vmatpush1.xpose.msra.mxu0 0.0
        %1245 = vmatprep.subr.mxu0 0.0
        %1246 = vmatpush1.xpose.msra.mxu0 0.0
        %1247 = vmatprep.subr.mxu0 0.0
        %1248 = vmatpush1.xpose.msra.mxu0 0.0
        %1249 = vmatprep.subr.mxu0 0.0
        %1250 = vmatpush1.xpose.msra.mxu0 0.0
        %1251 = vmatprep.subr.mxu0 0.0
        %1252 = vmatpush1.xpose.msra.mxu0 0.0
        %1253 = vmatprep.subr.mxu0 0.0
        %1254 = vmatpush1.xpose.msra.mxu0 0.0
        %1255 = vmatprep.subr.mxu0 0.0
        %1256 = vmatpush1.xpose.msra.mxu0 0.0
        %1257 = vmatprep.subr.mxu0 0.0
        %1258 = vmatpush1.xpose.msra.mxu0 0.0
        %1259 = vmatprep.mubr.f32.mxu0 0.0
        %1260 = vmatmul.mubr.f32.gmra.mrb[0].mxu0 %v1124
        %v1261 = vpop.f32.mrb[0].mxu0
        %v1262 = vadd.f32 0.0, %v1261
        %v1263 = vpop.f32.mrb[0].mxu0
        %1264 = vmatprep.mubr.f32.mxu0 0.0
        %1265 = vmatmul.mubr.f32.gmra.mrb[0].mxu0 %v1127
        %v1266 = vpop.f32.mrb[0].mxu0
        %v1267 = vadd.f32 0.0, %v1266
        %v1268 = vpop.f32.mrb[0].mxu0
        %1269 = vmatprep.mubr.f32.mxu0 0.0
        %1270 = vmatmul.mubr.f32.gmra.mrb[0].mxu0 %v1130
        %v1271 = vpop.f32.mrb[0].mxu0
        %v1272 = vadd.f32 0.0, %v1271
        %v1273 = vpop.f32.mrb[0].mxu0
        %1274 = vmatprep.mubr.f32.mxu0 0.0
        %1275 = vmatmul.mubr.f32.gmra.mrb[0].mxu0 %v1133
        %v1276 = vpop.f32.mrb[0].mxu0
        %v1277 = vadd.f32 0.0, %v1276
        %v1278 = vpop.f32.mrb[0].mxu0
        %1279 = vmatprep.mubr.f32.mxu0 0.0
        %1280 = vmatmul.mubr.f32.gmra.mrb[0].mxu0 %v1136
        %v1281 = vpop.f32.mrb[0].mxu0
        %v1282 = vadd.f32 0.0, %v1281
        %v1283 = vpop.f32.mrb[0].mxu0
        %1284 = vmatprep.mubr.f32.mxu0 0.0
        %1285 = vmatmul.mubr.f32.gmra.mrb[0].mxu0 %v1139
        %v1286 = vpop.f32.mrb[0].mxu0
        %v1287 = vadd.f32 0.0, %v1286
        %v1288 = vpop.f32.mrb[0].mxu0
        %1289 = vmatprep.mubr.f32.mxu0 0.0
        %1290 = vmatmul.mubr.f32.gmra.mrb[0].mxu0 %v1142
        %v1291 = vpop.f32.mrb[0].mxu0
        %v1292 = vadd.f32 0.0, %v1291
        %v1293 = vpop.f32.mrb[0].mxu0
        %1294 = vmatprep.mubr.f32.mxu0 0.0
        %1295 = vmatmul.mubr.f32.gmra.mrb[0].mxu0 %v1145
        %v1296 = vpop.f32.mrb[0].mxu0
        %v1297 = vadd.f32 0.0, %v1296
        %v1298 = vpop.f32.mrb[0].mxu0
        %1299 = vdwg.mxu0
        %1300 = vmax.xlane.f32.xlu0 %v1262
        %v1301 = vpop.xlane.xlu0 %1300
        %1302 = vmax.xlane.f32.xlu0 %v1267
        %v1303 = vpop.xlane.xlu0 %1302
        %1304 = vmax.xlane.f32.xlu0 %v1272
        %v1305 = vpop.xlane.xlu0 %1304
        %1306 = vmax.xlane.f32.xlu0 %v1277
        %v1307 = vpop.xlane.xlu0 %1306
        %1308 = vmax.xlane.f32.xlu0 %v1282
        %v1309 = vpop.xlane.xlu0 %1308
        %1310 = vmax.xlane.f32.xlu0 %v1287
        %v1311 = vpop.xlane.xlu0 %1310
        %1312 = vmax.xlane.f32.xlu0 %v1292
        %v1313 = vpop.xlane.xlu0 %1312
        %1314 = vmax.xlane.f32.xlu0 %v1297
        %v1315 = vpop.xlane.xlu0 %1314
        %v1316 = vsub.f32 %v1262, %v1301
        %v1317 = vsub.f32 %v1267, %v1303
        %v1318 = vsub.f32 %v1272, %v1305
        %v1319 = vsub.f32 %v1277, %v1307
        %v1320 = vsub.f32 %v1282, %v1309
        %v1321 = vsub.f32 %v1287, %v1311
        %v1322 = vsub.f32 %v1292, %v1313
        %v1323 = vsub.f32 %v1297, %v1315
        %v1324 = vmul.f32 %v1316, 1.442695
        %v1325 = vpow.pop %v1324
        %v1326 = vmul.f32 %v1317, 1.442695
        %v1327 = vpow.pop %v1326
        %v1328 = vmul.f32 %v1318, 1.442695
        %v1329 = vpow.pop %v1328
        %v1330 = vmul.f32 %v1319, 1.442695
        %v1331 = vpow.pop %v1330
        %v1332 = vmul.f32 %v1320, 1.442695
        %v1333 = vpow.pop %v1332
        %v1334 = vmul.f32 %v1321, 1.442695
        %v1335 = vpow.pop %v1334
        %v1336 = vmul.f32 %v1322, 1.442695
        %v1337 = vpow.pop %v1336
        %v1338 = vmul.f32 %v1323, 1.442695
        %v1339 = vpow.pop %v1338
        %1340 = vadd.xlane.f32.xlu0 %v1325
        %v1341 = vpop.xlane.xlu0 %1340
        %1342 = vadd.xlane.f32.xlu0 %v1327
        %v1343 = vpop.xlane.xlu0 %1342
        %1344 = vadd.xlane.f32.xlu0 %v1329
        %v1345 = vpop.xlane.xlu0 %1344
        %1346 = vadd.xlane.f32.xlu0 %v1331
        %v1347 = vpop.xlane.xlu0 %1346
        %1348 = vadd.xlane.f32.xlu0 %v1333
        %v1349 = vpop.xlane.xlu0 %1348
        %1350 = vadd.xlane.f32.xlu0 %v1335
        %v1351 = vpop.xlane.xlu0 %1350
        %1352 = vadd.xlane.f32.xlu0 %v1337
        %v1353 = vpop.xlane.xlu0 %1352
        %1354 = vadd.xlane.f32.xlu0 %v1339
        %v1355 = vpop.xlane.xlu0 %1354
        %v1356 = vrcp.pop %v1341
        %v1357 = vrcp.pop %v1343
        %v1358 = vrcp.pop %v1345
        %v1359 = vrcp.pop %v1347
        %v1360 = vrcp.pop %v1349
        %v1361 = vrcp.pop %v1351
        %v1362 = vrcp.pop %v1353
        %v1363 = vrcp.pop %v1355
        %v1364 = vmul.f32 %v1325, %v1356
        %v1365 = vmul.f32 %v1327, %v1357
        %v1366 = vmul.f32 %v1329, %v1358
        %v1367 = vmul.f32 %v1331, %v1359
        %v1368 = vmul.f32 %v1333, %v1360
        %v1369 = vmul.f32 %v1335, %v1361
        %v1370 = vmul.f32 %v1337, %v1362
        %v1371 = vmul.f32 %v1339, %v1363
        %1372 = vmatprep.subr.mxu0 0.0
        %1373 = vmatpush1.msra.mxu0 %v1044
        %1374 = vmatprep.subr.mxu0 0.0
        %1375 = vmatpush1.msra.mxu0 %v1049
        %1376 = vmatprep.subr.mxu0 0.0
        %1377 = vmatpush1.msra.mxu0 %v1054
        %1378 = vmatprep.subr.mxu0 0.0
        %1379 = vmatpush1.msra.mxu0 %v1059
        %1380 = vmatprep.subr.mxu0 0.0
        %1381 = vmatpush1.msra.mxu0 %v1064
        %1382 = vmatprep.subr.mxu0 0.0
        %1383 = vmatpush1.msra.mxu0 %v1069
        %1384 = vmatprep.subr.mxu0 0.0
        %1385 = vmatpush1.msra.mxu0 %v1074
        %1386 = vmatprep.subr.mxu0 0.0
        %1387 = vmatpush1.msra.mxu0 %v1079
        %1388 = vmatprep.subr.mxu0 0.0
        %1389 = vmatpush1.msra.mxu0 %v1084
        %1390 = vmatprep.subr.mxu0 0.0
        %1391 = vmatpush1.msra.mxu0 %v1089
        %1392 = vmatprep.subr.mxu0 0.0
        %1393 = vmatpush1.msra.mxu0 %v1094
        %1394 = vmatprep.subr.mxu0 0.0
        %1395 = vmatpush1.msra.mxu0 %v1099
        %1396 = vmatprep.subr.mxu0 0.0
        %1397 = vmatpush1.msra.mxu0 %v1104
        %1398 = vmatprep.subr.mxu0 0.0
        %1399 = vmatpush1.msra.mxu0 %v1109
        %1400 = vmatprep.subr.mxu0 0.0
        %1401 = vmatpush1.msra.mxu0 %v1114
        %1402 = vmatprep.subr.mxu0 0.0
        %1403 = vmatpush1.msra.mxu0 %v1119
        %1404 = vmatprep.subr.mxu0 0.0
        %1405 = vmatpush1.msra.mxu0 0.0
        %1406 = vmatprep.subr.mxu0 0.0
        %1407 = vmatpush1.msra.mxu0 0.0
        %1408 = vmatprep.subr.mxu0 0.0
        %1409 = vmatpush1.msra.mxu0 0.0
        %1410 = vmatprep.subr.mxu0 0.0
        %1411 = vmatpush1.msra.mxu0 0.0
        %1412 = vmatprep.subr.mxu0 0.0
        %1413 = vmatpush1.msra.mxu0 0.0
        %1414 = vmatprep.subr.mxu0 0.0
        %1415 = vmatpush1.msra.mxu0 0.0
        %1416 = vmatprep.subr.mxu0 0.0
        %1417 = vmatpush1.msra.mxu0 0.0
        %1418 = vmatprep.subr.mxu0 0.0
        %1419 = vmatpush1.msra.mxu0 0.0
        %1420 = vmatprep.subr.mxu0 0.0
        %1421 = vmatpush1.msra.mxu0 0.0
        %1422 = vmatprep.subr.mxu0 0.0
        %1423 = vmatpush1.msra.mxu0 0.0
        %1424 = vmatprep.subr.mxu0 0.0
        %1425 = vmatpush1.msra.mxu0 0.0
        %1426 = vmatprep.subr.mxu0 0.0
        %1427 = vmatpush1.msra.mxu0 0.0
        %1428 = vmatprep.subr.mxu0 0.0
        %1429 = vmatpush1.msra.mxu0 0.0
        %1430 = vmatprep.subr.mxu0 0.0
        %1431 = vmatpush1.msra.mxu0 0.0
        %1432 = vmatprep.subr.mxu0 0.0
        %1433 = vmatpush1.msra.mxu0 0.0
        %1434 = vmatprep.subr.mxu0 0.0
        %1435 = vmatpush1.msra.mxu0 0.0
        %1436 = vmatprep.mubr.f32.mxu0 0.0
        %1437 = vmatmul.mubr.f32.gmra.mrb[0].mxu0 %v1364
        %v1438 = vpop.f32.mrb[0].mxu0
        %v1439 = vadd.f32 0.0, %v1438
        %v1440 = vpop.f32.mrb[0].mxu0
        %1441 = vmatprep.mubr.f32.mxu0 0.0
        %1442 = vmatmul.mubr.f32.gmra.mrb[0].mxu0 %v1365
        %v1443 = vpop.f32.mrb[0].mxu0
        %v1444 = vadd.f32 0.0, %v1443
        %v1445 = vpop.f32.mrb[0].mxu0
        %1446 = vmatprep.mubr.f32.mxu0 0.0
        %1447 = vmatmul.mubr.f32.gmra.mrb[0].mxu0 %v1366
        %v1448 = vpop.f32.mrb[0].mxu0
        %v1449 = vadd.f32 0.0, %v1448
        %v1450 = vpop.f32.mrb[0].mxu0
        %1451 = vmatprep.mubr.f32.mxu0 0.0
        %1452 = vmatmul.mubr.f32.gmra.mrb[0].mxu0 %v1367
        %v1453 = vpop.f32.mrb[0].mxu0
        %v1454 = vadd.f32 0.0, %v1453
        %v1455 = vpop.f32.mrb[0].mxu0
        %1456 = vmatprep.mubr.f32.mxu0 0.0
        %1457 = vmatmul.mubr.f32.gmra.mrb[0].mxu0 %v1368
        %v1458 = vpop.f32.mrb[0].mxu0
        %v1459 = vadd.f32 0.0, %v1458
        %v1460 = vpop.f32.mrb[0].mxu0
        %1461 = vmatprep.mubr.f32.mxu0 0.0
        %1462 = vmatmul.mubr.f32.gmra.mrb[0].mxu0 %v1369
        %v1463 = vpop.f32.mrb[0].mxu0
        %v1464 = vadd.f32 0.0, %v1463
        %v1465 = vpop.f32.mrb[0].mxu0
        %1466 = vmatprep.mubr.f32.mxu0 0.0
        %1467 = vmatmul.mubr.f32.gmra.mrb[0].mxu0 %v1370
        %v1468 = vpop.f32.mrb[0].mxu0
        %v1469 = vadd.f32 0.0, %v1468
        %v1470 = vpop.f32.mrb[0].mxu0
        %1471 = vmatprep.mubr.f32.mxu0 0.0
        %1472 = vmatmul.mubr.f32.gmra.mrb[0].mxu0 %v1371
        %v1473 = vpop.f32.mrb[0].mxu0
        %v1474 = vadd.f32 0.0, %v1473
        %v1475 = vpop.f32.mrb[0].mxu0
        %1476 = vdwg.mxu0
        %v1477 = vld [vmem:[#allocation17] sm:$0xff]
        %v1478 = vld [vmem:[#allocation17 + $0x8] sm:$0xff]
        %v1479 = vld [vmem:[#allocation17 + $0x10] sm:$0xff]
        %v1480 = vld [vmem:[#allocation17 + $0x18] sm:$0xff]
        %1481 = vrot.lane.b32.xlu0 %v778, 96
        %v1482 = vpop.permute.xlu0 %1481
        %1483 = vrot.lane.b32.xlu0 %v779, 96
        %v1484 = vpop.permute.xlu0 %1483
        %1485 = vrot.lane.b32.xlu0 %v780, 96
        %v1486 = vpop.permute.xlu0 %1485
        %1487 = vrot.lane.b32.xlu0 %v781, 96
        %v1488 = vpop.permute.xlu0 %1487
        %1489 = vrot.lane.b32.xlu0 %v782, 96
        %v1490 = vpop.permute.xlu0 %1489
        %1491 = vrot.lane.b32.xlu0 %v783, 96
        %v1492 = vpop.permute.xlu0 %1491
        %1493 = vrot.lane.b32.xlu0 %v784, 96
        %v1494 = vpop.permute.xlu0 %1493
        %1495 = vrot.lane.b32.xlu0 %v785, 96
        %v1496 = vpop.permute.xlu0 %1495
        %1497 = vrot.lane.b32.xlu0 %v876, 96
        %v1498 = vpop.permute.xlu0 %1497
        %1499 = vrot.lane.b32.xlu0 %v881, 96
        %v1500 = vpop.permute.xlu0 %1499
        %1501 = vrot.lane.b32.xlu0 %v886, 96
        %v1502 = vpop.permute.xlu0 %1501
        %1503 = vrot.lane.b32.xlu0 %v891, 96
        %v1504 = vpop.permute.xlu0 %1503
        %1505 = vrot.lane.b32.xlu0 %v896, 96
        %v1506 = vpop.permute.xlu0 %1505
        %1507 = vrot.lane.b32.xlu0 %v901, 96
        %v1508 = vpop.permute.xlu0 %1507
        %1509 = vrot.lane.b32.xlu0 %v906, 96
        %v1510 = vpop.permute.xlu0 %1509
        %1511 = vrot.lane.b32.xlu0 %v911, 96
        %v1512 = vpop.permute.xlu0 %1511
        %1513 = vrot.lane.b32.xlu0 %v916, 96
        %v1514 = vpop.permute.xlu0 %1513
        %1515 = vrot.lane.b32.xlu0 %v921, 96
        %v1516 = vpop.permute.xlu0 %1515
        %1517 = vrot.lane.b32.xlu0 %v926, 96
        %v1518 = vpop.permute.xlu0 %1517
        %1519 = vrot.lane.b32.xlu0 %v931, 96
        %v1520 = vpop.permute.xlu0 %1519
        %1521 = vrot.lane.b32.xlu0 %v936, 96
        %v1522 = vpop.permute.xlu0 %1521
        %1523 = vrot.lane.b32.xlu0 %v941, 96
        %v1524 = vpop.permute.xlu0 %1523
        %1525 = vrot.lane.b32.xlu0 %v946, 96
        %v1526 = vpop.permute.xlu0 %1525
        %1527 = vrot.lane.b32.xlu0 %v951, 96
        %v1528 = vpop.permute.xlu0 %1527
        %v1529 = vsel %vm1122, %v1482, 0
        %v1531 = vsel %vm1122, %v1484, 0
        %v1533 = vsel %vm1122, %v1486, 0
        %v1535 = vsel %vm1122, %v1488, 0
        %v1537 = vsel %vm1122, %v1490, 0
        %v1539 = vsel %vm1122, %v1492, 0
        %v1541 = vsel %vm1122, %v1494, 0
        %v1543 = vsel %vm1122, %v1496, 0
        %v1545 = vsel %vm1122, %v1498, 0
        %v1547 = vsel %vm1122, %v1500, 0
        %v1549 = vsel %vm1122, %v1502, 0
        %v1551 = vsel %vm1122, %v1504, 0
        %v1553 = vsel %vm1122, %v1506, 0
        %v1555 = vsel %vm1122, %v1508, 0
        %v1557 = vsel %vm1122, %v1510, 0
        %v1559 = vsel %vm1122, %v1512, 0
        %v1561 = vsel %vm1122, %v1514, 0
        %v1563 = vsel %vm1122, %v1516, 0
        %v1565 = vsel %vm1122, %v1518, 0
        %v1567 = vsel %vm1122, %v1520, 0
        %v1569 = vsel %vm1122, %v1522, 0
        %v1571 = vsel %vm1122, %v1524, 0
        %v1573 = vsel %vm1122, %v1526, 0
        %v1575 = vsel %vm1122, %v1528, 0
        %1577 = vmatprep.subr.mxu0 0.0
        %1578 = vmatpush1.xpose.msra.mxu0 %v1545
        %1579 = vmatprep.subr.mxu0 0.0
        %1580 = vmatpush1.xpose.msra.mxu0 %v1547
        %1581 = vmatprep.subr.mxu0 0.0
        %1582 = vmatpush1.xpose.msra.mxu0 %v1549
        %1583 = vmatprep.subr.mxu0 0.0
        %1584 = vmatpush1.xpose.msra.mxu0 %v1551
        %1585 = vmatprep.subr.mxu0 0.0
        %1586 = vmatpush1.xpose.msra.mxu0 %v1553
        %1587 = vmatprep.subr.mxu0 0.0
        %1588 = vmatpush1.xpose.msra.mxu0 %v1555
        %1589 = vmatprep.subr.mxu0 0.0
        %1590 = vmatpush1.xpose.msra.mxu0 %v1557
        %1591 = vmatprep.subr.mxu0 0.0
        %1592 = vmatpush1.xpose.msra.mxu0 %v1559
        %1593 = vmatprep.subr.mxu0 0.0
        %1594 = vmatpush1.xpose.msra.mxu0 %v1561
        %1595 = vmatprep.subr.mxu0 0.0
        %1596 = vmatpush1.xpose.msra.mxu0 %v1563
        %1597 = vmatprep.subr.mxu0 0.0
        %1598 = vmatpush1.xpose.msra.mxu0 %v1565
        %1599 = vmatprep.subr.mxu0 0.0
        %1600 = vmatpush1.xpose.msra.mxu0 %v1567
        %1601 = vmatprep.subr.mxu0 0.0
        %1602 = vmatpush1.xpose.msra.mxu0 %v1569
        %1603 = vmatprep.subr.mxu0 0.0
        %1604 = vmatpush1.xpose.msra.mxu0 %v1571
        %1605 = vmatprep.subr.mxu0 0.0
        %1606 = vmatpush1.xpose.msra.mxu0 %v1573
        %1607 = vmatprep.subr.mxu0 0.0
        %1608 = vmatpush1.xpose.msra.mxu0 %v1575
        %1609 = vmatprep.subr.mxu0 0.0
        %1610 = vmatpush1.xpose.msra.mxu0 0.0
        %1611 = vmatprep.subr.mxu0 0.0
        %1612 = vmatpush1.xpose.msra.mxu0 0.0
        %1613 = vmatprep.subr.mxu0 0.0
        %1614 = vmatpush1.xpose.msra.mxu0 0.0
        %1615 = vmatprep.subr.mxu0 0.0
        %1616 = vmatpush1.xpose.msra.mxu0 0.0
        %1617 = vmatprep.subr.mxu0 0.0
        %1618 = vmatpush1.xpose.msra.mxu0 0.0
        %1619 = vmatprep.subr.mxu0 0.0
        %1620 = vmatpush1.xpose.msra.mxu0 0.0
        %1621 = vmatprep.subr.mxu0 0.0
        %1622 = vmatpush1.xpose.msra.mxu0 0.0
        %1623 = vmatprep.subr.mxu0 0.0
        %1624 = vmatpush1.xpose.msra.mxu0 0.0
        %1625 = vmatprep.subr.mxu0 0.0
        %1626 = vmatpush1.xpose.msra.mxu0 0.0
        %1627 = vmatprep.subr.mxu0 0.0
        %1628 = vmatpush1.xpose.msra.mxu0 0.0
        %1629 = vmatprep.subr.mxu0 0.0
        %1630 = vmatpush1.xpose.msra.mxu0 0.0
        %1631 = vmatprep.subr.mxu0 0.0
        %1632 = vmatpush1.xpose.msra.mxu0 0.0
        %1633 = vmatprep.subr.mxu0 0.0
        %1634 = vmatpush1.xpose.msra.mxu0 0.0
        %1635 = vmatprep.subr.mxu0 0.0
        %1636 = vmatpush1.xpose.msra.mxu0 0.0
        %1637 = vmatprep.subr.mxu0 0.0
        %1638 = vmatpush1.xpose.msra.mxu0 0.0
        %1639 = vmatprep.subr.mxu0 0.0
        %1640 = vmatpush1.xpose.msra.mxu0 0.0
        %1641 = vmatprep.mubr.f32.mxu0 0.0
        %1642 = vmatmul.mubr.f32.gmra.mrb[0].mxu0 %v1529
        %v1643 = vpop.f32.mrb[0].mxu0
        %v1644 = vadd.f32 0.0, %v1643
        %v1645 = vpop.f32.mrb[0].mxu0
        %1646 = vmatprep.mubr.f32.mxu0 0.0
        %1647 = vmatmul.mubr.f32.gmra.mrb[0].mxu0 %v1531
        %v1648 = vpop.f32.mrb[0].mxu0
        %v1649 = vadd.f32 0.0, %v1648
        %v1650 = vpop.f32.mrb[0].mxu0
        %1651 = vmatprep.mubr.f32.mxu0 0.0
        %1652 = vmatmul.mubr.f32.gmra.mrb[0].mxu0 %v1533
        %v1653 = vpop.f32.mrb[0].mxu0
        %v1654 = vadd.f32 0.0, %v1653
        %v1655 = vpop.f32.mrb[0].mxu0
        %1656 = vmatprep.mubr.f32.mxu0 0.0
        %1657 = vmatmul.mubr.f32.gmra.mrb[0].mxu0 %v1535
        %v1658 = vpop.f32.mrb[0].mxu0
        %v1659 = vadd.f32 0.0, %v1658
        %v1660 = vpop.f32.mrb[0].mxu0
        %1661 = vmatprep.mubr.f32.mxu0 0.0
        %1662 = vmatmul.mubr.f32.gmra.mrb[0].mxu0 %v1537
        %v1663 = vpop.f32.mrb[0].mxu0
        %v1664 = vadd.f32 0.0, %v1663
        %v1665 = vpop.f32.mrb[0].mxu0
        %1666 = vmatprep.mubr.f32.mxu0 0.0
        %1667 = vmatmul.mubr.f32.gmra.mrb[0].mxu0 %v1539
        %v1668 = vpop.f32.mrb[0].mxu0
        %v1669 = vadd.f32 0.0, %v1668
        %v1670 = vpop.f32.mrb[0].mxu0
        %1671 = vmatprep.mubr.f32.mxu0 0.0
        %1672 = vmatmul.mubr.f32.gmra.mrb[0].mxu0 %v1541
        %v1673 = vpop.f32.mrb[0].mxu0
        %v1674 = vadd.f32 0.0, %v1673
        %v1675 = vpop.f32.mrb[0].mxu0
        %1676 = vmatprep.mubr.f32.mxu0 0.0
        %1677 = vmatmul.mubr.f32.gmra.mrb[0].mxu0 %v1543
        %v1678 = vpop.f32.mrb[0].mxu0
        %v1679 = vadd.f32 0.0, %v1678
        %v1680 = vpop.f32.mrb[0].mxu0
        %1681 = vdwg.mxu0
        %1682 = vmax.xlane.f32.xlu0 %v1644
        %v1683 = vpop.xlane.xlu0 %1682
        %1684 = vmax.xlane.f32.xlu0 %v1649
        %v1685 = vpop.xlane.xlu0 %1684
        %1686 = vmax.xlane.f32.xlu0 %v1654
        %v1687 = vpop.xlane.xlu0 %1686
        %1688 = vmax.xlane.f32.xlu0 %v1659
        %v1689 = vpop.xlane.xlu0 %1688
        %1690 = vmax.xlane.f32.xlu0 %v1664
        %v1691 = vpop.xlane.xlu0 %1690
        %1692 = vmax.xlane.f32.xlu0 %v1669
        %v1693 = vpop.xlane.xlu0 %1692
        %1694 = vmax.xlane.f32.xlu0 %v1674
        %v1695 = vpop.xlane.xlu0 %1694
        %1696 = vmax.xlane.f32.xlu0 %v1679
        %v1697 = vpop.xlane.xlu0 %1696
        %v1698 = vsub.f32 %v1644, %v1683
        %v1699 = vsub.f32 %v1649, %v1685
        %v1700 = vsub.f32 %v1654, %v1687
        %v1701 = vsub.f32 %v1659, %v1689
        %v1702 = vsub.f32 %v1664, %v1691
        %v1703 = vsub.f32 %v1669, %v1693
        %v1704 = vsub.f32 %v1674, %v1695
        %v1705 = vsub.f32 %v1679, %v1697
        %v1706 = vmul.f32 %v1698, 1.442695
        %v1707 = vpow.pop %v1706
        %v1708 = vmul.f32 %v1699, 1.442695
        %v1709 = vpow.pop %v1708
        %v1710 = vmul.f32 %v1700, 1.442695
        %v1711 = vpow.pop %v1710
        %v1712 = vmul.f32 %v1701, 1.442695
        %v1713 = vpow.pop %v1712
        %v1714 = vmul.f32 %v1702, 1.442695
        %v1715 = vpow.pop %v1714
        %v1716 = vmul.f32 %v1703, 1.442695
        %v1717 = vpow.pop %v1716
        %v1718 = vmul.f32 %v1704, 1.442695
        %v1719 = vpow.pop %v1718
        %v1720 = vmul.f32 %v1705, 1.442695
        %v1721 = vpow.pop %v1720
        %1722 = vadd.xlane.f32.xlu0 %v1707
        %v1723 = vpop.xlane.xlu0 %1722
        %1724 = vadd.xlane.f32.xlu0 %v1709
        %v1725 = vpop.xlane.xlu0 %1724
        %1726 = vadd.xlane.f32.xlu0 %v1711
        %v1727 = vpop.xlane.xlu0 %1726
        %1728 = vadd.xlane.f32.xlu0 %v1713
        %v1729 = vpop.xlane.xlu0 %1728
        %1730 = vadd.xlane.f32.xlu0 %v1715
        %v1731 = vpop.xlane.xlu0 %1730
        %1732 = vadd.xlane.f32.xlu0 %v1717
        %v1733 = vpop.xlane.xlu0 %1732
        %1734 = vadd.xlane.f32.xlu0 %v1719
        %v1735 = vpop.xlane.xlu0 %1734
        %1736 = vadd.xlane.f32.xlu0 %v1721
        %v1737 = vpop.xlane.xlu0 %1736
        %v1738 = vrcp.pop %v1723
        %v1739 = vrcp.pop %v1725
        %v1740 = vrcp.pop %v1727
        %v1741 = vrcp.pop %v1729
        %v1742 = vrcp.pop %v1731
        %v1743 = vrcp.pop %v1733
        %v1744 = vrcp.pop %v1735
        %v1745 = vrcp.pop %v1737
        %v1746 = vmul.f32 %v1707, %v1738
        %v1747 = vmul.f32 %v1709, %v1739
        %v1748 = vmul.f32 %v1711, %v1740
        %v1749 = vmul.f32 %v1713, %v1741
        %v1750 = vmul.f32 %v1715, %v1742
        %v1751 = vmul.f32 %v1717, %v1743
        %v1752 = vmul.f32 %v1719, %v1744
        %v1753 = vmul.f32 %v1721, %v1745
        %1770 = vrot.lane.b32.xlu0 %v1044, 96
        %v1771 = vpop.permute.xlu0 %1770
        %1772 = vrot.lane.b32.xlu0 %v1049, 96
        %v1773 = vpop.permute.xlu0 %1772
        %1774 = vrot.lane.b32.xlu0 %v1054, 96
        %v1775 = vpop.permute.xlu0 %1774
        %1776 = vrot.lane.b32.xlu0 %v1059, 96
        %v1777 = vpop.permute.xlu0 %1776
        %1778 = vrot.lane.b32.xlu0 %v1064, 96
        %v1779 = vpop.permute.xlu0 %1778
        %1780 = vrot.lane.b32.xlu0 %v1069, 96
        %v1781 = vpop.permute.xlu0 %1780
        %1782 = vrot.lane.b32.xlu0 %v1074, 96
        %v1783 = vpop.permute.xlu0 %1782
        %1784 = vrot.lane.b32.xlu0 %v1079, 96
        %v1785 = vpop.permute.xlu0 %1784
        %1786 = vrot.lane.b32.xlu0 %v1084, 96
        %v1787 = vpop.permute.xlu0 %1786
        %1788 = vrot.lane.b32.xlu0 %v1089, 96
        %v1789 = vpop.permute.xlu0 %1788
        %1790 = vrot.lane.b32.xlu0 %v1094, 96
        %v1791 = vpop.permute.xlu0 %1790
        %1792 = vrot.lane.b32.xlu0 %v1099, 96
        %v1793 = vpop.permute.xlu0 %1792
        %1794 = vrot.lane.b32.xlu0 %v1104, 96
        %v1795 = vpop.permute.xlu0 %1794
        %1796 = vrot.lane.b32.xlu0 %v1109, 96
        %v1797 = vpop.permute.xlu0 %1796
        %1798 = vrot.lane.b32.xlu0 %v1114, 96
        %v1799 = vpop.permute.xlu0 %1798
        %1800 = vrot.lane.b32.xlu0 %v1119, 96
        %v1801 = vpop.permute.xlu0 %1800
        %1818 = vmatprep.subr.mxu0 0.0
        %1819 = vmatpush1.msra.mxu0 %v1771
        %1820 = vmatprep.subr.mxu0 0.0
        %1821 = vmatpush1.msra.mxu0 %v1773
        %1822 = vmatprep.subr.mxu0 0.0
        %1823 = vmatpush1.msra.mxu0 %v1775
        %1824 = vmatprep.subr.mxu0 0.0
        %1825 = vmatpush1.msra.mxu0 %v1777
        %1826 = vmatprep.subr.mxu0 0.0
        %1827 = vmatpush1.msra.mxu0 %v1779
        %1828 = vmatprep.subr.mxu0 0.0
        %1829 = vmatpush1.msra.mxu0 %v1781
        %1830 = vmatprep.subr.mxu0 0.0
        %1831 = vmatpush1.msra.mxu0 %v1783
        %1832 = vmatprep.subr.mxu0 0.0
        %1833 = vmatpush1.msra.mxu0 %v1785
        %1834 = vmatprep.subr.mxu0 0.0
        %1835 = vmatpush1.msra.mxu0 %v1787
        %1836 = vmatprep.subr.mxu0 0.0
        %1837 = vmatpush1.msra.mxu0 %v1789
        %1838 = vmatprep.subr.mxu0 0.0
        %1839 = vmatpush1.msra.mxu0 %v1791
        %1840 = vmatprep.subr.mxu0 0.0
        %1841 = vmatpush1.msra.mxu0 %v1793
        %1842 = vmatprep.subr.mxu0 0.0
        %1843 = vmatpush1.msra.mxu0 %v1795
        %1844 = vmatprep.subr.mxu0 0.0
        %1845 = vmatpush1.msra.mxu0 %v1797
        %1846 = vmatprep.subr.mxu0 0.0
        %1847 = vmatpush1.msra.mxu0 %v1799
        %1848 = vmatprep.subr.mxu0 0.0
        %1849 = vmatpush1.msra.mxu0 %v1801
        %1850 = vmatprep.subr.mxu0 0.0
        %1851 = vmatpush1.msra.mxu0 0.0
        %1852 = vmatprep.subr.mxu0 0.0
        %1853 = vmatpush1.msra.mxu0 0.0
        %1854 = vmatprep.subr.mxu0 0.0
        %1855 = vmatpush1.msra.mxu0 0.0
        %1856 = vmatprep.subr.mxu0 0.0
        %1857 = vmatpush1.msra.mxu0 0.0
        %1858 = vmatprep.subr.mxu0 0.0
        %1859 = vmatpush1.msra.mxu0 0.0
        %1860 = vmatprep.subr.mxu0 0.0
        %1861 = vmatpush1.msra.mxu0 0.0
        %1862 = vmatprep.subr.mxu0 0.0
        %1863 = vmatpush1.msra.mxu0 0.0
        %1864 = vmatprep.subr.mxu0 0.0
        %1865 = vmatpush1.msra.mxu0 0.0
        %1866 = vmatprep.subr.mxu0 0.0
        %1867 = vmatpush1.msra.mxu0 0.0
        %1868 = vmatprep.subr.mxu0 0.0
        %1869 = vmatpush1.msra.mxu0 0.0
        %1870 = vmatprep.subr.mxu0 0.0
        %1871 = vmatpush1.msra.mxu0 0.0
        %1872 = vmatprep.subr.mxu0 0.0
        %1873 = vmatpush1.msra.mxu0 0.0
        %1874 = vmatprep.subr.mxu0 0.0
        %1875 = vmatpush1.msra.mxu0 0.0
        %1876 = vmatprep.subr.mxu0 0.0
        %1877 = vmatpush1.msra.mxu0 0.0
        %1878 = vmatprep.subr.mxu0 0.0
        %1879 = vmatpush1.msra.mxu0 0.0
        %1880 = vmatprep.subr.mxu0 0.0
        %1881 = vmatpush1.msra.mxu0 0.0
        %1882 = vmatprep.mubr.f32.mxu0 0.0
        %1883 = vmatmul.mubr.f32.gmra.mrb[0].mxu0 %v1746
        %v1884 = vpop.f32.mrb[0].mxu0
        %v1885 = vadd.f32 0.0, %v1884
        %v1886 = vpop.f32.mrb[0].mxu0
        %1887 = vmatprep.mubr.f32.mxu0 0.0
        %1888 = vmatmul.mubr.f32.gmra.mrb[0].mxu0 %v1747
        %v1889 = vpop.f32.mrb[0].mxu0
        %v1890 = vadd.f32 0.0, %v1889
        %v1891 = vpop.f32.mrb[0].mxu0
        %1892 = vmatprep.mubr.f32.mxu0 0.0
        %1893 = vmatmul.mubr.f32.gmra.mrb[0].mxu0 %v1748
        %v1894 = vpop.f32.mrb[0].mxu0
        %v1895 = vadd.f32 0.0, %v1894
        %v1896 = vpop.f32.mrb[0].mxu0
        %1897 = vmatprep.mubr.f32.mxu0 0.0
        %1898 = vmatmul.mubr.f32.gmra.mrb[0].mxu0 %v1749
        %v1899 = vpop.f32.mrb[0].mxu0
        %v1900 = vadd.f32 0.0, %v1899
        %v1901 = vpop.f32.mrb[0].mxu0
        %1902 = vmatprep.mubr.f32.mxu0 0.0
        %1903 = vmatmul.mubr.f32.gmra.mrb[0].mxu0 %v1750
        %v1904 = vpop.f32.mrb[0].mxu0
        %v1905 = vadd.f32 0.0, %v1904
        %v1906 = vpop.f32.mrb[0].mxu0
        %1907 = vmatprep.mubr.f32.mxu0 0.0
        %1908 = vmatmul.mubr.f32.gmra.mrb[0].mxu0 %v1751
        %v1909 = vpop.f32.mrb[0].mxu0
        %v1910 = vadd.f32 0.0, %v1909
        %v1911 = vpop.f32.mrb[0].mxu0
        %1912 = vmatprep.mubr.f32.mxu0 0.0
        %1913 = vmatmul.mubr.f32.gmra.mrb[0].mxu0 %v1752
        %v1914 = vpop.f32.mrb[0].mxu0
        %v1915 = vadd.f32 0.0, %v1914
        %v1916 = vpop.f32.mrb[0].mxu0
        %1917 = vmatprep.mubr.f32.mxu0 0.0
        %1918 = vmatmul.mubr.f32.gmra.mrb[0].mxu0 %v1753
        %v1919 = vpop.f32.mrb[0].mxu0
        %v1920 = vadd.f32 0.0, %v1919
        %v1921 = vpop.f32.mrb[0].mxu0
        %1922 = vdwg.mxu0
        %v1923 = vld [vmem:[#allocation17 + $0x20] sm:$0xff]
        %v1924 = vld [vmem:[#allocation17 + $0x28] sm:$0xff]
        %v1925 = vld [vmem:[#allocation17 + $0x30] sm:$0xff]
        %v1926 = vld [vmem:[#allocation17 + $0x38] sm:$0xff]
        %v1928 = vsel %vm1122, %v1885, 0
        %v1931 = vsel %vm1122, %v1890, 0
        %v1934 = vsel %vm1122, %v1895, 0
        %v1937 = vsel %vm1122, %v1900, 0
        %v1940 = vsel %vm1122, %v1905, 0
        %v1943 = vsel %vm1122, %v1910, 0
        %v1946 = vsel %vm1122, %v1915, 0
        %v1949 = vsel %vm1122, %v1920, 0
        %1951 = vmatprep.subr.mxu0 0.0
        %1952 = vmatpush1.msra.mxu0 %v1923
        %1953 = vmatprep.subr.mxu0 0.0
        %1954 = vmatpush1.msra.mxu0 %v1924
        %1955 = vmatprep.subr.mxu0 0.0
        %1956 = vmatpush1.msra.mxu0 %v1925
        %1957 = vmatprep.subr.mxu0 0.0
        %1958 = vmatpush1.msra.mxu0 %v1926
        %1959 = vmatprep.subr.mxu0 0.0
        %1960 = vmatpush1.msra.mxu0 0.0
        %1961 = vmatprep.subr.mxu0 0.0
        %1962 = vmatpush1.msra.mxu0 0.0
        %1963 = vmatprep.subr.mxu0 0.0
        %1964 = vmatpush1.msra.mxu0 0.0
        %1965 = vmatprep.subr.mxu0 0.0
        %1966 = vmatpush1.msra.mxu0 0.0
        %1967 = vmatprep.subr.mxu0 0.0
        %1968 = vmatpush1.msra.mxu0 0.0
        %1969 = vmatprep.subr.mxu0 0.0
        %1970 = vmatpush1.msra.mxu0 0.0
        %1971 = vmatprep.subr.mxu0 0.0
        %1972 = vmatpush1.msra.mxu0 0.0
        %1973 = vmatprep.subr.mxu0 0.0
        %1974 = vmatpush1.msra.mxu0 0.0
        %1975 = vmatprep.subr.mxu0 0.0
        %1976 = vmatpush1.msra.mxu0 0.0
        %1977 = vmatprep.subr.mxu0 0.0
        %1978 = vmatpush1.msra.mxu0 0.0
        %1979 = vmatprep.subr.mxu0 0.0
        %1980 = vmatpush1.msra.mxu0 0.0
        %1981 = vmatprep.subr.mxu0 0.0
        %1982 = vmatpush1.msra.mxu0 0.0
        %1983 = vmatprep.subr.mxu0 0.0
        %1984 = vmatpush1.msra.mxu0 0.0
        %1985 = vmatprep.subr.mxu0 0.0
        %1986 = vmatpush1.msra.mxu0 0.0
        %1987 = vmatprep.subr.mxu0 0.0
        %1988 = vmatpush1.msra.mxu0 0.0
        %1989 = vmatprep.subr.mxu0 0.0
        %1990 = vmatpush1.msra.mxu0 0.0
        %1991 = vmatprep.subr.mxu0 0.0
        %1992 = vmatpush1.msra.mxu0 0.0
        %1993 = vmatprep.subr.mxu0 0.0
        %1994 = vmatpush1.msra.mxu0 0.0
        %1995 = vmatprep.subr.mxu0 0.0
        %1996 = vmatpush1.msra.mxu0 0.0
        %1997 = vmatprep.subr.mxu0 0.0
        %1998 = vmatpush1.msra.mxu0 0.0
        %1999 = vmatprep.subr.mxu0 0.0
        %2000 = vmatpush1.msra.mxu0 0.0
        %2001 = vmatprep.subr.mxu0 0.0
        %2002 = vmatpush1.msra.mxu0 0.0
        %2003 = vmatprep.subr.mxu0 0.0
        %2004 = vmatpush1.msra.mxu0 0.0
        %2005 = vmatprep.subr.mxu0 0.0
        %2006 = vmatpush1.msra.mxu0 0.0
        %2007 = vmatprep.subr.mxu0 0.0
        %2008 = vmatpush1.msra.mxu0 0.0
        %2009 = vmatprep.subr.mxu0 0.0
        %2010 = vmatpush1.msra.mxu0 0.0
        %2011 = vmatprep.subr.mxu0 0.0
        %2012 = vmatpush1.msra.mxu0 0.0
        %2013 = vmatprep.subr.mxu0 0.0
        %2014 = vmatpush1.msra.mxu0 0.0
        %2015 = vmatprep.mubr.f32.mxu0 0.0
        %2016 = vmatmul.mubr.f32.gmra.mrb[0].mxu0 %v1928
        %v2017 = vpop.f32.mrb[0].mxu0
        %v2018 = vadd.f32 0.0, %v2017
        %v2019 = vpop.f32.mrb[0].mxu0
        %2020 = vmatprep.mubr.f32.mxu0 0.0
        %2021 = vmatmul.mubr.f32.gmra.mrb[0].mxu0 %v1931
        %v2022 = vpop.f32.mrb[0].mxu0
        %v2023 = vadd.f32 0.0, %v2022
        %v2024 = vpop.f32.mrb[0].mxu0
        %2025 = vmatprep.mubr.f32.mxu0 0.0
        %2026 = vmatmul.mubr.f32.gmra.mrb[0].mxu0 %v1934
        %v2027 = vpop.f32.mrb[0].mxu0
        %v2028 = vadd.f32 0.0, %v2027
        %v2029 = vpop.f32.mrb[0].mxu0
        %2030 = vmatprep.mubr.f32.mxu0 0.0
        %2031 = vmatmul.mubr.f32.gmra.mrb[0].mxu0 %v1937
        %v2032 = vpop.f32.mrb[0].mxu0
        %v2033 = vadd.f32 0.0, %v2032
        %v2034 = vpop.f32.mrb[0].mxu0
        %2035 = vmatprep.mubr.f32.mxu0 0.0
        %2036 = vmatmul.mubr.f32.gmra.mrb[0].mxu0 %v1940
        %v2037 = vpop.f32.mrb[0].mxu0
        %v2038 = vadd.f32 0.0, %v2037
        %v2039 = vpop.f32.mrb[0].mxu0
        %2040 = vmatprep.mubr.f32.mxu0 0.0
        %2041 = vmatmul.mubr.f32.gmra.mrb[0].mxu0 %v1943
        %v2042 = vpop.f32.mrb[0].mxu0
        %v2043 = vadd.f32 0.0, %v2042
        %v2044 = vpop.f32.mrb[0].mxu0
        %2045 = vmatprep.mubr.f32.mxu0 0.0
        %2046 = vmatmul.mubr.f32.gmra.mrb[0].mxu0 %v1946
        %v2047 = vpop.f32.mrb[0].mxu0
        %v2048 = vadd.f32 0.0, %v2047
        %v2049 = vpop.f32.mrb[0].mxu0
        %2050 = vmatprep.mubr.f32.mxu0 0.0
        %2051 = vmatmul.mubr.f32.gmra.mrb[0].mxu0 %v1949
        %v2052 = vpop.f32.mrb[0].mxu0
        %v2053 = vadd.f32 0.0, %v2052
        %v2054 = vpop.f32.mrb[0].mxu0
        %2055 = vdwg.mxu0
        %v2057 = vsel %vm1122, %v1439, 0
        %v2060 = vsel %vm1122, %v1444, 0
        %v2063 = vsel %vm1122, %v1449, 0
        %v2066 = vsel %vm1122, %v1454, 0
        %v2069 = vsel %vm1122, %v1459, 0
        %v2072 = vsel %vm1122, %v1464, 0
        %v2075 = vsel %vm1122, %v1469, 0
        %v2078 = vsel %vm1122, %v1474, 0
        %2080 = vmatprep.subr.mxu0 0.0
        %2081 = vmatpush1.msra.mxu0 %v1477
        %2082 = vmatprep.subr.mxu0 0.0
        %2083 = vmatpush1.msra.mxu0 %v1478
        %2084 = vmatprep.subr.mxu0 0.0
        %2085 = vmatpush1.msra.mxu0 %v1479
        %2086 = vmatprep.subr.mxu0 0.0
        %2087 = vmatpush1.msra.mxu0 %v1480
        %2088 = vmatprep.subr.mxu0 0.0
        %2089 = vmatpush1.msra.mxu0 0.0
        %2090 = vmatprep.subr.mxu0 0.0
        %2091 = vmatpush1.msra.mxu0 0.0
        %2092 = vmatprep.subr.mxu0 0.0
        %2093 = vmatpush1.msra.mxu0 0.0
        %2094 = vmatprep.subr.mxu0 0.0
        %2095 = vmatpush1.msra.mxu0 0.0
        %2096 = vmatprep.subr.mxu0 0.0
        %2097 = vmatpush1.msra.mxu0 0.0
        %2098 = vmatprep.subr.mxu0 0.0
        %2099 = vmatpush1.msra.mxu0 0.0
        %2100 = vmatprep.subr.mxu0 0.0
        %2101 = vmatpush1.msra.mxu0 0.0
        %2102 = vmatprep.subr.mxu0 0.0
        %2103 = vmatpush1.msra.mxu0 0.0
        %2104 = vmatprep.subr.mxu0 0.0
        %2105 = vmatpush1.msra.mxu0 0.0
        %2106 = vmatprep.subr.mxu0 0.0
        %2107 = vmatpush1.msra.mxu0 0.0
        %2108 = vmatprep.subr.mxu0 0.0
        %2109 = vmatpush1.msra.mxu0 0.0
        %2110 = vmatprep.subr.mxu0 0.0
        %2111 = vmatpush1.msra.mxu0 0.0
        %2112 = vmatprep.subr.mxu0 0.0
        %2113 = vmatpush1.msra.mxu0 0.0
        %2114 = vmatprep.subr.mxu0 0.0
        %2115 = vmatpush1.msra.mxu0 0.0
        %2116 = vmatprep.subr.mxu0 0.0
        %2117 = vmatpush1.msra.mxu0 0.0
        %2118 = vmatprep.subr.mxu0 0.0
        %2119 = vmatpush1.msra.mxu0 0.0
        %2120 = vmatprep.subr.mxu0 0.0
        %2121 = vmatpush1.msra.mxu0 0.0
        %2122 = vmatprep.subr.mxu0 0.0
        %2123 = vmatpush1.msra.mxu0 0.0
        %2124 = vmatprep.subr.mxu0 0.0
        %2125 = vmatpush1.msra.mxu0 0.0
        %2126 = vmatprep.subr.mxu0 0.0
        %2127 = vmatpush1.msra.mxu0 0.0
        %2128 = vmatprep.subr.mxu0 0.0
        %2129 = vmatpush1.msra.mxu0 0.0
        %2130 = vmatprep.subr.mxu0 0.0
        %2131 = vmatpush1.msra.mxu0 0.0
        %2132 = vmatprep.subr.mxu0 0.0
        %2133 = vmatpush1.msra.mxu0 0.0
        %2134 = vmatprep.subr.mxu0 0.0
        %2135 = vmatpush1.msra.mxu0 0.0
        %2136 = vmatprep.subr.mxu0 0.0
        %2137 = vmatpush1.msra.mxu0 0.0
        %2138 = vmatprep.subr.mxu0 0.0
        %2139 = vmatpush1.msra.mxu0 0.0
        %2140 = vmatprep.subr.mxu0 0.0
        %2141 = vmatpush1.msra.mxu0 0.0
        %2142 = vmatprep.subr.mxu0 0.0
        %2143 = vmatpush1.msra.mxu0 0.0
        %2144 = vmatprep.mubr.f32.mxu0 0.0
        %2145 = vmatmul.mubr.f32.gmra.mrb[0].mxu0 %v2057
        %v2146 = vpop.f32.mrb[0].mxu0
        %v2147 = vadd.f32 %v2018, %v2146
        %v2148 = vpop.f32.mrb[0].mxu0
        %2149 = vmatprep.mubr.f32.mxu0 0.0
        %2150 = vmatmul.mubr.f32.gmra.mrb[0].mxu0 %v2060
        %v2151 = vpop.f32.mrb[0].mxu0
        %v2152 = vadd.f32 %v2023, %v2151
        %v2153 = vpop.f32.mrb[0].mxu0
        %2154 = vmatprep.mubr.f32.mxu0 0.0
        %2155 = vmatmul.mubr.f32.gmra.mrb[0].mxu0 %v2063
        %v2156 = vpop.f32.mrb[0].mxu0
        %v2157 = vadd.f32 %v2028, %v2156
        %v2158 = vpop.f32.mrb[0].mxu0
        %2159 = vmatprep.mubr.f32.mxu0 0.0
        %2160 = vmatmul.mubr.f32.gmra.mrb[0].mxu0 %v2066
        %v2161 = vpop.f32.mrb[0].mxu0
        %v2162 = vadd.f32 %v2033, %v2161
        %v2163 = vpop.f32.mrb[0].mxu0
        %2164 = vmatprep.mubr.f32.mxu0 0.0
        %2165 = vmatmul.mubr.f32.gmra.mrb[0].mxu0 %v2069
        %v2166 = vpop.f32.mrb[0].mxu0
        %v2167 = vadd.f32 %v2038, %v2166
        %v2168 = vpop.f32.mrb[0].mxu0
        %2169 = vmatprep.mubr.f32.mxu0 0.0
        %2170 = vmatmul.mubr.f32.gmra.mrb[0].mxu0 %v2072
        %v2171 = vpop.f32.mrb[0].mxu0
        %v2172 = vadd.f32 %v2043, %v2171
        %v2173 = vpop.f32.mrb[0].mxu0
        %2174 = vmatprep.mubr.f32.mxu0 0.0
        %2175 = vmatmul.mubr.f32.gmra.mrb[0].mxu0 %v2075
        %v2176 = vpop.f32.mrb[0].mxu0
        %v2177 = vadd.f32 %v2048, %v2176
        %v2178 = vpop.f32.mrb[0].mxu0
        %2179 = vmatprep.mubr.f32.mxu0 0.0
        %2180 = vmatmul.mubr.f32.gmra.mrb[0].mxu0 %v2078
        %v2181 = vpop.f32.mrb[0].mxu0
        %v2182 = vadd.f32 %v2053, %v2181
        %v2183 = vpop.f32.mrb[0].mxu0
        %2184 = vdwg.mxu0
        %2185 = vrot.lane.b32.xlu0 %v778, 64
        %v2186 = vpop.permute.xlu0 %2185
        %2187 = vrot.lane.b32.xlu0 %v779, 64
        %v2188 = vpop.permute.xlu0 %2187
        %2189 = vrot.lane.b32.xlu0 %v780, 64
        %v2190 = vpop.permute.xlu0 %2189
        %2191 = vrot.lane.b32.xlu0 %v781, 64
        %v2192 = vpop.permute.xlu0 %2191
        %2193 = vrot.lane.b32.xlu0 %v782, 64
        %v2194 = vpop.permute.xlu0 %2193
        %2195 = vrot.lane.b32.xlu0 %v783, 64
        %v2196 = vpop.permute.xlu0 %2195
        %2197 = vrot.lane.b32.xlu0 %v784, 64
        %v2198 = vpop.permute.xlu0 %2197
        %2199 = vrot.lane.b32.xlu0 %v785, 64
        %v2200 = vpop.permute.xlu0 %2199
        %2201 = vrot.lane.b32.xlu0 %v876, 64
        %v2202 = vpop.permute.xlu0 %2201
        %2203 = vrot.lane.b32.xlu0 %v881, 64
        %v2204 = vpop.permute.xlu0 %2203
        %2205 = vrot.lane.b32.xlu0 %v886, 64
        %v2206 = vpop.permute.xlu0 %2205
        %2207 = vrot.lane.b32.xlu0 %v891, 64
        %v2208 = vpop.permute.xlu0 %2207
        %2209 = vrot.lane.b32.xlu0 %v896, 64
        %v2210 = vpop.permute.xlu0 %2209
        %2211 = vrot.lane.b32.xlu0 %v901, 64
        %v2212 = vpop.permute.xlu0 %2211
        %2213 = vrot.lane.b32.xlu0 %v906, 64
        %v2214 = vpop.permute.xlu0 %2213
        %2215 = vrot.lane.b32.xlu0 %v911, 64
        %v2216 = vpop.permute.xlu0 %2215
        %2217 = vrot.lane.b32.xlu0 %v916, 64
        %v2218 = vpop.permute.xlu0 %2217
        %2219 = vrot.lane.b32.xlu0 %v921, 64
        %v2220 = vpop.permute.xlu0 %2219
        %2221 = vrot.lane.b32.xlu0 %v926, 64
        %v2222 = vpop.permute.xlu0 %2221
        %2223 = vrot.lane.b32.xlu0 %v931, 64
        %v2224 = vpop.permute.xlu0 %2223
        %2225 = vrot.lane.b32.xlu0 %v936, 64
        %v2226 = vpop.permute.xlu0 %2225
        %2227 = vrot.lane.b32.xlu0 %v941, 64
        %v2228 = vpop.permute.xlu0 %2227
        %2229 = vrot.lane.b32.xlu0 %v946, 64
        %v2230 = vpop.permute.xlu0 %2229
        %2231 = vrot.lane.b32.xlu0 %v951, 64
        %v2232 = vpop.permute.xlu0 %2231
        %v2233 = vsel %vm1122, %v2186, 0
        %v2235 = vsel %vm1122, %v2188, 0
        %v2237 = vsel %vm1122, %v2190, 0
        %v2239 = vsel %vm1122, %v2192, 0
        %v2241 = vsel %vm1122, %v2194, 0
        %v2243 = vsel %vm1122, %v2196, 0
        %v2245 = vsel %vm1122, %v2198, 0
        %v2247 = vsel %vm1122, %v2200, 0
        %v2249 = vsel %vm1122, %v2202, 0
        %v2251 = vsel %vm1122, %v2204, 0
        %v2253 = vsel %vm1122, %v2206, 0
        %v2255 = vsel %vm1122, %v2208, 0
        %v2257 = vsel %vm1122, %v2210, 0
        %v2259 = vsel %vm1122, %v2212, 0
        %v2261 = vsel %vm1122, %v2214, 0
        %v2263 = vsel %vm1122, %v2216, 0
        %v2265 = vsel %vm1122, %v2218, 0
        %v2267 = vsel %vm1122, %v2220, 0
        %v2269 = vsel %vm1122, %v2222, 0
        %v2271 = vsel %vm1122, %v2224, 0
        %v2273 = vsel %vm1122, %v2226, 0
        %v2275 = vsel %vm1122, %v2228, 0
        %v2277 = vsel %vm1122, %v2230, 0
        %v2279 = vsel %vm1122, %v2232, 0
        %2281 = vmatprep.subr.mxu0 0.0
        %2282 = vmatpush1.xpose.msra.mxu0 %v2249
        %2283 = vmatprep.subr.mxu0 0.0
        %2284 = vmatpush1.xpose.msra.mxu0 %v2251
        %2285 = vmatprep.subr.mxu0 0.0
        %2286 = vmatpush1.xpose.msra.mxu0 %v2253
        %2287 = vmatprep.subr.mxu0 0.0
        %2288 = vmatpush1.xpose.msra.mxu0 %v2255
        %2289 = vmatprep.subr.mxu0 0.0
        %2290 = vmatpush1.xpose.msra.mxu0 %v2257
        %2291 = vmatprep.subr.mxu0 0.0
        %2292 = vmatpush1.xpose.msra.mxu0 %v2259
        %2293 = vmatprep.subr.mxu0 0.0
        %2294 = vmatpush1.xpose.msra.mxu0 %v2261
        %2295 = vmatprep.subr.mxu0 0.0
        %2296 = vmatpush1.xpose.msra.mxu0 %v2263
        %2297 = vmatprep.subr.mxu0 0.0
        %2298 = vmatpush1.xpose.msra.mxu0 %v2265
        %2299 = vmatprep.subr.mxu0 0.0
        %2300 = vmatpush1.xpose.msra.mxu0 %v2267
        %2301 = vmatprep.subr.mxu0 0.0
        %2302 = vmatpush1.xpose.msra.mxu0 %v2269
        %2303 = vmatprep.subr.mxu0 0.0
        %2304 = vmatpush1.xpose.msra.mxu0 %v2271
        %2305 = vmatprep.subr.mxu0 0.0
        %2306 = vmatpush1.xpose.msra.mxu0 %v2273
        %2307 = vmatprep.subr.mxu0 0.0
        %2308 = vmatpush1.xpose.msra.mxu0 %v2275
        %2309 = vmatprep.subr.mxu0 0.0
        %2310 = vmatpush1.xpose.msra.mxu0 %v2277
        %2311 = vmatprep.subr.mxu0 0.0
        %2312 = vmatpush1.xpose.msra.mxu0 %v2279
        %2313 = vmatprep.subr.mxu0 0.0
        %2314 = vmatpush1.xpose.msra.mxu0 0.0
        %2315 = vmatprep.subr.mxu0 0.0
        %2316 = vmatpush1.xpose.msra.mxu0 0.0
        %2317 = vmatprep.subr.mxu0 0.0
        %2318 = vmatpush1.xpose.msra.mxu0 0.0
        %2319 = vmatprep.subr.mxu0 0.0
        %2320 = vmatpush1.xpose.msra.mxu0 0.0
        %2321 = vmatprep.subr.mxu0 0.0
        %2322 = vmatpush1.xpose.msra.mxu0 0.0
        %2323 = vmatprep.subr.mxu0 0.0
        %2324 = vmatpush1.xpose.msra.mxu0 0.0
        %2325 = vmatprep.subr.mxu0 0.0
        %2326 = vmatpush1.xpose.msra.mxu0 0.0
        %2327 = vmatprep.subr.mxu0 0.0
        %2328 = vmatpush1.xpose.msra.mxu0 0.0
        %2329 = vmatprep.subr.mxu0 0.0
        %2330 = vmatpush1.xpose.msra.mxu0 0.0
        %2331 = vmatprep.subr.mxu0 0.0
        %2332 = vmatpush1.xpose.msra.mxu0 0.0
        %2333 = vmatprep.subr.mxu0 0.0
        %2334 = vmatpush1.xpose.msra.mxu0 0.0
        %2335 = vmatprep.subr.mxu0 0.0
        %2336 = vmatpush1.xpose.msra.mxu0 0.0
        %2337 = vmatprep.subr.mxu0 0.0
        %2338 = vmatpush1.xpose.msra.mxu0 0.0
        %2339 = vmatprep.subr.mxu0 0.0
        %2340 = vmatpush1.xpose.msra.mxu0 0.0
        %2341 = vmatprep.subr.mxu0 0.0
        %2342 = vmatpush1.xpose.msra.mxu0 0.0
        %2343 = vmatprep.subr.mxu0 0.0
        %2344 = vmatpush1.xpose.msra.mxu0 0.0
        %2345 = vmatprep.mubr.f32.mxu0 0.0
        %2346 = vmatmul.mubr.f32.gmra.mrb[0].mxu0 %v2233
        %v2347 = vpop.f32.mrb[0].mxu0
        %v2348 = vadd.f32 0.0, %v2347
        %v2349 = vpop.f32.mrb[0].mxu0
        %2350 = vmatprep.mubr.f32.mxu0 0.0
        %2351 = vmatmul.mubr.f32.gmra.mrb[0].mxu0 %v2235
        %v2352 = vpop.f32.mrb[0].mxu0
        %v2353 = vadd.f32 0.0, %v2352
        %v2354 = vpop.f32.mrb[0].mxu0
        %2355 = vmatprep.mubr.f32.mxu0 0.0
        %2356 = vmatmul.mubr.f32.gmra.mrb[0].mxu0 %v2237
        %v2357 = vpop.f32.mrb[0].mxu0
        %v2358 = vadd.f32 0.0, %v2357
        %v2359 = vpop.f32.mrb[0].mxu0
        %2360 = vmatprep.mubr.f32.mxu0 0.0
        %2361 = vmatmul.mubr.f32.gmra.mrb[0].mxu0 %v2239
        %v2362 = vpop.f32.mrb[0].mxu0
        %v2363 = vadd.f32 0.0, %v2362
        %v2364 = vpop.f32.mrb[0].mxu0
        %2365 = vmatprep.mubr.f32.mxu0 0.0
        %2366 = vmatmul.mubr.f32.gmra.mrb[0].mxu0 %v2241
        %v2367 = vpop.f32.mrb[0].mxu0
        %v2368 = vadd.f32 0.0, %v2367
        %v2369 = vpop.f32.mrb[0].mxu0
        %2370 = vmatprep.mubr.f32.mxu0 0.0
        %2371 = vmatmul.mubr.f32.gmra.mrb[0].mxu0 %v2243
        %v2372 = vpop.f32.mrb[0].mxu0
        %v2373 = vadd.f32 0.0, %v2372
        %v2374 = vpop.f32.mrb[0].mxu0
        %2375 = vmatprep.mubr.f32.mxu0 0.0
        %2376 = vmatmul.mubr.f32.gmra.mrb[0].mxu0 %v2245
        %v2377 = vpop.f32.mrb[0].mxu0
        %v2378 = vadd.f32 0.0, %v2377
        %v2379 = vpop.f32.mrb[0].mxu0
        %2380 = vmatprep.mubr.f32.mxu0 0.0
        %2381 = vmatmul.mubr.f32.gmra.mrb[0].mxu0 %v2247
        %v2382 = vpop.f32.mrb[0].mxu0
        %v2383 = vadd.f32 0.0, %v2382
        %v2384 = vpop.f32.mrb[0].mxu0
        %2385 = vdwg.mxu0
        %2386 = vmax.xlane.f32.xlu0 %v2348
        %v2387 = vpop.xlane.xlu0 %2386
        %2388 = vmax.xlane.f32.xlu0 %v2353
        %v2389 = vpop.xlane.xlu0 %2388
        %2390 = vmax.xlane.f32.xlu0 %v2358
        %v2391 = vpop.xlane.xlu0 %2390
        %2392 = vmax.xlane.f32.xlu0 %v2363
        %v2393 = vpop.xlane.xlu0 %2392
        %2394 = vmax.xlane.f32.xlu0 %v2368
        %v2395 = vpop.xlane.xlu0 %2394
        %2396 = vmax.xlane.f32.xlu0 %v2373
        %v2397 = vpop.xlane.xlu0 %2396
        %2398 = vmax.xlane.f32.xlu0 %v2378
        %v2399 = vpop.xlane.xlu0 %2398
        %2400 = vmax.xlane.f32.xlu0 %v2383
        %v2401 = vpop.xlane.xlu0 %2400
        %v2402 = vsub.f32 %v2348, %v2387
        %v2403 = vsub.f32 %v2353, %v2389
        %v2404 = vsub.f32 %v2358, %v2391
        %v2405 = vsub.f32 %v2363, %v2393
        %v2406 = vsub.f32 %v2368, %v2395
        %v2407 = vsub.f32 %v2373, %v2397
        %v2408 = vsub.f32 %v2378, %v2399
        %v2409 = vsub.f32 %v2383, %v2401
        %v2410 = vmul.f32 %v2402, 1.442695
        %v2411 = vpow.pop %v2410
        %v2412 = vmul.f32 %v2403, 1.442695
        %v2413 = vpow.pop %v2412
        %v2414 = vmul.f32 %v2404, 1.442695
        %v2415 = vpow.pop %v2414
        %v2416 = vmul.f32 %v2405, 1.442695
        %v2417 = vpow.pop %v2416
        %v2418 = vmul.f32 %v2406, 1.442695
        %v2419 = vpow.pop %v2418
        %v2420 = vmul.f32 %v2407, 1.442695
        %v2421 = vpow.pop %v2420
        %v2422 = vmul.f32 %v2408, 1.442695
        %v2423 = vpow.pop %v2422
        %v2424 = vmul.f32 %v2409, 1.442695
        %v2425 = vpow.pop %v2424
        %2426 = vadd.xlane.f32.xlu0 %v2411
        %v2427 = vpop.xlane.xlu0 %2426
        %2428 = vadd.xlane.f32.xlu0 %v2413
        %v2429 = vpop.xlane.xlu0 %2428
        %2430 = vadd.xlane.f32.xlu0 %v2415
        %v2431 = vpop.xlane.xlu0 %2430
        %2432 = vadd.xlane.f32.xlu0 %v2417
        %v2433 = vpop.xlane.xlu0 %2432
        %2434 = vadd.xlane.f32.xlu0 %v2419
        %v2435 = vpop.xlane.xlu0 %2434
        %2436 = vadd.xlane.f32.xlu0 %v2421
        %v2437 = vpop.xlane.xlu0 %2436
        %2438 = vadd.xlane.f32.xlu0 %v2423
        %v2439 = vpop.xlane.xlu0 %2438
        %2440 = vadd.xlane.f32.xlu0 %v2425
        %v2441 = vpop.xlane.xlu0 %2440
        %v2442 = vrcp.pop %v2427
        %v2443 = vrcp.pop %v2429
        %v2444 = vrcp.pop %v2431
        %v2445 = vrcp.pop %v2433
        %v2446 = vrcp.pop %v2435
        %v2447 = vrcp.pop %v2437
        %v2448 = vrcp.pop %v2439
        %v2449 = vrcp.pop %v2441
        %v2450 = vmul.f32 %v2411, %v2442
        %v2451 = vmul.f32 %v2413, %v2443
        %v2452 = vmul.f32 %v2415, %v2444
        %v2453 = vmul.f32 %v2417, %v2445
        %v2454 = vmul.f32 %v2419, %v2446
        %v2455 = vmul.f32 %v2421, %v2447
        %v2456 = vmul.f32 %v2423, %v2448
        %v2457 = vmul.f32 %v2425, %v2449
        %2458 = vrot.lane.b32.xlu0 %v1044, 64
        %v2459 = vpop.permute.xlu0 %2458
        %2460 = vrot.lane.b32.xlu0 %v1049, 64
        %v2461 = vpop.permute.xlu0 %2460
        %2462 = vrot.lane.b32.xlu0 %v1054, 64
        %v2463 = vpop.permute.xlu0 %2462
        %2464 = vrot.lane.b32.xlu0 %v1059, 64
        %v2465 = vpop.permute.xlu0 %2464
        %2466 = vrot.lane.b32.xlu0 %v1064, 64
        %v2467 = vpop.permute.xlu0 %2466
        %2468 = vrot.lane.b32.xlu0 %v1069, 64
        %v2469 = vpop.permute.xlu0 %2468
        %2470 = vrot.lane.b32.xlu0 %v1074, 64
        %v2471 = vpop.permute.xlu0 %2470
        %2472 = vrot.lane.b32.xlu0 %v1079, 64
        %v2473 = vpop.permute.xlu0 %2472
        %2474 = vrot.lane.b32.xlu0 %v1084, 64
        %v2475 = vpop.permute.xlu0 %2474
        %2476 = vrot.lane.b32.xlu0 %v1089, 64
        %v2477 = vpop.permute.xlu0 %2476
        %2478 = vrot.lane.b32.xlu0 %v1094, 64
        %v2479 = vpop.permute.xlu0 %2478
        %2480 = vrot.lane.b32.xlu0 %v1099, 64
        %v2481 = vpop.permute.xlu0 %2480
        %2482 = vrot.lane.b32.xlu0 %v1104, 64
        %v2483 = vpop.permute.xlu0 %2482
        %2484 = vrot.lane.b32.xlu0 %v1109, 64
        %v2485 = vpop.permute.xlu0 %2484
        %2486 = vrot.lane.b32.xlu0 %v1114, 64
        %v2487 = vpop.permute.xlu0 %2486
        %2488 = vrot.lane.b32.xlu0 %v1119, 64
        %v2489 = vpop.permute.xlu0 %2488
        %2506 = vmatprep.subr.mxu0 0.0
        %2507 = vmatpush1.msra.mxu0 %v2459
        %2508 = vmatprep.subr.mxu0 0.0
        %2509 = vmatpush1.msra.mxu0 %v2461
        %2510 = vmatprep.subr.mxu0 0.0
        %2511 = vmatpush1.msra.mxu0 %v2463
        %2512 = vmatprep.subr.mxu0 0.0
        %2513 = vmatpush1.msra.mxu0 %v2465
        %2514 = vmatprep.subr.mxu0 0.0
        %2515 = vmatpush1.msra.mxu0 %v2467
        %2516 = vmatprep.subr.mxu0 0.0
        %2517 = vmatpush1.msra.mxu0 %v2469
        %2518 = vmatprep.subr.mxu0 0.0
        %2519 = vmatpush1.msra.mxu0 %v2471
        %2520 = vmatprep.subr.mxu0 0.0
        %2521 = vmatpush1.msra.mxu0 %v2473
        %2522 = vmatprep.subr.mxu0 0.0
        %2523 = vmatpush1.msra.mxu0 %v2475
        %2524 = vmatprep.subr.mxu0 0.0
        %2525 = vmatpush1.msra.mxu0 %v2477
        %2526 = vmatprep.subr.mxu0 0.0
        %2527 = vmatpush1.msra.mxu0 %v2479
        %2528 = vmatprep.subr.mxu0 0.0
        %2529 = vmatpush1.msra.mxu0 %v2481
        %2530 = vmatprep.subr.mxu0 0.0
        %2531 = vmatpush1.msra.mxu0 %v2483
        %2532 = vmatprep.subr.mxu0 0.0
        %2533 = vmatpush1.msra.mxu0 %v2485
        %2534 = vmatprep.subr.mxu0 0.0
        %2535 = vmatpush1.msra.mxu0 %v2487
        %2536 = vmatprep.subr.mxu0 0.0
        %2537 = vmatpush1.msra.mxu0 %v2489
        %2538 = vmatprep.subr.mxu0 0.0
        %2539 = vmatpush1.msra.mxu0 0.0
        %2540 = vmatprep.subr.mxu0 0.0
        %2541 = vmatpush1.msra.mxu0 0.0
        %2542 = vmatprep.subr.mxu0 0.0
        %2543 = vmatpush1.msra.mxu0 0.0
        %2544 = vmatprep.subr.mxu0 0.0
        %2545 = vmatpush1.msra.mxu0 0.0
        %2546 = vmatprep.subr.mxu0 0.0
        %2547 = vmatpush1.msra.mxu0 0.0
        %2548 = vmatprep.subr.mxu0 0.0
        %2549 = vmatpush1.msra.mxu0 0.0
        %2550 = vmatprep.subr.mxu0 0.0
        %2551 = vmatpush1.msra.mxu0 0.0
        %2552 = vmatprep.subr.mxu0 0.0
        %2553 = vmatpush1.msra.mxu0 0.0
        %2554 = vmatprep.subr.mxu0 0.0
        %2555 = vmatpush1.msra.mxu0 0.0
        %2556 = vmatprep.subr.mxu0 0.0
        %2557 = vmatpush1.msra.mxu0 0.0
        %2558 = vmatprep.subr.mxu0 0.0
        %2559 = vmatpush1.msra.mxu0 0.0
        %2560 = vmatprep.subr.mxu0 0.0
        %2561 = vmatpush1.msra.mxu0 0.0
        %2562 = vmatprep.subr.mxu0 0.0
        %2563 = vmatpush1.msra.mxu0 0.0
        %2564 = vmatprep.subr.mxu0 0.0
        %2565 = vmatpush1.msra.mxu0 0.0
        %2566 = vmatprep.subr.mxu0 0.0
        %2567 = vmatpush1.msra.mxu0 0.0
        %2568 = vmatprep.subr.mxu0 0.0
        %2569 = vmatpush1.msra.mxu0 0.0
        %2570 = vmatprep.mubr.f32.mxu0 0.0
        %2571 = vmatmul.mubr.f32.gmra.mrb[0].mxu0 %v2450
        %v2572 = vpop.f32.mrb[0].mxu0
        %v2573 = vadd.f32 0.0, %v2572
        %v2574 = vpop.f32.mrb[0].mxu0
        %2575 = vmatprep.mubr.f32.mxu0 0.0
        %2576 = vmatmul.mubr.f32.gmra.mrb[0].mxu0 %v2451
        %v2577 = vpop.f32.mrb[0].mxu0
        %v2578 = vadd.f32 0.0, %v2577
        %v2579 = vpop.f32.mrb[0].mxu0
        %2580 = vmatprep.mubr.f32.mxu0 0.0
        %2581 = vmatmul.mubr.f32.gmra.mrb[0].mxu0 %v2452
        %v2582 = vpop.f32.mrb[0].mxu0
        %v2583 = vadd.f32 0.0, %v2582
        %v2584 = vpop.f32.mrb[0].mxu0
        %2585 = vmatprep.mubr.f32.mxu0 0.0
        %2586 = vmatmul.mubr.f32.gmra.mrb[0].mxu0 %v2453
        %v2587 = vpop.f32.mrb[0].mxu0
        %v2588 = vadd.f32 0.0, %v2587
        %v2589 = vpop.f32.mrb[0].mxu0
        %2590 = vmatprep.mubr.f32.mxu0 0.0
        %2591 = vmatmul.mubr.f32.gmra.mrb[0].mxu0 %v2454
        %v2592 = vpop.f32.mrb[0].mxu0
        %v2593 = vadd.f32 0.0, %v2592
        %v2594 = vpop.f32.mrb[0].mxu0
        %2595 = vmatprep.mubr.f32.mxu0 0.0
        %2596 = vmatmul.mubr.f32.gmra.mrb[0].mxu0 %v2455
        %v2597 = vpop.f32.mrb[0].mxu0
        %v2598 = vadd.f32 0.0, %v2597
        %v2599 = vpop.f32.mrb[0].mxu0
        %2600 = vmatprep.mubr.f32.mxu0 0.0
        %2601 = vmatmul.mubr.f32.gmra.mrb[0].mxu0 %v2456
        %v2602 = vpop.f32.mrb[0].mxu0
        %v2603 = vadd.f32 0.0, %v2602
        %v2604 = vpop.f32.mrb[0].mxu0
        %2605 = vmatprep.mubr.f32.mxu0 0.0
        %2606 = vmatmul.mubr.f32.gmra.mrb[0].mxu0 %v2457
        %v2607 = vpop.f32.mrb[0].mxu0
        %v2608 = vadd.f32 0.0, %v2607
        %v2609 = vpop.f32.mrb[0].mxu0
        %2610 = vdwg.mxu0
        %v2611 = vld [vmem:[#allocation17 + $0x40] sm:$0xff]
        %v2612 = vld [vmem:[#allocation17 + $0x48] sm:$0xff]
        %v2613 = vld [vmem:[#allocation17 + $0x50] sm:$0xff]
        %v2614 = vld [vmem:[#allocation17 + $0x58] sm:$0xff]
        %v2616 = vsel %vm1122, %v2573, 0
        %v2619 = vsel %vm1122, %v2578, 0
        %v2622 = vsel %vm1122, %v2583, 0
        %v2625 = vsel %vm1122, %v2588, 0
        %v2628 = vsel %vm1122, %v2593, 0
        %v2631 = vsel %vm1122, %v2598, 0
        %v2634 = vsel %vm1122, %v2603, 0
        %v2637 = vsel %vm1122, %v2608, 0
        %2639 = vmatprep.subr.mxu0 0.0
        %2640 = vmatpush1.msra.mxu0 %v2611
        %2641 = vmatprep.subr.mxu0 0.0
        %2642 = vmatpush1.msra.mxu0 %v2612
        %2643 = vmatprep.subr.mxu0 0.0
        %2644 = vmatpush1.msra.mxu0 %v2613
        %2645 = vmatprep.subr.mxu0 0.0
        %2646 = vmatpush1.msra.mxu0 %v2614
        %2647 = vmatprep.subr.mxu0 0.0
        %2648 = vmatpush1.msra.mxu0 0.0
        %2649 = vmatprep.subr.mxu0 0.0
        %2650 = vmatpush1.msra.mxu0 0.0
        %2651 = vmatprep.subr.mxu0 0.0
        %2652 = vmatpush1.msra.mxu0 0.0
        %2653 = vmatprep.subr.mxu0 0.0
        %2654 = vmatpush1.msra.mxu0 0.0
        %2655 = vmatprep.subr.mxu0 0.0
        %2656 = vmatpush1.msra.mxu0 0.0
        %2657 = vmatprep.subr.mxu0 0.0
        %2658 = vmatpush1.msra.mxu0 0.0
        %2659 = vmatprep.subr.mxu0 0.0
        %2660 = vmatpush1.msra.mxu0 0.0
        %2661 = vmatprep.subr.mxu0 0.0
        %2662 = vmatpush1.msra.mxu0 0.0
        %2663 = vmatprep.subr.mxu0 0.0
        %2664 = vmatpush1.msra.mxu0 0.0
        %2665 = vmatprep.subr.mxu0 0.0
        %2666 = vmatpush1.msra.mxu0 0.0
        %2667 = vmatprep.subr.mxu0 0.0
        %2668 = vmatpush1.msra.mxu0 0.0
        %2669 = vmatprep.subr.mxu0 0.0
        %2670 = vmatpush1.msra.mxu0 0.0
        %2671 = vmatprep.subr.mxu0 0.0
        %2672 = vmatpush1.msra.mxu0 0.0
        %2673 = vmatprep.subr.mxu0 0.0
        %2674 = vmatpush1.msra.mxu0 0.0
        %2675 = vmatprep.subr.mxu0 0.0
        %2676 = vmatpush1.msra.mxu0 0.0
        %2677 = vmatprep.subr.mxu0 0.0
        %2678 = vmatpush1.msra.mxu0 0.0
        %2679 = vmatprep.subr.mxu0 0.0
        %2680 = vmatpush1.msra.mxu0 0.0
        %2681 = vmatprep.subr.mxu0 0.0
        %2682 = vmatpush1.msra.mxu0 0.0
        %2683 = vmatprep.subr.mxu0 0.0
        %2684 = vmatpush1.msra.mxu0 0.0
        %2685 = vmatprep.subr.mxu0 0.0
        %2686 = vmatpush1.msra.mxu0 0.0
        %2687 = vmatprep.subr.mxu0 0.0
        %2688 = vmatpush1.msra.mxu0 0.0
        %2689 = vmatprep.subr.mxu0 0.0
        %2690 = vmatpush1.msra.mxu0 0.0
        %2691 = vmatprep.subr.mxu0 0.0
        %2692 = vmatpush1.msra.mxu0 0.0
        %2693 = vmatprep.subr.mxu0 0.0
        %2694 = vmatpush1.msra.mxu0 0.0
        %2695 = vmatprep.subr.mxu0 0.0
        %2696 = vmatpush1.msra.mxu0 0.0
        %2697 = vmatprep.subr.mxu0 0.0
        %2698 = vmatpush1.msra.mxu0 0.0
        %2699 = vmatprep.subr.mxu0 0.0
        %2700 = vmatpush1.msra.mxu0 0.0
        %2701 = vmatprep.subr.mxu0 0.0
        %2702 = vmatpush1.msra.mxu0 0.0
        %2703 = vmatprep.mubr.f32.mxu0 0.0
        %2704 = vmatmul.mubr.f32.gmra.mrb[0].mxu0 %v2616
        %v2705 = vpop.f32.mrb[0].mxu0
        %v2706 = vadd.f32 0.0, %v2705
        %v2707 = vpop.f32.mrb[0].mxu0
        %2708 = vmatprep.mubr.f32.mxu0 0.0
        %2709 = vmatmul.mubr.f32.gmra.mrb[0].mxu0 %v2619
        %v2710 = vpop.f32.mrb[0].mxu0
        %v2711 = vadd.f32 0.0, %v2710
        %v2712 = vpop.f32.mrb[0].mxu0
        %2713 = vmatprep.mubr.f32.mxu0 0.0
        %2714 = vmatmul.mubr.f32.gmra.mrb[0].mxu0 %v2622
        %v2715 = vpop.f32.mrb[0].mxu0
        %v2716 = vadd.f32 0.0, %v2715
        %v2717 = vpop.f32.mrb[0].mxu0
        %2718 = vmatprep.mubr.f32.mxu0 0.0
        %2719 = vmatmul.mubr.f32.gmra.mrb[0].mxu0 %v2625
        %v2720 = vpop.f32.mrb[0].mxu0
        %v2721 = vadd.f32 0.0, %v2720
        %v2722 = vpop.f32.mrb[0].mxu0
        %2723 = vmatprep.mubr.f32.mxu0 0.0
        %2724 = vmatmul.mubr.f32.gmra.mrb[0].mxu0 %v2628
        %v2725 = vpop.f32.mrb[0].mxu0
        %v2726 = vadd.f32 0.0, %v2725
        %v2727 = vpop.f32.mrb[0].mxu0
        %2728 = vmatprep.mubr.f32.mxu0 0.0
        %2729 = vmatmul.mubr.f32.gmra.mrb[0].mxu0 %v2631
        %v2730 = vpop.f32.mrb[0].mxu0
        %v2731 = vadd.f32 0.0, %v2730
        %v2732 = vpop.f32.mrb[0].mxu0
        %2733 = vmatprep.mubr.f32.mxu0 0.0
        %2734 = vmatmul.mubr.f32.gmra.mrb[0].mxu0 %v2634
        %v2735 = vpop.f32.mrb[0].mxu0
        %v2736 = vadd.f32 0.0, %v2735
        %v2737 = vpop.f32.mrb[0].mxu0
        %2738 = vmatprep.mubr.f32.mxu0 0.0
        %2739 = vmatmul.mubr.f32.gmra.mrb[0].mxu0 %v2637
        %v2740 = vpop.f32.mrb[0].mxu0
        %v2741 = vadd.f32 0.0, %v2740
        %v2742 = vpop.f32.mrb[0].mxu0
        %2743 = vdwg.mxu0
        %v2744 = vadd.f32 %v2147, %v2706
        %v2745 = vadd.f32 %v2152, %v2711
        %v2746 = vadd.f32 %v2157, %v2716
        %v2747 = vadd.f32 %v2162, %v2721
        %v2748 = vadd.f32 %v2167, %v2726
        %v2749 = vadd.f32 %v2172, %v2731
        %v2750 = vadd.f32 %v2177, %v2736
        %v2751 = vadd.f32 %v2182, %v2741
        %2752 = vrot.lane.b32.xlu0 %v778, 32
        %v2753 = vpop.permute.xlu0 %2752
        %2754 = vrot.lane.b32.xlu0 %v779, 32
        %v2755 = vpop.permute.xlu0 %2754
        %2756 = vrot.lane.b32.xlu0 %v780, 32
        %v2757 = vpop.permute.xlu0 %2756
        %2758 = vrot.lane.b32.xlu0 %v781, 32
        %v2759 = vpop.permute.xlu0 %2758
        %2760 = vrot.lane.b32.xlu0 %v782, 32
        %v2761 = vpop.permute.xlu0 %2760
        %2762 = vrot.lane.b32.xlu0 %v783, 32
        %v2763 = vpop.permute.xlu0 %2762
        %2764 = vrot.lane.b32.xlu0 %v784, 32
        %v2765 = vpop.permute.xlu0 %2764
        %2766 = vrot.lane.b32.xlu0 %v785, 32
        %v2767 = vpop.permute.xlu0 %2766
        %2768 = vrot.lane.b32.xlu0 %v876, 32
        %v2769 = vpop.permute.xlu0 %2768
        %2770 = vrot.lane.b32.xlu0 %v881, 32
        %v2771 = vpop.permute.xlu0 %2770
        %2772 = vrot.lane.b32.xlu0 %v886, 32
        %v2773 = vpop.permute.xlu0 %2772
        %2774 = vrot.lane.b32.xlu0 %v891, 32
        %v2775 = vpop.permute.xlu0 %2774
        %2776 = vrot.lane.b32.xlu0 %v896, 32
        %v2777 = vpop.permute.xlu0 %2776
        %2778 = vrot.lane.b32.xlu0 %v901, 32
        %v2779 = vpop.permute.xlu0 %2778
        %2780 = vrot.lane.b32.xlu0 %v906, 32
        %v2781 = vpop.permute.xlu0 %2780
        %2782 = vrot.lane.b32.xlu0 %v911, 32
        %v2783 = vpop.permute.xlu0 %2782
        %2784 = vrot.lane.b32.xlu0 %v916, 32
        %v2785 = vpop.permute.xlu0 %2784
        %2786 = vrot.lane.b32.xlu0 %v921, 32
        %v2787 = vpop.permute.xlu0 %2786
        %2788 = vrot.lane.b32.xlu0 %v926, 32
        %v2789 = vpop.permute.xlu0 %2788
        %2790 = vrot.lane.b32.xlu0 %v931, 32
        %v2791 = vpop.permute.xlu0 %2790
        %2792 = vrot.lane.b32.xlu0 %v936, 32
        %v2793 = vpop.permute.xlu0 %2792
        %2794 = vrot.lane.b32.xlu0 %v941, 32
        %v2795 = vpop.permute.xlu0 %2794
        %2796 = vrot.lane.b32.xlu0 %v946, 32
        %v2797 = vpop.permute.xlu0 %2796
        %2798 = vrot.lane.b32.xlu0 %v951, 32
        %v2799 = vpop.permute.xlu0 %2798
        %v2800 = vsel %vm1122, %v2753, 0
        %v2802 = vsel %vm1122, %v2755, 0
        %v2804 = vsel %vm1122, %v2757, 0
        %v2806 = vsel %vm1122, %v2759, 0
        %v2808 = vsel %vm1122, %v2761, 0
        %v2810 = vsel %vm1122, %v2763, 0
        %v2812 = vsel %vm1122, %v2765, 0
        %v2814 = vsel %vm1122, %v2767, 0
        %v2816 = vsel %vm1122, %v2769, 0
        %v2818 = vsel %vm1122, %v2771, 0
        %v2820 = vsel %vm1122, %v2773, 0
        %v2822 = vsel %vm1122, %v2775, 0
        %v2824 = vsel %vm1122, %v2777, 0
        %v2826 = vsel %vm1122, %v2779, 0
        %v2828 = vsel %vm1122, %v2781, 0
        %v2830 = vsel %vm1122, %v2783, 0
        %v2832 = vsel %vm1122, %v2785, 0
        %v2834 = vsel %vm1122, %v2787, 0
        %v2836 = vsel %vm1122, %v2789, 0
        %v2838 = vsel %vm1122, %v2791, 0
        %v2840 = vsel %vm1122, %v2793, 0
        %v2842 = vsel %vm1122, %v2795, 0
        %v2844 = vsel %vm1122, %v2797, 0
        %v2846 = vsel %vm1122, %v2799, 0
        %2848 = vmatprep.subr.mxu0 0.0
        %2849 = vmatpush1.xpose.msra.mxu0 %v2816
        %2850 = vmatprep.subr.mxu0 0.0
        %2851 = vmatpush1.xpose.msra.mxu0 %v2818
        %2852 = vmatprep.subr.mxu0 0.0
        %2853 = vmatpush1.xpose.msra.mxu0 %v2820
        %2854 = vmatprep.subr.mxu0 0.0
        %2855 = vmatpush1.xpose.msra.mxu0 %v2822
        %2856 = vmatprep.subr.mxu0 0.0
        %2857 = vmatpush1.xpose.msra.mxu0 %v2824
        %2858 = vmatprep.subr.mxu0 0.0
        %2859 = vmatpush1.xpose.msra.mxu0 %v2826
        %2860 = vmatprep.subr.mxu0 0.0
        %2861 = vmatpush1.xpose.msra.mxu0 %v2828
        %2862 = vmatprep.subr.mxu0 0.0
        %2863 = vmatpush1.xpose.msra.mxu0 %v2830
        %2864 = vmatprep.subr.mxu0 0.0
        %2865 = vmatpush1.xpose.msra.mxu0 %v2832
        %2866 = vmatprep.subr.mxu0 0.0
        %2867 = vmatpush1.xpose.msra.mxu0 %v2834
        %2868 = vmatprep.subr.mxu0 0.0
        %2869 = vmatpush1.xpose.msra.mxu0 %v2836
        %2870 = vmatprep.subr.mxu0 0.0
        %2871 = vmatpush1.xpose.msra.mxu0 %v2838
        %2872 = vmatprep.subr.mxu0 0.0
        %2873 = vmatpush1.xpose.msra.mxu0 %v2840
        %2874 = vmatprep.subr.mxu0 0.0
        %2875 = vmatpush1.xpose.msra.mxu0 %v2842
        %2876 = vmatprep.subr.mxu0 0.0
        %2877 = vmatpush1.xpose.msra.mxu0 %v2844
        %2878 = vmatprep.subr.mxu0 0.0
        %2879 = vmatpush1.xpose.msra.mxu0 %v2846
        %2880 = vmatprep.subr.mxu0 0.0
        %2881 = vmatpush1.xpose.msra.mxu0 0.0
        %2882 = vmatprep.subr.mxu0 0.0
        %2883 = vmatpush1.xpose.msra.mxu0 0.0
        %2884 = vmatprep.subr.mxu0 0.0
        %2885 = vmatpush1.xpose.msra.mxu0 0.0
        %2886 = vmatprep.subr.mxu0 0.0
        %2887 = vmatpush1.xpose.msra.mxu0 0.0
        %2888 = vmatprep.subr.mxu0 0.0
        %2889 = vmatpush1.xpose.msra.mxu0 0.0
        %2890 = vmatprep.subr.mxu0 0.0
        %2891 = vmatpush1.xpose.msra.mxu0 0.0
        %2892 = vmatprep.subr.mxu0 0.0
        %2893 = vmatpush1.xpose.msra.mxu0 0.0
        %2894 = vmatprep.subr.mxu0 0.0
        %2895 = vmatpush1.xpose.msra.mxu0 0.0
        %2896 = vmatprep.subr.mxu0 0.0
        %2897 = vmatpush1.xpose.msra.mxu0 0.0
        %2898 = vmatprep.subr.mxu0 0.0
        %2899 = vmatpush1.xpose.msra.mxu0 0.0
        %2900 = vmatprep.subr.mxu0 0.0
        %2901 = vmatpush1.xpose.msra.mxu0 0.0
        %2902 = vmatprep.subr.mxu0 0.0
        %2903 = vmatpush1.xpose.msra.mxu0 0.0
        %2904 = vmatprep.subr.mxu0 0.0
        %2905 = vmatpush1.xpose.msra.mxu0 0.0
        %2906 = vmatprep.subr.mxu0 0.0
        %2907 = vmatpush1.xpose.msra.mxu0 0.0
        %2908 = vmatprep.subr.mxu0 0.0
        %2909 = vmatpush1.xpose.msra.mxu0 0.0
        %2910 = vmatprep.subr.mxu0 0.0
        %2911 = vmatpush1.xpose.msra.mxu0 0.0
        %2912 = vmatprep.mubr.f32.mxu0 0.0
        %2913 = vmatmul.mubr.f32.gmra.mrb[0].mxu0 %v2800
        %v2914 = vpop.f32.mrb[0].mxu0
        %v2915 = vadd.f32 0.0, %v2914
        %v2916 = vpop.f32.mrb[0].mxu0
        %2917 = vmatprep.mubr.f32.mxu0 0.0
        %2918 = vmatmul.mubr.f32.gmra.mrb[0].mxu0 %v2802
        %v2919 = vpop.f32.mrb[0].mxu0
        %v2920 = vadd.f32 0.0, %v2919
        %v2921 = vpop.f32.mrb[0].mxu0
        %2922 = vmatprep.mubr.f32.mxu0 0.0
        %2923 = vmatmul.mubr.f32.gmra.mrb[0].mxu0 %v2804
        %v2924 = vpop.f32.mrb[0].mxu0
        %v2925 = vadd.f32 0.0, %v2924
        %v2926 = vpop.f32.mrb[0].mxu0
        %2927 = vmatprep.mubr.f32.mxu0 0.0
        %2928 = vmatmul.mubr.f32.gmra.mrb[0].mxu0 %v2806
        %v2929 = vpop.f32.mrb[0].mxu0
        %v2930 = vadd.f32 0.0, %v2929
        %v2931 = vpop.f32.mrb[0].mxu0
        %2932 = vmatprep.mubr.f32.mxu0 0.0
        %2933 = vmatmul.mubr.f32.gmra.mrb[0].mxu0 %v2808
        %v2934 = vpop.f32.mrb[0].mxu0
        %v2935 = vadd.f32 0.0, %v2934
        %v2936 = vpop.f32.mrb[0].mxu0
        %2937 = vmatprep.mubr.f32.mxu0 0.0
        %2938 = vmatmul.mubr.f32.gmra.mrb[0].mxu0 %v2810
        %v2939 = vpop.f32.mrb[0].mxu0
        %v2940 = vadd.f32 0.0, %v2939
        %v2941 = vpop.f32.mrb[0].mxu0
        %2942 = vmatprep.mubr.f32.mxu0 0.0
        %2943 = vmatmul.mubr.f32.gmra.mrb[0].mxu0 %v2812
        %v2944 = vpop.f32.mrb[0].mxu0
        %v2945 = vadd.f32 0.0, %v2944
        %v2946 = vpop.f32.mrb[0].mxu0
        %2947 = vmatprep.mubr.f32.mxu0 0.0
        %2948 = vmatmul.mubr.f32.gmra.mrb[0].mxu0 %v2814
        %v2949 = vpop.f32.mrb[0].mxu0
        %v2950 = vadd.f32 0.0, %v2949
        %v2951 = vpop.f32.mrb[0].mxu0
        %2952 = vdwg.mxu0
        %2953 = vmax.xlane.f32.xlu0 %v2915
        %v2954 = vpop.xlane.xlu0 %2953
        %2955 = vmax.xlane.f32.xlu0 %v2920
        %v2956 = vpop.xlane.xlu0 %2955
        %2957 = vmax.xlane.f32.xlu0 %v2925
        %v2958 = vpop.xlane.xlu0 %2957
        %2959 = vmax.xlane.f32.xlu0 %v2930
        %v2960 = vpop.xlane.xlu0 %2959
        %2961 = vmax.xlane.f32.xlu0 %v2935
        %v2962 = vpop.xlane.xlu0 %2961
        %2963 = vmax.xlane.f32.xlu0 %v2940
        %v2964 = vpop.xlane.xlu0 %2963
        %2965 = vmax.xlane.f32.xlu0 %v2945
        %v2966 = vpop.xlane.xlu0 %2965
        %2967 = vmax.xlane.f32.xlu0 %v2950
        %v2968 = vpop.xlane.xlu0 %2967
        %v2969 = vsub.f32 %v2915, %v2954
        %v2970 = vsub.f32 %v2920, %v2956
        %v2971 = vsub.f32 %v2925, %v2958
        %v2972 = vsub.f32 %v2930, %v2960
        %v2973 = vsub.f32 %v2935, %v2962
        %v2974 = vsub.f32 %v2940, %v2964
        %v2975 = vsub.f32 %v2945, %v2966
        %v2976 = vsub.f32 %v2950, %v2968
        %v2977 = vmul.f32 %v2969, 1.442695
        %v2978 = vpow.pop %v2977
        %v2979 = vmul.f32 %v2970, 1.442695
        %v2980 = vpow.pop %v2979
        %v2981 = vmul.f32 %v2971, 1.442695
        %v2982 = vpow.pop %v2981
        %v2983 = vmul.f32 %v2972, 1.442695
        %v2984 = vpow.pop %v2983
        %v2985 = vmul.f32 %v2973, 1.442695
        %v2986 = vpow.pop %v2985
        %v2987 = vmul.f32 %v2974, 1.442695
        %v2988 = vpow.pop %v2987
        %v2989 = vmul.f32 %v2975, 1.442695
        %v2990 = vpow.pop %v2989
        %v2991 = vmul.f32 %v2976, 1.442695
        %v2992 = vpow.pop %v2991
        %2993 = vadd.xlane.f32.xlu0 %v2978
        %v2994 = vpop.xlane.xlu0 %2993
        %2995 = vadd.xlane.f32.xlu0 %v2980
        %v2996 = vpop.xlane.xlu0 %2995
        %2997 = vadd.xlane.f32.xlu0 %v2982
        %v2998 = vpop.xlane.xlu0 %2997
        %2999 = vadd.xlane.f32.xlu0 %v2984
        %v3000 = vpop.xlane.xlu0 %2999
        %3001 = vadd.xlane.f32.xlu0 %v2986
        %v3002 = vpop.xlane.xlu0 %3001
        %3003 = vadd.xlane.f32.xlu0 %v2988
        %v3004 = vpop.xlane.xlu0 %3003
        %3005 = vadd.xlane.f32.xlu0 %v2990
        %v3006 = vpop.xlane.xlu0 %3005
        %3007 = vadd.xlane.f32.xlu0 %v2992
        %v3008 = vpop.xlane.xlu0 %3007
        %v3009 = vrcp.pop %v2994
        %v3010 = vrcp.pop %v2996
        %v3011 = vrcp.pop %v2998
        %v3012 = vrcp.pop %v3000
        %v3013 = vrcp.pop %v3002
        %v3014 = vrcp.pop %v3004
        %v3015 = vrcp.pop %v3006
        %v3016 = vrcp.pop %v3008
        %v3017 = vmul.f32 %v2978, %v3009
        %v3018 = vmul.f32 %v2980, %v3010
        %v3019 = vmul.f32 %v2982, %v3011
        %v3020 = vmul.f32 %v2984, %v3012
        %v3021 = vmul.f32 %v2986, %v3013
        %v3022 = vmul.f32 %v2988, %v3014
        %v3023 = vmul.f32 %v2990, %v3015
        %v3024 = vmul.f32 %v2992, %v3016
        %3025 = vrot.lane.b32.xlu0 %v1044, 32
        %v3026 = vpop.permute.xlu0 %3025
        %3027 = vrot.lane.b32.xlu0 %v1049, 32
        %v3028 = vpop.permute.xlu0 %3027
        %3029 = vrot.lane.b32.xlu0 %v1054, 32
        %v3030 = vpop.permute.xlu0 %3029
        %3031 = vrot.lane.b32.xlu0 %v1059, 32
        %v3032 = vpop.permute.xlu0 %3031
        %3033 = vrot.lane.b32.xlu0 %v1064, 32
        %v3034 = vpop.permute.xlu0 %3033
        %3035 = vrot.lane.b32.xlu0 %v1069, 32
        %v3036 = vpop.permute.xlu0 %3035
        %3037 = vrot.lane.b32.xlu0 %v1074, 32
        %v3038 = vpop.permute.xlu0 %3037
        %3039 = vrot.lane.b32.xlu0 %v1079, 32
        %v3040 = vpop.permute.xlu0 %3039
        %3041 = vrot.lane.b32.xlu0 %v1084, 32
        %v3042 = vpop.permute.xlu0 %3041
        %3043 = vrot.lane.b32.xlu0 %v1089, 32
        %v3044 = vpop.permute.xlu0 %3043
        %3045 = vrot.lane.b32.xlu0 %v1094, 32
        %v3046 = vpop.permute.xlu0 %3045
        %3047 = vrot.lane.b32.xlu0 %v1099, 32
        %v3048 = vpop.permute.xlu0 %3047
        %3049 = vrot.lane.b32.xlu0 %v1104, 32
        %v3050 = vpop.permute.xlu0 %3049
        %3051 = vrot.lane.b32.xlu0 %v1109, 32
        %v3052 = vpop.permute.xlu0 %3051
        %3053 = vrot.lane.b32.xlu0 %v1114, 32
        %v3054 = vpop.permute.xlu0 %3053
        %3055 = vrot.lane.b32.xlu0 %v1119, 32
        %v3056 = vpop.permute.xlu0 %3055
        %3073 = vmatprep.subr.mxu0 0.0
        %3074 = vmatpush1.msra.mxu0 %v3026
        %3075 = vmatprep.subr.mxu0 0.0
        %3076 = vmatpush1.msra.mxu0 %v3028
        %3077 = vmatprep.subr.mxu0 0.0
        %3078 = vmatpush1.msra.mxu0 %v3030
        %3079 = vmatprep.subr.mxu0 0.0
        %3080 = vmatpush1.msra.mxu0 %v3032
        %3081 = vmatprep.subr.mxu0 0.0
        %3082 = vmatpush1.msra.mxu0 %v3034
        %3083 = vmatprep.subr.mxu0 0.0
        %3084 = vmatpush1.msra.mxu0 %v3036
        %3085 = vmatprep.subr.mxu0 0.0
        %3086 = vmatpush1.msra.mxu0 %v3038
        %3087 = vmatprep.subr.mxu0 0.0
        %3088 = vmatpush1.msra.mxu0 %v3040
        %3089 = vmatprep.subr.mxu0 0.0
        %3090 = vmatpush1.msra.mxu0 %v3042
        %3091 = vmatprep.subr.mxu0 0.0
        %3092 = vmatpush1.msra.mxu0 %v3044
        %3093 = vmatprep.subr.mxu0 0.0
        %3094 = vmatpush1.msra.mxu0 %v3046
        %3095 = vmatprep.subr.mxu0 0.0
        %3096 = vmatpush1.msra.mxu0 %v3048
        %3097 = vmatprep.subr.mxu0 0.0
        %3098 = vmatpush1.msra.mxu0 %v3050
        %3099 = vmatprep.subr.mxu0 0.0
        %3100 = vmatpush1.msra.mxu0 %v3052
        %3101 = vmatprep.subr.mxu0 0.0
        %3102 = vmatpush1.msra.mxu0 %v3054
        %3103 = vmatprep.subr.mxu0 0.0
        %3104 = vmatpush1.msra.mxu0 %v3056
        %3105 = vmatprep.subr.mxu0 0.0
        %3106 = vmatpush1.msra.mxu0 0.0
        %3107 = vmatprep.subr.mxu0 0.0
        %3108 = vmatpush1.msra.mxu0 0.0
        %3109 = vmatprep.subr.mxu0 0.0
        %3110 = vmatpush1.msra.mxu0 0.0
        %3111 = vmatprep.subr.mxu0 0.0
        %3112 = vmatpush1.msra.mxu0 0.0
        %3113 = vmatprep.subr.mxu0 0.0
        %3114 = vmatpush1.msra.mxu0 0.0
        %3115 = vmatprep.subr.mxu0 0.0
        %3116 = vmatpush1.msra.mxu0 0.0
        %3117 = vmatprep.subr.mxu0 0.0
        %3118 = vmatpush1.msra.mxu0 0.0
        %3119 = vmatprep.subr.mxu0 0.0
        %3120 = vmatpush1.msra.mxu0 0.0
        %3121 = vmatprep.subr.mxu0 0.0
        %3122 = vmatpush1.msra.mxu0 0.0
        %3123 = vmatprep.subr.mxu0 0.0
        %3124 = vmatpush1.msra.mxu0 0.0
        %3125 = vmatprep.subr.mxu0 0.0
        %3126 = vmatpush1.msra.mxu0 0.0
        %3127 = vmatprep.subr.mxu0 0.0
        %3128 = vmatpush1.msra.mxu0 0.0
        %3129 = vmatprep.subr.mxu0 0.0
        %3130 = vmatpush1.msra.mxu0 0.0
        %3131 = vmatprep.subr.mxu0 0.0
        %3132 = vmatpush1.msra.mxu0 0.0
        %3133 = vmatprep.subr.mxu0 0.0
        %3134 = vmatpush1.msra.mxu0 0.0
        %3135 = vmatprep.subr.mxu0 0.0
        %3136 = vmatpush1.msra.mxu0 0.0
        %3137 = vmatprep.mubr.f32.mxu0 0.0
        %3138 = vmatmul.mubr.f32.gmra.mrb[0].mxu0 %v3017
        %v3139 = vpop.f32.mrb[0].mxu0
        %v3140 = vadd.f32 0.0, %v3139
        %v3141 = vpop.f32.mrb[0].mxu0
        %3142 = vmatprep.mubr.f32.mxu0 0.0
        %3143 = vmatmul.mubr.f32.gmra.mrb[0].mxu0 %v3018
        %v3144 = vpop.f32.mrb[0].mxu0
        %v3145 = vadd.f32 0.0, %v3144
        %v3146 = vpop.f32.mrb[0].mxu0
        %3147 = vmatprep.mubr.f32.mxu0 0.0
        %3148 = vmatmul.mubr.f32.gmra.mrb[0].mxu0 %v3019
        %v3149 = vpop.f32.mrb[0].mxu0
        %v3150 = vadd.f32 0.0, %v3149
        %v3151 = vpop.f32.mrb[0].mxu0
        %3152 = vmatprep.mubr.f32.mxu0 0.0
        %3153 = vmatmul.mubr.f32.gmra.mrb[0].mxu0 %v3020
        %v3154 = vpop.f32.mrb[0].mxu0
        %v3155 = vadd.f32 0.0, %v3154
        %v3156 = vpop.f32.mrb[0].mxu0
        %3157 = vmatprep.mubr.f32.mxu0 0.0
        %3158 = vmatmul.mubr.f32.gmra.mrb[0].mxu0 %v3021
        %v3159 = vpop.f32.mrb[0].mxu0
        %v3160 = vadd.f32 0.0, %v3159
        %v3161 = vpop.f32.mrb[0].mxu0
        %3162 = vmatprep.mubr.f32.mxu0 0.0
        %3163 = vmatmul.mubr.f32.gmra.mrb[0].mxu0 %v3022
        %v3164 = vpop.f32.mrb[0].mxu0
        %v3165 = vadd.f32 0.0, %v3164
        %v3166 = vpop.f32.mrb[0].mxu0
        %3167 = vmatprep.mubr.f32.mxu0 0.0
        %3168 = vmatmul.mubr.f32.gmra.mrb[0].mxu0 %v3023
        %v3169 = vpop.f32.mrb[0].mxu0
        %v3170 = vadd.f32 0.0, %v3169
        %v3171 = vpop.f32.mrb[0].mxu0
        %3172 = vmatprep.mubr.f32.mxu0 0.0
        %3173 = vmatmul.mubr.f32.gmra.mrb[0].mxu0 %v3024
        %v3174 = vpop.f32.mrb[0].mxu0
        %v3175 = vadd.f32 0.0, %v3174
        %v3176 = vpop.f32.mrb[0].mxu0
        %3177 = vdwg.mxu0
        %v3178 = vld [vmem:[#allocation17 + $0x60] sm:$0xff]
        %v3179 = vld [vmem:[#allocation17 + $0x68] sm:$0xff]
        %v3180 = vld [vmem:[#allocation17 + $0x70] sm:$0xff]
        %v3181 = vld [vmem:[#allocation17 + $0x78] sm:$0xff]
        %v3183 = vsel %vm1122, %v3140, 0
        %v3186 = vsel %vm1122, %v3145, 0
        %v3189 = vsel %vm1122, %v3150, 0
        %v3192 = vsel %vm1122, %v3155, 0
        %v3195 = vsel %vm1122, %v3160, 0
        %v3198 = vsel %vm1122, %v3165, 0
        %v3201 = vsel %vm1122, %v3170, 0
        %v3204 = vsel %vm1122, %v3175, 0
        %3206 = vmatprep.subr.mxu0 0.0
        %3207 = vmatpush1.msra.mxu0 %v3178
        %3208 = vmatprep.subr.mxu0 0.0
        %3209 = vmatpush1.msra.mxu0 %v3179
        %3210 = vmatprep.subr.mxu0 0.0
        %3211 = vmatpush1.msra.mxu0 %v3180
        %3212 = vmatprep.subr.mxu0 0.0
        %3213 = vmatpush1.msra.mxu0 %v3181
        %3214 = vmatprep.subr.mxu0 0.0
        %3215 = vmatpush1.msra.mxu0 0.0
        %3216 = vmatprep.subr.mxu0 0.0
        %3217 = vmatpush1.msra.mxu0 0.0
        %3218 = vmatprep.subr.mxu0 0.0
        %3219 = vmatpush1.msra.mxu0 0.0
        %3220 = vmatprep.subr.mxu0 0.0
        %3221 = vmatpush1.msra.mxu0 0.0
        %3222 = vmatprep.subr.mxu0 0.0
        %3223 = vmatpush1.msra.mxu0 0.0
        %3224 = vmatprep.subr.mxu0 0.0
        %3225 = vmatpush1.msra.mxu0 0.0
        %3226 = vmatprep.subr.mxu0 0.0
        %3227 = vmatpush1.msra.mxu0 0.0
        %3228 = vmatprep.subr.mxu0 0.0
        %3229 = vmatpush1.msra.mxu0 0.0
        %3230 = vmatprep.subr.mxu0 0.0
        %3231 = vmatpush1.msra.mxu0 0.0
        %3232 = vmatprep.subr.mxu0 0.0
        %3233 = vmatpush1.msra.mxu0 0.0
        %3234 = vmatprep.subr.mxu0 0.0
        %3235 = vmatpush1.msra.mxu0 0.0
        %3236 = vmatprep.subr.mxu0 0.0
        %3237 = vmatpush1.msra.mxu0 0.0
        %3238 = vmatprep.subr.mxu0 0.0
        %3239 = vmatpush1.msra.mxu0 0.0
        %3240 = vmatprep.subr.mxu0 0.0
        %3241 = vmatpush1.msra.mxu0 0.0
        %3242 = vmatprep.subr.mxu0 0.0
        %3243 = vmatpush1.msra.mxu0 0.0
        %3244 = vmatprep.subr.mxu0 0.0
        %3245 = vmatpush1.msra.mxu0 0.0
        %3246 = vmatprep.subr.mxu0 0.0
        %3247 = vmatpush1.msra.mxu0 0.0
        %3248 = vmatprep.subr.mxu0 0.0
        %3249 = vmatpush1.msra.mxu0 0.0
        %3250 = vmatprep.subr.mxu0 0.0
        %3251 = vmatpush1.msra.mxu0 0.0
        %3252 = vmatprep.subr.mxu0 0.0
        %3253 = vmatpush1.msra.mxu0 0.0
        %3254 = vmatprep.subr.mxu0 0.0
        %3255 = vmatpush1.msra.mxu0 0.0
        %3256 = vmatprep.subr.mxu0 0.0
        %3257 = vmatpush1.msra.mxu0 0.0
        %3258 = vmatprep.subr.mxu0 0.0
        %3259 = vmatpush1.msra.mxu0 0.0
        %3260 = vmatprep.subr.mxu0 0.0
        %3261 = vmatpush1.msra.mxu0 0.0
        %3262 = vmatprep.subr.mxu0 0.0
        %3263 = vmatpush1.msra.mxu0 0.0
        %3264 = vmatprep.subr.mxu0 0.0
        %3265 = vmatpush1.msra.mxu0 0.0
        %3266 = vmatprep.subr.mxu0 0.0
        %3267 = vmatpush1.msra.mxu0 0.0
        %3268 = vmatprep.subr.mxu0 0.0
        %3269 = vmatpush1.msra.mxu0 0.0
        %3270 = vmatprep.mubr.f32.mxu0 0.0
        %3271 = vmatmul.mubr.f32.gmra.mrb[0].mxu0 %v3183
        %v3272 = vpop.f32.mrb[0].mxu0
        %v3273 = vadd.f32 0.0, %v3272
        %v3274 = vpop.f32.mrb[0].mxu0
        %3275 = vmatprep.mubr.f32.mxu0 0.0
        %3276 = vmatmul.mubr.f32.gmra.mrb[0].mxu0 %v3186
        %v3277 = vpop.f32.mrb[0].mxu0
        %v3278 = vadd.f32 0.0, %v3277
        %v3279 = vpop.f32.mrb[0].mxu0
        %3280 = vmatprep.mubr.f32.mxu0 0.0
        %3281 = vmatmul.mubr.f32.gmra.mrb[0].mxu0 %v3189
        %v3282 = vpop.f32.mrb[0].mxu0
        %v3283 = vadd.f32 0.0, %v3282
        %v3284 = vpop.f32.mrb[0].mxu0
        %3285 = vmatprep.mubr.f32.mxu0 0.0
        %3286 = vmatmul.mubr.f32.gmra.mrb[0].mxu0 %v3192
        %v3287 = vpop.f32.mrb[0].mxu0
        %v3288 = vadd.f32 0.0, %v3287
        %v3289 = vpop.f32.mrb[0].mxu0
        %3290 = vmatprep.mubr.f32.mxu0 0.0
        %3291 = vmatmul.mubr.f32.gmra.mrb[0].mxu0 %v3195
        %v3292 = vpop.f32.mrb[0].mxu0
        %v3293 = vadd.f32 0.0, %v3292
        %v3294 = vpop.f32.mrb[0].mxu0
        %3295 = vmatprep.mubr.f32.mxu0 0.0
        %3296 = vmatmul.mubr.f32.gmra.mrb[0].mxu0 %v3198
        %v3297 = vpop.f32.mrb[0].mxu0
        %v3298 = vadd.f32 0.0, %v3297
        %v3299 = vpop.f32.mrb[0].mxu0
        %3300 = vmatprep.mubr.f32.mxu0 0.0
        %3301 = vmatmul.mubr.f32.gmra.mrb[0].mxu0 %v3201
        %v3302 = vpop.f32.mrb[0].mxu0
        %v3303 = vadd.f32 0.0, %v3302
        %v3304 = vpop.f32.mrb[0].mxu0
        %3305 = vmatprep.mubr.f32.mxu0 0.0
        %3306 = vmatmul.mubr.f32.gmra.mrb[0].mxu0 %v3204
        %v3307 = vpop.f32.mrb[0].mxu0
        %v3308 = vadd.f32 0.0, %v3307
        %v3309 = vpop.f32.mrb[0].mxu0
        %3310 = vdwg.mxu0
        %v3311 = vadd.f32 %v2744, %v3273
        %v3312 = vadd.f32 %v2745, %v3278
        %v3313 = vadd.f32 %v2746, %v3283
        %v3314 = vadd.f32 %v2747, %v3288
        %v3315 = vadd.f32 %v2748, %v3293
        %v3316 = vadd.f32 %v2749, %v3298
        %v3317 = vadd.f32 %v2750, %v3303
        %v3318 = vadd.f32 %v2751, %v3308
        %v3319 = vld [vmem:[#allocation19] sm:$0x1]
        %v3321 = vlaneseq
        %v3322 = vshrl.u32 %v3321, 7
        %v3323 = vsub.s32 0, %v3322
        %v3324 = vrot.slane %v3319, %v3323
        %v3326 = vadd.f32 %v3311, %v3324
        %v3327 = vadd.f32 %v3312, %v3324
        %v3328 = vadd.f32 %v3313, %v3324
        %v3329 = vadd.f32 %v3314, %v3324
        %v3330 = vadd.f32 %v3315, %v3324
        %v3331 = vadd.f32 %v3316, %v3324
        %v3332 = vadd.f32 %v3317, %v3324
        %v3333 = vadd.f32 %v3318, %v3324
        %3334 = vst [vmem:[%s607] sm:$0xff] %v3326
        %3335 = vst [vmem:[%s607 + $0x8] sm:$0xff] %v3327
        %3336 = vst [vmem:[%s607 + $0x10] sm:$0xff] %v3328
        %3337 = vst [vmem:[%s607 + $0x18] sm:$0xff] %v3329
        %3338 = vst [vmem:[%s607 + $0x20] sm:$0xff] %v3330
        %3339 = vst [vmem:[%s607 + $0x28] sm:$0xff] %v3331
        %3340 = vst [vmem:[%s607 + $0x30] sm:$0xff] %v3332
        %3341 = vst [vmem:[%s607 + $0x38] sm:$0xff] %v3333
        %s3342 = sand.u32 %s305, 1
        %s3343 = scalar_lea.sflag [#allocation4], %s3342
        %s3344 = sand.u32 %s305, 1
        %s3345 = smul.addr %s3344, 64
        %s3346 = scalar_lea.vmem [#allocation20], %s3345
        // Predicated region
        $region109: #{tpu_custom_call.1} parent=63 // pred_check
          %p3347 = pneg %p315
        $region110: #{tpu_custom_call.1} parent=63 // pred_check_branch
          %3349 = sbr.rel (%p3347) target = $region112
        $region111: #{tpu_custom_call.1} parent=63 // pred_region
          %s3350 = smul.u32 8, %s40
          %s3352 = ssub.s32 1024, 1024
          %3353 = vsyncadd %s3343, %s3352
          %s3354 = smul.addr %s39, 16
          %s3355 = sadd.s32 %s3350, %s3354
          %s3356 = smul.addr %s3355, 128
          %s3357 = scalar_lea.hbm %s11, %s3356
          %s3358 = sshll.u32 %s3346, 4
          %s3359 = int_to_ptr.vmem [resolvable:$true] %s3358
          %3364 = dma.vmem_to_hbm [thread:$0]  %s3359, 1024, %s3357, %s3343, 128, 128, 8
        $region112: #{tpu_custom_call.1} parent=63 // pred_fallthru
          _
      $region64: #{tpu_custom_call.1} parent=5 // pred_fallthru
        _
      %p3365 = scmp.le.s32.totalorder 2, %s30
      // Predicated region
      $region113: #{tpu_custom_call.1} parent=5 // pred_check
        %p3366 = pneg %p3365
      $region114: #{tpu_custom_call.1} parent=5 // pred_check_branch
        %3368 = sbr.rel (%p3366) target = $region116
      $region115: #{tpu_custom_call.1} parent=5 // pred_region
        %s3369 = ssub.s32 %s30, 2
        // Predicated region
        $region117: #{tpu_custom_call.1} parent=115 // pred_check
          %p3370 = pneg %p321
        $region118: #{tpu_custom_call.1} parent=115 // pred_check_branch
          %3372 = sbr.rel (%p3370) target = $region120
        $region119: #{tpu_custom_call.1} parent=115 // pred_region
          %s3373 = sand.u32 %s306, 1
          %s3374 = scalar_lea.sflag [#allocation4], %s3373
          %s3375 = sand.u32 %s306, 1
          %s3376 = smul.addr %s3375, 64
          %s3377 = scalar_lea.vmem [#allocation20], %s3376
          %3378 = dma.done %s3374, 1024
        $region120: #{tpu_custom_call.1} parent=115 // pred_fallthru
          _
      $region116: #{tpu_custom_call.1} parent=5 // pred_fallthru
        _
    $region6: #{tpu_custom_call.1} parent=1 // loop_footer
      %s34 = sadd.s32 1, %s30
    $region7: #{tpu_custom_call.1} parent=1 // loop_footer_branch
      %29 = sbr.rel target = $region3
    $region8: #{tpu_custom_call.1} parent=1 // loop_exit
      _
    %3379 = vsyncpa [#allocation3], 1
    %s3380 = scalar_lea.sflag [#allocation3], 1
    %3381 = vsyncpa %s3380, 1
    %3382 = vsyncpa [#allocation6], 1
    %s3383 = scalar_lea.sflag [#allocation6], 1
    %3384 = vsyncpa %s3383, 1
    %3385 = vsyncpa [#allocation9], 1
    %3386 = vsyncpa [#allocation12], 1
    %3387 = vsyncpa [#allocation15], 1
    %3388 = vsyncpa [#allocation18], 1
    %3389 = vsyncpa [#allocation4], 1
    %s3390 = scalar_lea.sflag [#allocation4], 1
    %3391 = vsyncpa %s3390, 1

</llo_original>
